<compile_context>
chip_gen: v7x
topology: tpu7x:2x2x1
jax: 0.10.0
libtpu: 0.0.40
codegen_flags: <defaults>
</compile_context>

<pallas_src>
import functools

import jax
import jax.numpy as jnp
from jax.experimental import pallas as pl
from jax.experimental.pallas import tpu as pltpu


MASK_VALUE = -2.3819763e38  # same constant gemma_pytorch uses for masked logits


# ----------------------------- config ---------------------------------------
class Cfg:
    batch = 2
    seq_len = 8                 # input_len (prefill)
    max_seq_len = 16            # kv-cache length
    hidden_size = 128           # lane-dense hidden
    num_layers = 4
    num_heads = 4               # query heads
    num_kv_heads = 2            # GQA
    head_dim = 32
    intermediate_size = 256
    rms_norm_eps = 1e-6
    query_pre_attn_scalar = 32  # -> scaling = 32 ** -0.5
    attn_logit_softcapping = 50.0
    sliding_window_size = 4
    rope_theta = 10000.0
    attn_types = ("LOCAL_SLIDING", "GLOBAL")  # Gemma2 alternates local/global


# ----------------------------- shared in-kernel math -------------------------
def _rms(x, w, eps):
    # Gemma RMSNorm: x * rsqrt(mean(x^2) + eps) * (1 + weight); x:(M,H), w:(1,H)
    var = jnp.mean(x * x, axis=-1, keepdims=True)
    return x * jax.lax.rsqrt(var + eps) * (1.0 + w)


# ----------------------------- fused attention sub-block ---------------------
def _attn_block_kernel(pos_col_ref, pos_row_ref, h_ref, cos_ref, sin_ref,
                       wqkv_ref, wo_ref, w_in_ref, w_post_ref,
                       k_in_ref, v_in_ref,
                       h_out_ref, k_out_ref, v_out_ref,
                       *, eps, scaling, softcap, window, is_local,
                       num_heads, num_kv_heads, head_dim):
    T = h_ref.shape[1]
    D = head_dim
    D2 = D // 2
    Hq = num_heads
    Hkv = num_kv_heads
    qpk = Hq // Hkv
    S = k_in_ref.shape[2]

    h = h_ref[0].astype(jnp.float32)                              # (T, H)
    x = _rms(h, w_in_ref[...].astype(jnp.float32), eps)

    # qkv projection: single lane-dense MXU matmul (bf16 in, f32 accumulate).
    qkv = jnp.dot(x.astype(jnp.bfloat16), wqkv_ref[...],
                  preferred_element_type=jnp.float32)             # (T, (Hq+2Hkv)*D)

    cos = cos_ref[...]                                            # (T, D/2)
    sin = sin_ref[...]

    def rope(v):                                                  # (T, D) -> (T, D)
        a, b = v[:, :D2], v[:, D2:]
        return jnp.concatenate([a * cos - b * sin, a * sin + b * cos], axis=-1)

    q_heads = [rope(qkv[:, i * D:(i + 1) * D]) for i in range(Hq)]
    k_heads = [rope(qkv[:, (Hq + i) * D:(Hq + i + 1) * D]) for i in range(Hkv)]
    v_heads = [qkv[:, (Hq + Hkv + i) * D:(Hq + Hkv + i + 1) * D]
               for i in range(Hkv)]

    # KV-cache scatter as a one-hot matmul (general kv_write_indices, fully
    # vectorized; avoids dynamic sublane stores).  HBM cache is aliased.
    q_pos = pos_col_ref[...]                                      # (T, 1) i32
    pos_r = pos_row_ref[...]                                      # (1, T) i32
    slot = jax.lax.broadcasted_iota(jnp.int32, (S, 1), 0)         # (S, 1)
    scat = (slot == pos_r).astype(jnp.float32)                    # (S, T) one-hot
    written = jnp.sum(scat, axis=1, keepdims=True)                # (S, 1)

    # Causal / sliding-window additive mask generated from absolute positions
    # (equivalent to the mask / local_mask tensors of the PyTorch module).
    k_pos = jax.lax.broadcasted_iota(jnp.int32, (T, S), 1)        # (T, S)
    allowed = k_pos <= q_pos
    if is_local:
        allowed = jnp.logical_and(allowed, k_pos > q_pos - window)
    bias = jnp.where(allowed, 0.0, MASK_VALUE).astype(jnp.float32)
    bias_g = jnp.concatenate([bias] * qpk, axis=0)                # (qpk*T, S)

    out_heads = [None] * Hq
    for i in range(Hkv):
        new_k = jnp.dot(scat, k_heads[i], preferred_element_type=jnp.float32)
        new_v = jnp.dot(scat, v_heads[i], preferred_element_type=jnp.float32)
        k_full = jnp.where(written > 0.5, new_k,
                           k_in_ref[0, i].astype(jnp.float32))    # (S, D)
        v_full = jnp.where(written > 0.5, new_v,
                           v_in_ref[0, i].astype(jnp.float32))
        k_out_ref[0, i] = k_full.astype(k_out_ref.dtype)
        v_out_ref[0, i] = v_full.astype(v_out_ref.dtype)

        # All qpk query heads of this KV head share one MXU matmul.
        qg = jnp.concatenate([q_heads[i * qpk + j] for j in range(qpk)], axis=0)
        scores = jax.lax.dot_general(
            qg.astype(jnp.bfloat16), k_full.astype(jnp.bfloat16),
            (((1,), (1,)), ((), ())),
            preferred_element_type=jnp.float32) * scaling          # (qpk*T, S)
        if softcap is not None:
            scores = jnp.tanh(scores * (1.0 / softcap)) * softcap
        scores = scores + bias_g
        m = jnp.max(scores, axis=-1, keepdims=True)
        e = jnp.exp(scores - m)
        l = jnp.sum(e, axis=-1, keepdims=True)
        probs = e * pl.reciprocal(l, approx=True)                  # EUP divide
        og = jnp.dot(probs.astype(jnp.bfloat16), v_full.astype(jnp.bfloat16),
                     preferred_element_type=jnp.float32)           # (qpk*T, D)
        for j in range(qpk):
            out_heads[i * qpk + j] = og[j * T:(j + 1) * T, :]

    attn = jnp.concatenate(out_heads, axis=-1)                     # (T, Hq*D)
    o = jnp.dot(attn.astype(jnp.bfloat16), wo_ref[...],
                preferred_element_type=jnp.float32)                # (T, H)
    y = _rms(o, w_post_ref[...].astype(jnp.float32), eps)
    h_out_ref[0] = (h + y).astype(h_out_ref.dtype)


def attn_sub_block(h, pos_col, pos_row, cos, sin, wqkv, wo, w_in, w_post,
                   k_cache, v_cache, cfg, is_local):
    B, T, H = h.shape
    Hq, Hkv, D = cfg.num_heads, cfg.num_kv_heads, cfg.head_dim
    S = k_cache.shape[2]
    D2 = D // 2
    qkv_cols = wqkv.shape[1]

    kern = functools.partial(
        _attn_block_kernel,
        eps=cfg.rms_norm_eps,
        scaling=cfg.query_pre_attn_scalar ** -0.5,
        softcap=cfg.attn_logit_softcapping,
        window=cfg.sliding_window_size,
        is_local=is_local,
        num_heads=Hq, num_kv_heads=Hkv, head_dim=D)

    flops = B * (2 * T * H * qkv_cols + Hq * (2 * T * S * D) * 2
                 + 2 * T * (Hq * D) * H)
    transcendentals = B * Hq * T * S * 2
    bytes_accessed = (2 * h.nbytes + wqkv.nbytes + wo.nbytes
                      + 2 * (k_cache.nbytes + v_cache.nbytes))

    out = pl.pallas_call(
        kern,
        grid=(B,),
        in_specs=[
            pl.BlockSpec((T, 1), lambda b: (0, 0)),          # positions (col)
            pl.BlockSpec((1, T), lambda b: (0, 0)),          # positions (row)
            pl.BlockSpec((1, T, H), lambda b: (b, 0, 0)),    # hidden states
            pl.BlockSpec((T, D2), lambda b: (0, 0)),         # rope cos
            pl.BlockSpec((T, D2), lambda b: (0, 0)),         # rope sin
            pl.BlockSpec((H, qkv_cols), lambda b: (0, 0)),   # W_qkv (bf16)
            pl.BlockSpec((Hq * D, H), lambda b: (0, 0)),     # W_o   (bf16)
            pl.BlockSpec((1, H), lambda b: (0, 0)),          # input_ln
            pl.BlockSpec((1, H), lambda b: (0, 0)),          # post_attn_ln
            pl.BlockSpec((1, Hkv, S, D), lambda b: (b, 0, 0, 0)),  # k cache
            pl.BlockSpec((1, Hkv, S, D), lambda b: (b, 0, 0, 0)),  # v cache
        ],
        out_specs=[
            pl.BlockSpec((1, T, H), lambda b: (b, 0, 0)),
            pl.BlockSpec((1, Hkv, S, D), lambda b: (b, 0, 0, 0)),
            pl.BlockSpec((1, Hkv, S, D), lambda b: (b, 0, 0, 0)),
        ],
        out_shape=[
            jax.ShapeDtypeStruct((B, T, H), jnp.float32),
            jax.ShapeDtypeStruct(k_cache.shape, k_cache.dtype),
            jax.ShapeDtypeStruct(v_cache.shape, v_cache.dtype),
        ],
        input_output_aliases={9: 1, 10: 2},                  # in-place KV cache
        compiler_params=pltpu.CompilerParams(
            dimension_semantics=("parallel",)),
        cost_estimate=pl.CostEstimate(
            flops=flops, transcendentals=transcendentals,
            bytes_accessed=bytes_accessed),
    )(pos_col, pos_row, h, cos, sin, wqkv, wo, w_in, w_post, k_cache, v_cache)
    h_out, k_new, v_new = out
    return h_out, k_new, v_new


# ----------------------------- fused MLP sub-block ---------------------------
def _mlp_block_kernel(h_ref, wg_ref, wu_ref, wd_ref, w_pre_ref, w_post_ref,
                      h_out_ref, *, eps):
    h = h_ref[0].astype(jnp.float32)                               # (T, H)
    x = _rms(h, w_pre_ref[...].astype(jnp.float32), eps)
    xb = x.astype(jnp.bfloat16)
    gate = jnp.dot(xb, wg_ref[...], preferred_element_type=jnp.float32)
    up = jnp.dot(xb, wu_ref[...], preferred_element_type=jnp.float32)
    act = jax.nn.gelu(gate, approximate=True) * up                 # tanh-GELU GeGLU
    down = jnp.dot(act.astype(jnp.bfloat16), wd_ref[...],
                   preferred_element_type=jnp.float32)
    y = _rms(down, w_post_ref[...].astype(jnp.float32), eps)
    h_out_ref[0] = (h + y).astype(h_out_ref.dtype)


def mlp_sub_block(h, wg, wu, wd, w_pre, w_post, cfg):
    B, T, H = h.shape
    I = wg.shape[1]
    flops = B * (2 * 2 * T * H * I + 2 * T * I * H)
    bytes_accessed = 2 * h.nbytes + wg.nbytes + wu.nbytes + wd.nbytes
    return pl.pallas_call(
        functools.partial(_mlp_block_kernel, eps=cfg.rms_norm_eps),
        grid=(B,),
        in_specs=[
            pl.BlockSpec((1, T, H), lambda b: (b, 0, 0)),
            pl.BlockSpec((H, I), lambda b: (0, 0)),
            pl.BlockSpec((H, I), lambda b: (0, 0)),
            pl.BlockSpec((I, H), lambda b: (0, 0)),
            pl.BlockSpec((1, H), lambda b: (0, 0)),
            pl.BlockSpec((1, H), lambda b: (0, 0)),
        ],
        out_specs=pl.BlockSpec((1, T, H), lambda b: (b, 0, 0)),
        out_shape=jax.ShapeDtypeStruct((B, T, H), jnp.float32),
        compiler_params=pltpu.CompilerParams(
            dimension_semantics=("parallel",)),
        cost_estimate=pl.CostEstimate(flops=flops, transcendentals=B * T * I,
                                      bytes_accessed=bytes_accessed),
    )(h, wg, wu, wd, w_pre, w_post)


# ----------------------------- final RMSNorm ---------------------------------
def _final_norm_kernel(h_ref, w_ref, o_ref, *, eps):
    o_ref[0] = _rms(h_ref[0].astype(jnp.float32),
                    w_ref[...].astype(jnp.float32), eps).astype(o_ref.dtype)


def final_rmsnorm(h, w, cfg):
    B, T, H = h.shape
    return pl.pallas_call(
        functools.partial(_final_norm_kernel, eps=cfg.rms_norm_eps),
        grid=(B,),
        in_specs=[pl.BlockSpec((1, T, H), lambda b: (b, 0, 0)),
                  pl.BlockSpec((1, H), lambda b: (0, 0))],
        out_specs=pl.BlockSpec((1, T, H), lambda b: (b, 0, 0)),
        out_shape=jax.ShapeDtypeStruct((B, T, H), jnp.float32),
        compiler_params=pltpu.CompilerParams(
            dimension_semantics=("parallel",)),
    )(h, w.reshape(1, -1))


# ----------------------------- model glue ------------------------------------
def rope_tables(positions, head_dim, theta):
    inv_freq = 1.0 / (
        theta ** (jnp.arange(0, head_dim, 2, dtype=jnp.float32) / head_dim))
    ang = positions.astype(jnp.float32)[:, None] * inv_freq[None, :]  # (T, D/2)
    return jnp.cos(ang), jnp.sin(ang)


def init_params(key, cfg):
    qkv_out = (cfg.num_heads + 2 * cfg.num_kv_heads) * cfg.head_dim

    def lin(k, shape):  # matmul weights stored bf16 (MXU-native, half the DMA)
        return (jax.random.normal(k, shape, jnp.float32) * 0.02).astype(jnp.bfloat16)

    def nrm(k):
        return jax.random.normal(k, (cfg.hidden_size,), jnp.float32) * 0.1

    keys = jax.random.split(key, cfg.num_layers + 1)
    layers = []
    for i in range(cfg.num_layers):
        ks = jax.random.split(keys[i], 9)
        layers.append(dict(
            qkv_w=lin(ks[0], (cfg.hidden_size, qkv_out)),
            o_w=lin(ks[1], (cfg.num_heads * cfg.head_dim, cfg.hidden_size)),
            gate_w=lin(ks[2], (cfg.hidden_size, cfg.intermediate_size)),
            up_w=lin(ks[3], (cfg.hidden_size, cfg.intermediate_size)),
            down_w=lin(ks[4], (cfg.intermediate_size, cfg.hidden_size)),
            input_ln=nrm(ks[5]),
            post_attn_ln=nrm(ks[6]),
            pre_ffw_ln=nrm(ks[7]),
            post_ffw_ln=nrm(ks[8]),
        ))
    return dict(layers=layers, final_norm=nrm(keys[-1]))


def gemma2_block(h, lp, cos, sin, pos_col, pos_row, kv_cache, cfg, is_local):
    H = cfg.hidden_size
    k_cache, v_cache = kv_cache
    h, k_cache, v_cache = attn_sub_block(
        h, pos_col, pos_row, cos, sin,
        lp["qkv_w"], lp["o_w"],
        lp["input_ln"].reshape(1, H), lp["post_attn_ln"].reshape(1, H),
        k_cache, v_cache, cfg, is_local)
    h = mlp_sub_block(h, lp["gate_w"], lp["up_w"], lp["down_w"],
                      lp["pre_ffw_ln"].reshape(1, H),
                      lp["post_ffw_ln"].reshape(1, H), cfg)
    return h, (k_cache, v_cache)


def gemma2_forward(cfg, params, hidden_states, freqs_map, kv_write_indices,
                   kv_caches):
    # NOTE: the causal / sliding-window masks of the PyTorch signature are
    # reconstructed inside the attention kernel from kv_write_indices.
    B, T, H = hidden_states.shape
    pos = kv_write_indices.astype(jnp.int32)
    pos_col = pos.reshape(T, 1)
    pos_row = pos.reshape(1, T)
    h = hidden_states
    new_caches = []
    for i, lp in enumerate(params["layers"]):
        attn_type = cfg.attn_types[i % len(cfg.attn_types)]
        is_local = attn_type == "LOCAL_SLIDING"
        cos, sin = freqs_map[attn_type]
        h, cache = gemma2_block(h, lp, cos, sin, pos_col, pos_row,
                                kv_caches[i], cfg, is_local)
        new_caches.append(cache)
    h = final_rmsnorm(h, params["final_norm"], cfg)
    return h, new_caches


# ----------------------------- main ------------------------------------------
if __name__ == "__main__":
    cfg = Cfg()
    key = jax.random.PRNGKey(0)
    kp, kh = jax.random.split(key)

    params = init_params(kp, cfg)
    hidden_states = jax.random.normal(
        kh, (cfg.batch, cfg.seq_len, cfg.hidden_size), jnp.float32)

    kv_write_indices = jnp.arange(cfg.seq_len, dtype=jnp.int32)
    cos, sin = rope_tables(kv_write_indices, cfg.head_dim, cfg.rope_theta)
    # Gemma2 uses the same rope table for both attention types.
    freqs_map = {"LOCAL_SLIDING": (cos, sin), "GLOBAL": (cos, sin)}

    # KV cache in attention-friendly layout (B, Hkv, S_max, D).
    kv_caches = [
        (jnp.zeros((cfg.batch, cfg.num_kv_heads, cfg.max_seq_len, cfg.head_dim),
                   jnp.float32),
         jnp.zeros((cfg.batch, cfg.num_kv_heads, cfg.max_seq_len, cfg.head_dim),
                   jnp.float32))
        for _ in range(cfg.num_layers)
    ]

    fwd = jax.jit(functools.partial(gemma2_forward, cfg))
    out, new_caches = fwd(params, hidden_states, freqs_map, kv_write_indices,
                          kv_caches)
    jax.block_until_ready(out)
    assert out.shape == (cfg.batch, cfg.seq_len, cfg.hidden_size)
    print("KERNEL_OK")
</pallas_src>

<mosaic_0001>
module attributes {stable_mosaic.version = 11 : i64} {
  func.func @_mlp_block_kernel(%arg0: i32, %arg1: memref<1x8x128xf32, #tpu.memory_space<vmem>>, %arg2: memref<128x256xbf16, #tpu.memory_space<vmem>>, %arg3: memref<128x256xbf16, #tpu.memory_space<vmem>>, %arg4: memref<256x128xbf16, #tpu.memory_space<vmem>>, %arg5: memref<1x128xf32, #tpu.memory_space<vmem>>, %arg6: memref<1x128xf32, #tpu.memory_space<vmem>>, %arg7: memref<1x8x128xf32, #tpu.memory_space<vmem>>) attributes {dimension_semantics = [#tpu.dimension_semantics<parallel>], iteration_bounds = array<i64: 2>, scalar_prefetch = 0 : i64, scratch_operands = 0 : i64, tpu.core_type = #tpu.core_type<tc>, window_params = [{transform_indices = @transform_0, window_bounds = array<i64: 1, 8, 128>}, {pipeline_mode = #tpu.pipeline_mode<synchronous>, transform_indices = @transform_1, window_bounds = array<i64: 128, 256>}, {pipeline_mode = #tpu.pipeline_mode<synchronous>, transform_indices = @transform_2, window_bounds = array<i64: 128, 256>}, {pipeline_mode = #tpu.pipeline_mode<synchronous>, transform_indices = @transform_3, window_bounds = array<i64: 256, 128>}, {pipeline_mode = #tpu.pipeline_mode<synchronous>, transform_indices = @transform_4, window_bounds = array<i64: 1, 128>}, {pipeline_mode = #tpu.pipeline_mode<synchronous>, transform_indices = @transform_5, window_bounds = array<i64: 1, 128>}, {transform_indices = @transform_6, window_bounds = array<i64: 1, 8, 128>}]} {
    %c0 = arith.constant 0 : index
    %c0_0 = arith.constant 0 : index
    %c0_1 = arith.constant 0 : index
    %0 = vector.load %arg1[%c0, %c0_0, %c0_1] : memref<1x8x128xf32, #tpu.memory_space<vmem>>, vector<1x8x128xf32>
    %1 = vector.shape_cast %0 : vector<1x8x128xf32> to vector<8x128xf32>
    %c0_2 = arith.constant 0 : index
    %c0_3 = arith.constant 0 : index
    %2 = vector.load %arg5[%c0_2, %c0_3] : memref<1x128xf32, #tpu.memory_space<vmem>>, vector<1x128xf32>
    %3 = arith.mulf %1, %1 : vector<8x128xf32>
    %cst = arith.constant dense<0.000000e+00> : vector<8xf32>
    %4 = vector.multi_reduction <add>, %3, %cst [1] : vector<8x128xf32> to vector<8xf32>
    %5 = vector.shape_cast %4 : vector<8xf32> to vector<8x1xf32>
    %cst_4 = arith.constant 1.280000e+02 : f32
    %6 = vector.broadcast %cst_4 : f32 to vector<8x1xf32>
    %7 = arith.divf %5, %6 : vector<8x1xf32>
    %cst_5 = arith.constant 9.99999997E-7 : f32
    %8 = vector.broadcast %cst_5 : f32 to vector<8x1xf32>
    %9 = arith.addf %7, %8 : vector<8x1xf32>
    %10 = math.rsqrt %9 : vector<8x1xf32>
    %11 = vector.broadcast %10 : vector<8x1xf32> to vector<8x128xf32>
    %12 = arith.mulf %1, %11 : vector<8x128xf32>
    %cst_6 = arith.constant 1.000000e+00 : f32
    %13 = vector.broadcast %cst_6 : f32 to vector<1x128xf32>
    %14 = arith.addf %13, %2 : vector<1x128xf32>
    %15 = vector.broadcast %14 : vector<1x128xf32> to vector<8x128xf32>
    %16 = arith.mulf %12, %15 : vector<8x128xf32>
    %17 = arith.truncf %16 : vector<8x128xf32> to vector<8x128xbf16>
    %c0_7 = arith.constant 0 : index
    %c0_8 = arith.constant 0 : index
    %18 = vector.load %arg2[%c0_7, %c0_8] : memref<128x256xbf16, #tpu.memory_space<vmem>>, vector<128x256xbf16>
    %cst_9 = arith.constant dense<0.000000e+00> : vector<8x256xf32>
    %19 = tpu.matmul %17, %18, %cst_9 {dimension_numbers = #tpu.dot_dimension_numbers<[1], [0], [0], [1], [0, 0, 1, 1], [], []>} : vector<8x128xbf16>, vector<128x256xbf16>, vector<8x256xf32> -> vector<8x256xf32>
    %c0_10 = arith.constant 0 : index
    %c0_11 = arith.constant 0 : index
    %20 = vector.load %arg3[%c0_10, %c0_11] : memref<128x256xbf16, #tpu.memory_space<vmem>>, vector<128x256xbf16>
    %cst_12 = arith.constant dense<0.000000e+00> : vector<8x256xf32>
    %21 = tpu.matmul %17, %20, %cst_12 {dimension_numbers = #tpu.dot_dimension_numbers<[1], [0], [0], [1], [0, 0, 1, 1], [], []>} : vector<8x128xbf16>, vector<128x256xbf16>, vector<8x256xf32> -> vector<8x256xf32>
    %22 = arith.mulf %19, %19 : vector<8x256xf32>
    %23 = arith.mulf %19, %22 : vector<8x256xf32>
    %cst_13 = arith.constant 4.471500e-02 : f32
    %24 = vector.broadcast %cst_13 : f32 to vector<8x256xf32>
    %25 = arith.mulf %24, %23 : vector<8x256xf32>
    %26 = arith.addf %19, %25 : vector<8x256xf32>
    %cst_14 = arith.constant 0.797884583 : f32
    %27 = vector.broadcast %cst_14 : f32 to vector<8x256xf32>
    %28 = arith.mulf %27, %26 : vector<8x256xf32>
    %29 = math.tanh %28 : vector<8x256xf32>
    %cst_15 = arith.constant 1.000000e+00 : f32
    %30 = vector.broadcast %cst_15 : f32 to vector<8x256xf32>
    %31 = arith.addf %30, %29 : vector<8x256xf32>
    %cst_16 = arith.constant 5.000000e-01 : f32
    %32 = vector.broadcast %cst_16 : f32 to vector<8x256xf32>
    %33 = arith.mulf %32, %31 : vector<8x256xf32>
    %34 = arith.mulf %19, %33 : vector<8x256xf32>
    %35 = arith.mulf %34, %21 : vector<8x256xf32>
    %36 = arith.truncf %35 : vector<8x256xf32> to vector<8x256xbf16>
    %c0_17 = arith.constant 0 : index
    %c0_18 = arith.constant 0 : index
    %37 = vector.load %arg4[%c0_17, %c0_18] : memref<256x128xbf16, #tpu.memory_space<vmem>>, vector<256x128xbf16>
    %cst_19 = arith.constant dense<0.000000e+00> : vector<8x128xf32>
    %38 = tpu.matmul %36, %37, %cst_19 {dimension_numbers = #tpu.dot_dimension_numbers<[1], [0], [0], [1], [0, 0, 1, 1], [], []>} : vector<8x256xbf16>, vector<256x128xbf16>, vector<8x128xf32> -> vector<8x128xf32>
    %c0_20 = arith.constant 0 : index
    %c0_21 = arith.constant 0 : index
    %39 = vector.load %arg6[%c0_20, %c0_21] : memref<1x128xf32, #tpu.memory_space<vmem>>, vector<1x128xf32>
    %40 = arith.mulf %38, %38 : vector<8x128xf32>
    %cst_22 = arith.constant dense<0.000000e+00> : vector<8xf32>
    %41 = vector.multi_reduction <add>, %40, %cst_22 [1] : vector<8x128xf32> to vector<8xf32>
    %42 = vector.shape_cast %41 : vector<8xf32> to vector<8x1xf32>
    %cst_23 = arith.constant 1.280000e+02 : f32
    %43 = vector.broadcast %cst_23 : f32 to vector<8x1xf32>
    %44 = arith.divf %42, %43 : vector<8x1xf32>
    %cst_24 = arith.constant 9.99999997E-7 : f32
    %45 = vector.broadcast %cst_24 : f32 to vector<8x1xf32>
    %46 = arith.addf %44, %45 : vector<8x1xf32>
    %47 = math.rsqrt %46 : vector<8x1xf32>
    %48 = vector.broadcast %47 : vector<8x1xf32> to vector<8x128xf32>
    %49 = arith.mulf %38, %48 : vector<8x128xf32>
    %cst_25 = arith.constant 1.000000e+00 : f32
    %50 = vector.broadcast %cst_25 : f32 to vector<1x128xf32>
    %51 = arith.addf %50, %39 : vector<1x128xf32>
    %52 = vector.broadcast %51 : vector<1x128xf32> to vector<8x128xf32>
    %53 = arith.mulf %49, %52 : vector<8x128xf32>
    %54 = arith.addf %1, %53 : vector<8x128xf32>
    %c0_26 = arith.constant 0 : index
    %c0_27 = arith.constant 0 : index
    %c0_28 = arith.constant 0 : index
    %55 = vector.load %arg7[%c0_26, %c0_27, %c0_28] : memref<1x8x128xf32, #tpu.memory_space<vmem>>, vector<1x8x128xf32>
    %56 = vector.shape_cast %55 : vector<1x8x128xf32> to vector<8x128xf32>
    %57 = vector.shape_cast %54 : vector<8x128xf32> to vector<1x8x128xf32>
    tpu.vector_store %arg7[%c0_26, %c0_27, %c0_28], %57 {strides = array<i32>} : memref<1x8x128xf32, #tpu.memory_space<vmem>>, vector<1x8x128xf32>,
    return
  }
  func.func @transform_0(%arg0: i32) -> (i32, i32, i32) {
    %c0_i32 = arith.constant 0 : i32
    %c0_i32_0 = arith.constant 0 : i32
    %c0_i32_1 = arith.constant 0 : i32
    return %arg0, %c0_i32, %c0_i32_0 : i32, i32, i32
  }
  func.func @transform_1(%arg0: i32) -> (i32, i32) {
    %c0_i32 = arith.constant 0 : i32
    %c0_i32_0 = arith.constant 0 : i32
    %c0_i32_1 = arith.constant 0 : i32
    return %c0_i32, %c0_i32_0 : i32, i32
  }
  func.func @transform_2(%arg0: i32) -> (i32, i32) {
    %c0_i32 = arith.constant 0 : i32
    %c0_i32_0 = arith.constant 0 : i32
    %c0_i32_1 = arith.constant 0 : i32
    return %c0_i32, %c0_i32_0 : i32, i32
  }
  func.func @transform_3(%arg0: i32) -> (i32, i32) {
    %c0_i32 = arith.constant 0 : i32
    %c0_i32_0 = arith.constant 0 : i32
    %c0_i32_1 = arith.constant 0 : i32
    return %c0_i32, %c0_i32_0 : i32, i32
  }
  func.func @transform_4(%arg0: i32) -> (i32, i32) {
    %c0_i32 = arith.constant 0 : i32
    %c0_i32_0 = arith.constant 0 : i32
    %c0_i32_1 = arith.constant 0 : i32
    return %c0_i32, %c0_i32_0 : i32, i32
  }
  func.func @transform_5(%arg0: i32) -> (i32, i32) {
    %c0_i32 = arith.constant 0 : i32
    %c0_i32_0 = arith.constant 0 : i32
    %c0_i32_1 = arith.constant 0 : i32
    return %c0_i32, %c0_i32_0 : i32, i32
  }
  func.func @transform_6(%arg0: i32) -> (i32, i32, i32) {
    %c0_i32 = arith.constant 0 : i32
    %c0_i32_0 = arith.constant 0 : i32
    %c0_i32_1 = arith.constant 0 : i32
    return %arg0, %c0_i32, %c0_i32_0 : i32, i32, i32
  }
}

module attributes {stable_mosaic.version = 11 : i64} {
  func.func @_attn_block_kernel(%arg0: i32, %arg1: memref<8x1xi32, #tpu.memory_space<vmem>>, %arg2: memref<1x8xi32, #tpu.memory_space<vmem>>, %arg3: memref<1x8x128xf32, #tpu.memory_space<vmem>>, %arg4: memref<8x16xf32, #tpu.memory_space<vmem>>, %arg5: memref<8x16xf32, #tpu.memory_space<vmem>>, %arg6: memref<128x256xbf16, #tpu.memory_space<vmem>>, %arg7: memref<128x128xbf16, #tpu.memory_space<vmem>>, %arg8: memref<1x128xf32, #tpu.memory_space<vmem>>, %arg9: memref<1x128xf32, #tpu.memory_space<vmem>>, %arg10: memref<1x2x16x32xf32, #tpu.memory_space<vmem>>, %arg11: memref<1x2x16x32xf32, #tpu.memory_space<vmem>>, %arg12: memref<1x8x128xf32, #tpu.memory_space<vmem>>, %arg13: memref<1x2x16x32xf32, #tpu.memory_space<vmem>>, %arg14: memref<1x2x16x32xf32, #tpu.memory_space<vmem>>) attributes {dimension_semantics = [#tpu.dimension_semantics<parallel>], iteration_bounds = array<i64: 2>, scalar_prefetch = 0 : i64, scratch_operands = 0 : i64, tpu.core_type = #tpu.core_type<tc>, window_params = [{pipeline_mode = #tpu.pipeline_mode<synchronous>, transform_indices = @transform_0, window_bounds = array<i64: 8, 1>}, {pipeline_mode = #tpu.pipeline_mode<synchronous>, transform_indices = @transform_1, window_bounds = array<i64: 1, 8>}, {transform_indices = @transform_2, window_bounds = array<i64: 1, 8, 128>}, {pipeline_mode = #tpu.pipeline_mode<synchronous>, transform_indices = @transform_3, window_bounds = array<i64: 8, 16>}, {pipeline_mode = #tpu.pipeline_mode<synchronous>, transform_indices = @transform_4, window_bounds = array<i64: 8, 16>}, {pipeline_mode = #tpu.pipeline_mode<synchronous>, transform_indices = @transform_5, window_bounds = array<i64: 128, 256>}, {pipeline_mode = #tpu.pipeline_mode<synchronous>, transform_indices = @transform_6, window_bounds = array<i64: 128, 128>}, {pipeline_mode = #tpu.pipeline_mode<synchronous>, transform_indices = @transform_7, window_bounds = array<i64: 1, 128>}, {pipeline_mode = #tpu.pipeline_mode<synchronous>, transform_indices = @transform_8, window_bounds = array<i64: 1, 128>}, {transform_indices = @transform_9, window_bounds = array<i64: 1, 2, 16, 32>}, {transform_indices = @transform_10, window_bounds = array<i64: 1, 2, 16, 32>}, {transform_indices = @transform_11, window_bounds = array<i64: 1, 8, 128>}, {transform_indices = @transform_12, window_bounds = array<i64: 1, 2, 16, 32>}, {transform_indices = @transform_13, window_bounds = array<i64: 1, 2, 16, 32>}]} {
    %c0 = arith.constant 0 : index
    %c0_0 = arith.constant 0 : index
    %c0_1 = arith.constant 0 : index
    %0 = vector.load %arg3[%c0, %c0_0, %c0_1] : memref<1x8x128xf32, #tpu.memory_space<vmem>>, vector<1x8x128xf32>
    %1 = vector.shape_cast %0 : vector<1x8x128xf32> to vector<8x128xf32>
    %c0_2 = arith.constant 0 : index
    %c0_3 = arith.constant 0 : index
    %2 = vector.load %arg8[%c0_2, %c0_3] : memref<1x128xf32, #tpu.memory_space<vmem>>, vector<1x128xf32>
    %3 = arith.mulf %1, %1 : vector<8x128xf32>
    %cst = arith.constant dense<0.000000e+00> : vector<8xf32>
    %4 = vector.multi_reduction <add>, %3, %cst [1] : vector<8x128xf32> to vector<8xf32>
    %5 = vector.shape_cast %4 : vector<8xf32> to vector<8x1xf32>
    %cst_4 = arith.constant 1.280000e+02 : f32
    %6 = vector.broadcast %cst_4 : f32 to vector<8x1xf32>
    %7 = arith.divf %5, %6 : vector<8x1xf32>
    %cst_5 = arith.constant 9.99999997E-7 : f32
    %8 = vector.broadcast %cst_5 : f32 to vector<8x1xf32>
    %9 = arith.addf %7, %8 : vector<8x1xf32>
    %10 = math.rsqrt %9 : vector<8x1xf32>
    %11 = vector.broadcast %10 : vector<8x1xf32> to vector<8x128xf32>
    %12 = arith.mulf %1, %11 : vector<8x128xf32>
    %cst_6 = arith.constant 1.000000e+00 : f32
    %13 = vector.broadcast %cst_6 : f32 to vector<1x128xf32>
    %14 = arith.addf %13, %2 : vector<1x128xf32>
    %15 = vector.broadcast %14 : vector<1x128xf32> to vector<8x128xf32>
    %16 = arith.mulf %12, %15 : vector<8x128xf32>
    %17 = arith.truncf %16 : vector<8x128xf32> to vector<8x128xbf16>
    %c0_7 = arith.constant 0 : index
    %c0_8 = arith.constant 0 : index
    %18 = vector.load %arg6[%c0_7, %c0_8] : memref<128x256xbf16, #tpu.memory_space<vmem>>, vector<128x256xbf16>
    %cst_9 = arith.constant dense<0.000000e+00> : vector<8x256xf32>
    %19 = tpu.matmul %17, %18, %cst_9 {dimension_numbers = #tpu.dot_dimension_numbers<[1], [0], [0], [1], [0, 0, 1, 1], [], []>} : vector<8x128xbf16>, vector<128x256xbf16>, vector<8x256xf32> -> vector<8x256xf32>
    %c0_10 = arith.constant 0 : index
    %c0_11 = arith.constant 0 : index
    %20 = vector.load %arg4[%c0_10, %c0_11] : memref<8x16xf32, #tpu.memory_space<vmem>>, vector<8x16xf32>
    %c0_12 = arith.constant 0 : index
    %c0_13 = arith.constant 0 : index
    %21 = vector.load %arg5[%c0_12, %c0_13] : memref<8x16xf32, #tpu.memory_space<vmem>>, vector<8x16xf32>
    %22 = vector.extract_strided_slice %19 {offsets = [0, 0], sizes = [8, 32], strides = [1, 1]} : vector<8x256xf32> to vector<8x32xf32>
    %23 = vector.extract_strided_slice %22 {offsets = [0, 0], sizes = [8, 16], strides = [1, 1]} : vector<8x32xf32> to vector<8x16xf32>
    %24 = vector.extract_strided_slice %22 {offsets = [0, 16], sizes = [8, 16], strides = [1, 1]} : vector<8x32xf32> to vector<8x16xf32>
    %25 = arith.mulf %23, %20 : vector<8x16xf32>
    %26 = arith.mulf %24, %21 : vector<8x16xf32>
    %27 = arith.subf %25, %26 : vector<8x16xf32>
    %28 = arith.mulf %23, %21 : vector<8x16xf32>
    %29 = arith.mulf %24, %20 : vector<8x16xf32>
    %30 = arith.addf %28, %29 : vector<8x16xf32>
    %31 = tpu.concatenate %27, %30 in 1 : vector<8x16xf32>, vector<8x16xf32> -> vector<8x32xf32>
    %32 = vector.extract_strided_slice %19 {offsets = [0, 32], sizes = [8, 32], strides = [1, 1]} : vector<8x256xf32> to vector<8x32xf32>
    %33 = vector.extract_strided_slice %32 {offsets = [0, 0], sizes = [8, 16], strides = [1, 1]} : vector<8x32xf32> to vector<8x16xf32>
    %34 = vector.extract_strided_slice %32 {offsets = [0, 16], sizes = [8, 16], strides = [1, 1]} : vector<8x32xf32> to vector<8x16xf32>
    %35 = arith.mulf %33, %20 : vector<8x16xf32>
    %36 = arith.mulf %34, %21 : vector<8x16xf32>
    %37 = arith.subf %35, %36 : vector<8x16xf32>
    %38 = arith.mulf %33, %21 : vector<8x16xf32>
    %39 = arith.mulf %34, %20 : vector<8x16xf32>
    %40 = arith.addf %38, %39 : vector<8x16xf32>
    %41 = tpu.concatenate %37, %40 in 1 : vector<8x16xf32>, vector<8x16xf32> -> vector<8x32xf32>
    %42 = vector.extract_strided_slice %19 {offsets = [0, 64], sizes = [8, 32], strides = [1, 1]} : vector<8x256xf32> to vector<8x32xf32>
    %43 = vector.extract_strided_slice %42 {offsets = [0, 0], sizes = [8, 16], strides = [1, 1]} : vector<8x32xf32> to vector<8x16xf32>
    %44 = vector.extract_strided_slice %42 {offsets = [0, 16], sizes = [8, 16], strides = [1, 1]} : vector<8x32xf32> to vector<8x16xf32>
    %45 = arith.mulf %43, %20 : vector<8x16xf32>
    %46 = arith.mulf %44, %21 : vector<8x16xf32>
    %47 = arith.subf %45, %46 : vector<8x16xf32>
    %48 = arith.mulf %43, %21 : vector<8x16xf32>
    %49 = arith.mulf %44, %20 : vector<8x16xf32>
    %50 = arith.addf %48, %49 : vector<8x16xf32>
    %51 = tpu.concatenate %47, %50 in 1 : vector<8x16xf32>, vector<8x16xf32> -> vector<8x32xf32>
    %52 = vector.extract_strided_slice %19 {offsets = [0, 96], sizes = [8, 32], strides = [1, 1]} : vector<8x256xf32> to vector<8x32xf32>
    %53 = vector.extract_strided_slice %52 {offsets = [0, 0], sizes = [8, 16], strides = [1, 1]} : vector<8x32xf32> to vector<8x16xf32>
    %54 = vector.extract_strided_slice %52 {offsets = [0, 16], sizes = [8, 16], strides = [1, 1]} : vector<8x32xf32> to vector<8x16xf32>
    %55 = arith.mulf %53, %20 : vector<8x16xf32>
    %56 = arith.mulf %54, %21 : vector<8x16xf32>
    %57 = arith.subf %55, %56 : vector<8x16xf32>
    %58 = arith.mulf %53, %21 : vector<8x16xf32>
    %59 = arith.mulf %54, %20 : vector<8x16xf32>
    %60 = arith.addf %58, %59 : vector<8x16xf32>
    %61 = tpu.concatenate %57, %60 in 1 : vector<8x16xf32>, vector<8x16xf32> -> vector<8x32xf32>
    %62 = vector.extract_strided_slice %19 {offsets = [0, 128], sizes = [8, 32], strides = [1, 1]} : vector<8x256xf32> to vector<8x32xf32>
    %63 = vector.extract_strided_slice %62 {offsets = [0, 0], sizes = [8, 16], strides = [1, 1]} : vector<8x32xf32> to vector<8x16xf32>
    %64 = vector.extract_strided_slice %62 {offsets = [0, 16], sizes = [8, 16], strides = [1, 1]} : vector<8x32xf32> to vector<8x16xf32>
    %65 = arith.mulf %63, %20 : vector<8x16xf32>
    %66 = arith.mulf %64, %21 : vector<8x16xf32>
    %67 = arith.subf %65, %66 : vector<8x16xf32>
    %68 = arith.mulf %63, %21 : vector<8x16xf32>
    %69 = arith.mulf %64, %20 : vector<8x16xf32>
    %70 = arith.addf %68, %69 : vector<8x16xf32>
    %71 = tpu.concatenate %67, %70 in 1 : vector<8x16xf32>, vector<8x16xf32> -> vector<8x32xf32>
    %72 = vector.extract_strided_slice %19 {offsets = [0, 160], sizes = [8, 32], strides = [1, 1]} : vector<8x256xf32> to vector<8x32xf32>
    %73 = vector.extract_strided_slice %72 {offsets = [0, 0], sizes = [8, 16], strides = [1, 1]} : vector<8x32xf32> to vector<8x16xf32>
    %74 = vector.extract_strided_slice %72 {offsets = [0, 16], sizes = [8, 16], strides = [1, 1]} : vector<8x32xf32> to vector<8x16xf32>
    %75 = arith.mulf %73, %20 : vector<8x16xf32>
    %76 = arith.mulf %74, %21 : vector<8x16xf32>
    %77 = arith.subf %75, %76 : vector<8x16xf32>
    %78 = arith.mulf %73, %21 : vector<8x16xf32>
    %79 = arith.mulf %74, %20 : vector<8x16xf32>
    %80 = arith.addf %78, %79 : vector<8x16xf32>
    %81 = tpu.concatenate %77, %80 in 1 : vector<8x16xf32>, vector<8x16xf32> -> vector<8x32xf32>
    %82 = vector.extract_strided_slice %19 {offsets = [0, 192], sizes = [8, 32], strides = [1, 1]} : vector<8x256xf32> to vector<8x32xf32>
    %83 = vector.extract_strided_slice %19 {offsets = [0, 224], sizes = [8, 32], strides = [1, 1]} : vector<8x256xf32> to vector<8x32xf32>
    %c0_14 = arith.constant 0 : index
    %c0_15 = arith.constant 0 : index
    %84 = vector.load %arg1[%c0_14, %c0_15] : memref<8x1xi32, #tpu.memory_space<vmem>>, vector<8x1xi32>
    %c0_16 = arith.constant 0 : index
    %c0_17 = arith.constant 0 : index
    %85 = vector.load %arg2[%c0_16, %c0_17] : memref<1x8xi32, #tpu.memory_space<vmem>>, vector<1x8xi32>
    %86 = tpu.iota {dimensions = array<i32: 0>} : vector<16x1xi32>
    %87 = vector.broadcast %86 : vector<16x1xi32> to vector<16x8xi32>
    %88 = vector.broadcast %85 : vector<1x8xi32> to vector<16x8xi32>
    %89 = arith.cmpi eq, %87, %88 : vector<16x8xi32>
    %90 = arith.extui %89 : vector<16x8xi1> to vector<16x8xi32>
    %91 = arith.sitofp %90 : vector<16x8xi32> to vector<16x8xf32>
    %cst_18 = arith.constant dense<0.000000e+00> : vector<16xf32>
    %92 = vector.multi_reduction <add>, %91, %cst_18 [1] : vector<16x8xf32> to vector<16xf32>
    %93 = vector.shape_cast %92 : vector<16xf32> to vector<16x1xf32>
    %94 = tpu.iota {dimensions = array<i32: 1>} : vector<8x16xi32>
    %95 = vector.broadcast %84 : vector<8x1xi32> to vector<8x16xi32>
    %96 = arith.cmpi sle, %94, %95 : vector<8x16xi32>
    %cst_19 = arith.constant 0.000000e+00 : f32
    %cst_20 = arith.constant -2.38197633E+38 : f32
    %97 = vector.broadcast %cst_19 : f32 to vector<8x16xf32>
    %98 = vector.broadcast %cst_20 : f32 to vector<8x16xf32>
    %99 = arith.select %96, %97, %98 : vector<8x16xi1>, vector<8x16xf32>
    %100 = tpu.concatenate %99, %99 in 0 : vector<8x16xf32>, vector<8x16xf32> -> vector<16x16xf32>
    %cst_21 = arith.constant dense<0.000000e+00> : vector<16x32xf32>
    %101 = tpu.matmul %91, %71, %cst_21 {dimension_numbers = #tpu.dot_dimension_numbers<[1], [0], [0], [1], [0, 0, 1, 1], [], []>} : vector<16x8xf32>, vector<8x32xf32>, vector<16x32xf32> -> vector<16x32xf32>
    %cst_22 = arith.constant dense<0.000000e+00> : vector<16x32xf32>
    %102 = tpu.matmul %91, %82, %cst_22 {dimension_numbers = #tpu.dot_dimension_numbers<[1], [0], [0], [1], [0, 0, 1, 1], [], []>} : vector<16x8xf32>, vector<8x32xf32>, vector<16x32xf32> -> vector<16x32xf32>
    %cst_23 = arith.constant 5.000000e-01 : f32
    %103 = vector.broadcast %cst_23 : f32 to vector<16x1xf32>
    %104 = arith.cmpf ogt, %93, %103 : vector<16x1xf32>
    %c0_24 = arith.constant 0 : index
    %c0_25 = arith.constant 0 : index
    %c0_26 = arith.constant 0 : index
    %c0_27 = arith.constant 0 : index
    %105 = vector.load %arg10[%c0_24, %c0_25, %c0_26, %c0_27] : memref<1x2x16x32xf32, #tpu.memory_space<vmem>>, vector<1x1x16x32xf32>
    %106 = vector.shape_cast %105 : vector<1x1x16x32xf32> to vector<16x32xf32>
    %107 = vector.shape_cast %104 : vector<16x1xi1> to vector<16x1xi1>
    %108 = vector.broadcast %107 : vector<16x1xi1> to vector<16x32xi1>
    %109 = arith.select %108, %101, %106 : vector<16x32xi1>, vector<16x32xf32>
    %cst_28 = arith.constant 5.000000e-01 : f32
    %110 = vector.broadcast %cst_28 : f32 to vector<16x1xf32>
    %111 = arith.cmpf ogt, %93, %110 : vector<16x1xf32>
    %c0_29 = arith.constant 0 : index
    %c0_30 = arith.constant 0 : index
    %c0_31 = arith.constant 0 : index
    %c0_32 = arith.constant 0 : index
    %112 = vector.load %arg11[%c0_29, %c0_30, %c0_31, %c0_32] : memref<1x2x16x32xf32, #tpu.memory_space<vmem>>, vector<1x1x16x32xf32>
    %113 = vector.shape_cast %112 : vector<1x1x16x32xf32> to vector<16x32xf32>
    %114 = vector.shape_cast %111 : vector<16x1xi1> to vector<16x1xi1>
    %115 = vector.broadcast %114 : vector<16x1xi1> to vector<16x32xi1>
    %116 = arith.select %115, %102, %113 : vector<16x32xi1>, vector<16x32xf32>
    %c0_33 = arith.constant 0 : index
    %c0_34 = arith.constant 0 : index
    %c0_35 = arith.constant 0 : index
    %c0_36 = arith.constant 0 : index
    %117 = vector.load %arg13[%c0_33, %c0_34, %c0_35, %c0_36] : memref<1x2x16x32xf32, #tpu.memory_space<vmem>>, vector<1x1x16x32xf32>
    %118 = vector.shape_cast %117 : vector<1x1x16x32xf32> to vector<16x32xf32>
    %119 = vector.shape_cast %109 : vector<16x32xf32> to vector<1x1x16x32xf32>
    tpu.vector_store %arg13[%c0_33, %c0_34, %c0_35, %c0_36], %119 {strides = array<i32>} : memref<1x2x16x32xf32, #tpu.memory_space<vmem>>, vector<1x1x16x32xf32>,
    %c0_37 = arith.constant 0 : index
    %c0_38 = arith.constant 0 : index
    %c0_39 = arith.constant 0 : index
    %c0_40 = arith.constant 0 : index
    %120 = vector.load %arg14[%c0_37, %c0_38, %c0_39, %c0_40] : memref<1x2x16x32xf32, #tpu.memory_space<vmem>>, vector<1x1x16x32xf32>
    %121 = vector.shape_cast %120 : vector<1x1x16x32xf32> to vector<16x32xf32>
    %122 = vector.shape_cast %116 : vector<16x32xf32> to vector<1x1x16x32xf32>
    tpu.vector_store %arg14[%c0_37, %c0_38, %c0_39, %c0_40], %122 {strides = array<i32>} : memref<1x2x16x32xf32, #tpu.memory_space<vmem>>, vector<1x1x16x32xf32>,
    %123 = tpu.concatenate %31, %41 in 0 : vector<8x32xf32>, vector<8x32xf32> -> vector<16x32xf32>
    %124 = arith.truncf %123 : vector<16x32xf32> to vector<16x32xbf16>
    %125 = arith.truncf %109 : vector<16x32xf32> to vector<16x32xbf16>
    %cst_41 = arith.constant dense<0.000000e+00> : vector<16x16xf32>
    %126 = tpu.matmul %124, %125, %cst_41 {dimension_numbers = #tpu.dot_dimension_numbers<[1], [1], [0], [0], [0, 0, 1, 0], [], []>} : vector<16x32xbf16>, vector<16x32xbf16>, vector<16x16xf32> -> vector<16x16xf32>
    %cst_42 = arith.constant 0.176776692 : f32
    %127 = vector.broadcast %cst_42 : f32 to vector<16x16xf32>
    %128 = arith.mulf %126, %127 : vector<16x16xf32>
    %cst_43 = arith.constant 2.000000e-02 : f32
    %129 = vector.broadcast %cst_43 : f32 to vector<16x16xf32>
    %130 = arith.mulf %128, %129 : vector<16x16xf32>
    %131 = math.tanh %130 : vector<16x16xf32>
    %cst_44 = arith.constant 5.000000e+01 : f32
    %132 = vector.broadcast %cst_44 : f32 to vector<16x16xf32>
    %133 = arith.mulf %131, %132 : vector<16x16xf32>
    %134 = arith.addf %133, %100 : vector<16x16xf32>
    %cst_45 = arith.constant dense<0xFF800000> : vector<16xf32>
    %135 = vector.multi_reduction <maximumf>, %134, %cst_45 [1] : vector<16x16xf32> to vector<16xf32>
    %136 = vector.shape_cast %135 : vector<16xf32> to vector<16x1xf32>
    %137 = vector.broadcast %136 : vector<16x1xf32> to vector<16x16xf32>
    %138 = arith.subf %134, %137 : vector<16x16xf32>
    %139 = math.exp %138 : vector<16x16xf32>
    %cst_46 = arith.constant dense<0.000000e+00> : vector<16xf32>
    %140 = vector.multi_reduction <add>, %139, %cst_46 [1] : vector<16x16xf32> to vector<16xf32>
    %141 = vector.shape_cast %140 : vector<16xf32> to vector<16x1xf32>
    %142 = tpu.reciprocal %141 {approx = true} : vector<16x1xf32> -> vector<16x1xf32>
    %143 = vector.broadcast %142 : vector<16x1xf32> to vector<16x16xf32>
    %144 = arith.mulf %139, %143 : vector<16x16xf32>
    %145 = arith.truncf %144 : vector<16x16xf32> to vector<16x16xbf16>
    %146 = arith.truncf %116 : vector<16x32xf32> to vector<16x32xbf16>
    %cst_47 = arith.constant dense<0.000000e+00> : vector<16x32xf32>
    %147 = tpu.matmul %145, %146, %cst_47 {dimension_numbers = #tpu.dot_dimension_numbers<[1], [0], [0], [1], [0, 0, 1, 1], [], []>} : vector<16x16xbf16>, vector<16x32xbf16>, vector<16x32xf32> -> vector<16x32xf32>
    %148 = vector.extract_strided_slice %147 {offsets = [0, 0], sizes = [8, 32], strides = [1, 1]} : vector<16x32xf32> to vector<8x32xf32>
    %149 = vector.extract_strided_slice %147 {offsets = [8, 0], sizes = [8, 32], strides = [1, 1]} : vector<16x32xf32> to vector<8x32xf32>
    %cst_48 = arith.constant dense<0.000000e+00> : vector<16x32xf32>
    %150 = tpu.matmul %91, %81, %cst_48 {dimension_numbers = #tpu.dot_dimension_numbers<[1], [0], [0], [1], [0, 0, 1, 1], [], []>} : vector<16x8xf32>, vector<8x32xf32>, vector<16x32xf32> -> vector<16x32xf32>
    %cst_49 = arith.constant dense<0.000000e+00> : vector<16x32xf32>
    %151 = tpu.matmul %91, %83, %cst_49 {dimension_numbers = #tpu.dot_dimension_numbers<[1], [0], [0], [1], [0, 0, 1, 1], [], []>} : vector<16x8xf32>, vector<8x32xf32>, vector<16x32xf32> -> vector<16x32xf32>
    %cst_50 = arith.constant 5.000000e-01 : f32
    %152 = vector.broadcast %cst_50 : f32 to vector<16x1xf32>
    %153 = arith.cmpf ogt, %93, %152 : vector<16x1xf32>
    %c0_51 = arith.constant 0 : index
    %c1 = arith.constant 1 : index
    %c0_52 = arith.constant 0 : index
    %c0_53 = arith.constant 0 : index
    %154 = vector.load %arg10[%c0_51, %c1, %c0_52, %c0_53] : memref<1x2x16x32xf32, #tpu.memory_space<vmem>>, vector<1x1x16x32xf32>
    %155 = vector.shape_cast %154 : vector<1x1x16x32xf32> to vector<16x32xf32>
    %156 = vector.shape_cast %153 : vector<16x1xi1> to vector<16x1xi1>
    %157 = vector.broadcast %156 : vector<16x1xi1> to vector<16x32xi1>
    %158 = arith.select %157, %150, %155 : vector<16x32xi1>, vector<16x32xf32>
    %cst_54 = arith.constant 5.000000e-01 : f32
    %159 = vector.broadcast %cst_54 : f32 to vector<16x1xf32>
    %160 = arith.cmpf ogt, %93, %159 : vector<16x1xf32>
    %c0_55 = arith.constant 0 : index
    %c1_56 = arith.constant 1 : index
    %c0_57 = arith.constant 0 : index
    %c0_58 = arith.constant 0 : index
    %161 = vector.load %arg11[%c0_55, %c1_56, %c0_57, %c0_58] : memref<1x2x16x32xf32, #tpu.memory_space<vmem>>, vector<1x1x16x32xf32>
    %162 = vector.shape_cast %161 : vector<1x1x16x32xf32> to vector<16x32xf32>
    %163 = vector.shape_cast %160 : vector<16x1xi1> to vector<16x1xi1>
    %164 = vector.broadcast %163 : vector<16x1xi1> to vector<16x32xi1>
    %165 = arith.select %164, %151, %162 : vector<16x32xi1>, vector<16x32xf32>
    %c0_59 = arith.constant 0 : index
    %c1_60 = arith.constant 1 : index
    %c0_61 = arith.constant 0 : index
    %c0_62 = arith.constant 0 : index
    %166 = vector.load %arg13[%c0_59, %c1_60, %c0_61, %c0_62] : memref<1x2x16x32xf32, #tpu.memory_space<vmem>>, vector<1x1x16x32xf32>
    %167 = vector.shape_cast %166 : vector<1x1x16x32xf32> to vector<16x32xf32>
    %168 = vector.shape_cast %158 : vector<16x32xf32> to vector<1x1x16x32xf32>
    tpu.vector_store %arg13[%c0_59, %c1_60, %c0_61, %c0_62], %168 {strides = array<i32>} : memref<1x2x16x32xf32, #tpu.memory_space<vmem>>, vector<1x1x16x32xf32>,
    %c0_63 = arith.constant 0 : index
    %c1_64 = arith.constant 1 : index
    %c0_65 = arith.constant 0 : index
    %c0_66 = arith.constant 0 : index
    %169 = vector.load %arg14[%c0_63, %c1_64, %c0_65, %c0_66] : memref<1x2x16x32xf32, #tpu.memory_space<vmem>>, vector<1x1x16x32xf32>
    %170 = vector.shape_cast %169 : vector<1x1x16x32xf32> to vector<16x32xf32>
    %171 = vector.shape_cast %165 : vector<16x32xf32> to vector<1x1x16x32xf32>
    tpu.vector_store %arg14[%c0_63, %c1_64, %c0_65, %c0_66], %171 {strides = array<i32>} : memref<1x2x16x32xf32, #tpu.memory_space<vmem>>, vector<1x1x16x32xf32>,
    %172 = tpu.concatenate %51, %61 in 0 : vector<8x32xf32>, vector<8x32xf32> -> vector<16x32xf32>
    %173 = arith.truncf %172 : vector<16x32xf32> to vector<16x32xbf16>
    %174 = arith.truncf %158 : vector<16x32xf32> to vector<16x32xbf16>
    %cst_67 = arith.constant dense<0.000000e+00> : vector<16x16xf32>
    %175 = tpu.matmul %173, %174, %cst_67 {dimension_numbers = #tpu.dot_dimension_numbers<[1], [1], [0], [0], [0, 0, 1, 0], [], []>} : vector<16x32xbf16>, vector<16x32xbf16>, vector<16x16xf32> -> vector<16x16xf32>
    %cst_68 = arith.constant 0.176776692 : f32
    %176 = vector.broadcast %cst_68 : f32 to vector<16x16xf32>
    %177 = arith.mulf %175, %176 : vector<16x16xf32>
    %cst_69 = arith.constant 2.000000e-02 : f32
    %178 = vector.broadcast %cst_69 : f32 to vector<16x16xf32>
    %179 = arith.mulf %177, %178 : vector<16x16xf32>
    %180 = math.tanh %179 : vector<16x16xf32>
    %cst_70 = arith.constant 5.000000e+01 : f32
    %181 = vector.broadcast %cst_70 : f32 to vector<16x16xf32>
    %182 = arith.mulf %180, %181 : vector<16x16xf32>
    %183 = arith.addf %182, %100 : vector<16x16xf32>
    %cst_71 = arith.constant dense<0xFF800000> : vector<16xf32>
    %184 = vector.multi_reduction <maximumf>, %183, %cst_71 [1] : vector<16x16xf32> to vector<16xf32>
    %185 = vector.shape_cast %184 : vector<16xf32> to vector<16x1xf32>
    %186 = vector.broadcast %185 : vector<16x1xf32> to vector<16x16xf32>
    %187 = arith.subf %183, %186 : vector<16x16xf32>
    %188 = math.exp %187 : vector<16x16xf32>
    %cst_72 = arith.constant dense<0.000000e+00> : vector<16xf32>
    %189 = vector.multi_reduction <add>, %188, %cst_72 [1] : vector<16x16xf32> to vector<16xf32>
    %190 = vector.shape_cast %189 : vector<16xf32> to vector<16x1xf32>
    %191 = tpu.reciprocal %190 {approx = true} : vector<16x1xf32> -> vector<16x1xf32>
    %192 = vector.broadcast %191 : vector<16x1xf32> to vector<16x16xf32>
    %193 = arith.mulf %188, %192 : vector<16x16xf32>
    %194 = arith.truncf %193 : vector<16x16xf32> to vector<16x16xbf16>
    %195 = arith.truncf %165 : vector<16x32xf32> to vector<16x32xbf16>
    %cst_73 = arith.constant dense<0.000000e+00> : vector<16x32xf32>
    %196 = tpu.matmul %194, %195, %cst_73 {dimension_numbers = #tpu.dot_dimension_numbers<[1], [0], [0], [1], [0, 0, 1, 1], [], []>} : vector<16x16xbf16>, vector<16x32xbf16>, vector<16x32xf32> -> vector<16x32xf32>
    %197 = vector.extract_strided_slice %196 {offsets = [0, 0], sizes = [8, 32], strides = [1, 1]} : vector<16x32xf32> to vector<8x32xf32>
    %198 = vector.extract_strided_slice %196 {offsets = [8, 0], sizes = [8, 32], strides = [1, 1]} : vector<16x32xf32> to vector<8x32xf32>
    %199 = tpu.concatenate %148, %149, %197, %198 in 1 : vector<8x32xf32>, vector<8x32xf32>, vector<8x32xf32>, vector<8x32xf32> -> vector<8x128xf32>
    %200 = arith.truncf %199 : vector<8x128xf32> to vector<8x128xbf16>
    %c0_74 = arith.constant 0 : index
    %c0_75 = arith.constant 0 : index
    %201 = vector.load %arg7[%c0_74, %c0_75] : memref<128x128xbf16, #tpu.memory_space<vmem>>, vector<128x128xbf16>
    %cst_76 = arith.constant dense<0.000000e+00> : vector<8x128xf32>
    %202 = tpu.matmul %200, %201, %cst_76 {dimension_numbers = #tpu.dot_dimension_numbers<[1], [0], [0], [1], [0, 0, 1, 1], [], []>} : vector<8x128xbf16>, vector<128x128xbf16>, vector<8x128xf32> -> vector<8x128xf32>
    %c0_77 = arith.constant 0 : index
    %c0_78 = arith.constant 0 : index
    %203 = vector.load %arg9[%c0_77, %c0_78] : memref<1x128xf32, #tpu.memory_space<vmem>>, vector<1x128xf32>
    %204 = arith.mulf %202, %202 : vector<8x128xf32>
    %cst_79 = arith.constant dense<0.000000e+00> : vector<8xf32>
    %205 = vector.multi_reduction <add>, %204, %cst_79 [1] : vector<8x128xf32> to vector<8xf32>
    %206 = vector.shape_cast %205 : vector<8xf32> to vector<8x1xf32>
    %cst_80 = arith.constant 1.280000e+02 : f32
    %207 = vector.broadcast %cst_80 : f32 to vector<8x1xf32>
    %208 = arith.divf %206, %207 : vector<8x1xf32>
    %cst_81 = arith.constant 9.99999997E-7 : f32
    %209 = vector.broadcast %cst_81 : f32 to vector<8x1xf32>
    %210 = arith.addf %208, %209 : vector<8x1xf32>
    %211 = math.rsqrt %210 : vector<8x1xf32>
    %212 = vector.broadcast %211 : vector<8x1xf32> to vector<8x128xf32>
    %213 = arith.mulf %202, %212 : vector<8x128xf32>
    %cst_82 = arith.constant 1.000000e+00 : f32
    %214 = vector.broadcast %cst_82 : f32 to vector<1x128xf32>
    %215 = arith.addf %214, %203 : vector<1x128xf32>
    %216 = vector.broadcast %215 : vector<1x128xf32> to vector<8x128xf32>
    %217 = arith.mulf %213, %216 : vector<8x128xf32>
    %218 = arith.addf %1, %217 : vector<8x128xf32>
    %c0_83 = arith.constant 0 : index
    %c0_84 = arith.constant 0 : index
    %c0_85 = arith.constant 0 : index
    %219 = vector.load %arg12[%c0_83, %c0_84, %c0_85] : memref<1x8x128xf32, #tpu.memory_space<vmem>>, vector<1x8x128xf32>
    %220 = vector.shape_cast %219 : vector<1x8x128xf32> to vector<8x128xf32>
    %221 = vector.shape_cast %218 : vector<8x128xf32> to vector<1x8x128xf32>
    tpu.vector_store %arg12[%c0_83, %c0_84, %c0_85], %221 {strides = array<i32>} : memref<1x8x128xf32, #tpu.memory_space<vmem>>, vector<1x8x128xf32>,
    return
  }
  func.func @transform_0(%arg0: i32) -> (i32, i32) {
    %c0_i32 = arith.constant 0 : i32
    %c0_i32_0 = arith.constant 0 : i32
    %c0_i32_1 = arith.constant 0 : i32
    return %c0_i32, %c0_i32_0 : i32, i32
  }
  func.func @transform_1(%arg0: i32) -> (i32, i32) {
    %c0_i32 = arith.constant 0 : i32
    %c0_i32_0 = arith.constant 0 : i32
    %c0_i32_1 = arith.constant 0 : i32
    return %c0_i32, %c0_i32_0 : i32, i32
  }
  func.func @transform_2(%arg0: i32) -> (i32, i32, i32) {
    %c0_i32 = arith.constant 0 : i32
    %c0_i32_0 = arith.constant 0 : i32
    %c0_i32_1 = arith.constant 0 : i32
    return %arg0, %c0_i32, %c0_i32_0 : i32, i32, i32
  }
  func.func @transform_3(%arg0: i32) -> (i32, i32) {
    %c0_i32 = arith.constant 0 : i32
    %c0_i32_0 = arith.constant 0 : i32
    %c0_i32_1 = arith.constant 0 : i32
    return %c0_i32, %c0_i32_0 : i32, i32
  }
  func.func @transform_4(%arg0: i32) -> (i32, i32) {
    %c0_i32 = arith.constant 0 : i32
    %c0_i32_0 = arith.constant 0 : i32
    %c0_i32_1 = arith.constant 0 : i32
    return %c0_i32, %c0_i32_0 : i32, i32
  }
  func.func @transform_5(%arg0: i32) -> (i32, i32) {
    %c0_i32 = arith.constant 0 : i32
    %c0_i32_0 = arith.constant 0 : i32
    %c0_i32_1 = arith.constant 0 : i32
    return %c0_i32, %c0_i32_0 : i32, i32
  }
  func.func @transform_6(%arg0: i32) -> (i32, i32) {
    %c0_i32 = arith.constant 0 : i32
    %c0_i32_0 = arith.constant 0 : i32
    %c0_i32_1 = arith.constant 0 : i32
    return %c0_i32, %c0_i32_0 : i32, i32
  }
  func.func @transform_7(%arg0: i32) -> (i32, i32) {
    %c0_i32 = arith.constant 0 : i32
    %c0_i32_0 = arith.constant 0 : i32
    %c0_i32_1 = arith.constant 0 : i32
    return %c0_i32, %c0_i32_0 : i32, i32
  }
  func.func @transform_8(%arg0: i32) -> (i32, i32) {
    %c0_i32 = arith.constant 0 : i32
    %c0_i32_0 = arith.constant 0 : i32
    %c0_i32_1 = arith.constant 0 : i32
    return %c0_i32, %c0_i32_0 : i32, i32
  }
  func.func @transform_9(%arg0: i32) -> (i32, i32, i32, i32) {
    %c0_i32 = arith.constant 0 : i32
    %c0_i32_0 = arith.constant 0 : i32
    %c0_i32_1 = arith.constant 0 : i32
    %c0_i32_2 = arith.constant 0 : i32
    return %arg0, %c0_i32, %c0_i32_0, %c0_i32_1 : i32, i32, i32, i32
  }
  func.func @transform_10(%arg0: i32) -> (i32, i32, i32, i32) {
    %c0_i32 = arith.constant 0 : i32
    %c0_i32_0 = arith.constant 0 : i32
    %c0_i32_1 = arith.constant 0 : i32
    %c0_i32_2 = arith.constant 0 : i32
    return %arg0, %c0_i32, %c0_i32_0, %c0_i32_1 : i32, i32, i32, i32
  }
  func.func @transform_11(%arg0: i32) -> (i32, i32, i32) {
    %c0_i32 = arith.constant 0 : i32
    %c0_i32_0 = arith.constant 0 : i32
    %c0_i32_1 = arith.constant 0 : i32
    return %arg0, %c0_i32, %c0_i32_0 : i32, i32, i32
  }
  func.func @transform_12(%arg0: i32) -> (i32, i32, i32, i32) {
    %c0_i32 = arith.constant 0 : i32
    %c0_i32_0 = arith.constant 0 : i32
    %c0_i32_1 = arith.constant 0 : i32
    %c0_i32_2 = arith.constant 0 : i32
    return %arg0, %c0_i32, %c0_i32_0, %c0_i32_1 : i32, i32, i32, i32
  }
  func.func @transform_13(%arg0: i32) -> (i32, i32, i32, i32) {
    %c0_i32 = arith.constant 0 : i32
    %c0_i32_0 = arith.constant 0 : i32
    %c0_i32_1 = arith.constant 0 : i32
    %c0_i32_2 = arith.constant 0 : i32
    return %arg0, %c0_i32, %c0_i32_0, %c0_i32_1 : i32, i32, i32, i32
  }
}

module attributes {stable_mosaic.version = 11 : i64} {
  func.func @_attn_block_kernel(%arg0: i32, %arg1: memref<8x1xi32, #tpu.memory_space<vmem>>, %arg2: memref<1x8xi32, #tpu.memory_space<vmem>>, %arg3: memref<1x8x128xf32, #tpu.memory_space<vmem>>, %arg4: memref<8x16xf32, #tpu.memory_space<vmem>>, %arg5: memref<8x16xf32, #tpu.memory_space<vmem>>, %arg6: memref<128x256xbf16, #tpu.memory_space<vmem>>, %arg7: memref<128x128xbf16, #tpu.memory_space<vmem>>, %arg8: memref<1x128xf32, #tpu.memory_space<vmem>>, %arg9: memref<1x128xf32, #tpu.memory_space<vmem>>, %arg10: memref<1x2x16x32xf32, #tpu.memory_space<vmem>>, %arg11: memref<1x2x16x32xf32, #tpu.memory_space<vmem>>, %arg12: memref<1x8x128xf32, #tpu.memory_space<vmem>>, %arg13: memref<1x2x16x32xf32, #tpu.memory_space<vmem>>, %arg14: memref<1x2x16x32xf32, #tpu.memory_space<vmem>>) attributes {dimension_semantics = [#tpu.dimension_semantics<parallel>], iteration_bounds = array<i64: 2>, scalar_prefetch = 0 : i64, scratch_operands = 0 : i64, tpu.core_type = #tpu.core_type<tc>, window_params = [{pipeline_mode = #tpu.pipeline_mode<synchronous>, transform_indices = @transform_0, window_bounds = array<i64: 8, 1>}, {pipeline_mode = #tpu.pipeline_mode<synchronous>, transform_indices = @transform_1, window_bounds = array<i64: 1, 8>}, {transform_indices = @transform_2, window_bounds = array<i64: 1, 8, 128>}, {pipeline_mode = #tpu.pipeline_mode<synchronous>, transform_indices = @transform_3, window_bounds = array<i64: 8, 16>}, {pipeline_mode = #tpu.pipeline_mode<synchronous>, transform_indices = @transform_4, window_bounds = array<i64: 8, 16>}, {pipeline_mode = #tpu.pipeline_mode<synchronous>, transform_indices = @transform_5, window_bounds = array<i64: 128, 256>}, {pipeline_mode = #tpu.pipeline_mode<synchronous>, transform_indices = @transform_6, window_bounds = array<i64: 128, 128>}, {pipeline_mode = #tpu.pipeline_mode<synchronous>, transform_indices = @transform_7, window_bounds = array<i64: 1, 128>}, {pipeline_mode = #tpu.pipeline_mode<synchronous>, transform_indices = @transform_8, window_bounds = array<i64: 1, 128>}, {transform_indices = @transform_9, window_bounds = array<i64: 1, 2, 16, 32>}, {transform_indices = @transform_10, window_bounds = array<i64: 1, 2, 16, 32>}, {transform_indices = @transform_11, window_bounds = array<i64: 1, 8, 128>}, {transform_indices = @transform_12, window_bounds = array<i64: 1, 2, 16, 32>}, {transform_indices = @transform_13, window_bounds = array<i64: 1, 2, 16, 32>}]} {
    %c0 = arith.constant 0 : index
    %c0_0 = arith.constant 0 : index
    %c0_1 = arith.constant 0 : index
    %0 = vector.load %arg3[%c0, %c0_0, %c0_1] : memref<1x8x128xf32, #tpu.memory_space<vmem>>, vector<1x8x128xf32>
    %1 = vector.shape_cast %0 : vector<1x8x128xf32> to vector<8x128xf32>
    %c0_2 = arith.constant 0 : index
    %c0_3 = arith.constant 0 : index
    %2 = vector.load %arg8[%c0_2, %c0_3] : memref<1x128xf32, #tpu.memory_space<vmem>>, vector<1x128xf32>
    %3 = arith.mulf %1, %1 : vector<8x128xf32>
    %cst = arith.constant dense<0.000000e+00> : vector<8xf32>
    %4 = vector.multi_reduction <add>, %3, %cst [1] : vector<8x128xf32> to vector<8xf32>
    %5 = vector.shape_cast %4 : vector<8xf32> to vector<8x1xf32>
    %cst_4 = arith.constant 1.280000e+02 : f32
    %6 = vector.broadcast %cst_4 : f32 to vector<8x1xf32>
    %7 = arith.divf %5, %6 : vector<8x1xf32>
    %cst_5 = arith.constant 9.99999997E-7 : f32
    %8 = vector.broadcast %cst_5 : f32 to vector<8x1xf32>
    %9 = arith.addf %7, %8 : vector<8x1xf32>
    %10 = math.rsqrt %9 : vector<8x1xf32>
    %11 = vector.broadcast %10 : vector<8x1xf32> to vector<8x128xf32>
    %12 = arith.mulf %1, %11 : vector<8x128xf32>
    %cst_6 = arith.constant 1.000000e+00 : f32
    %13 = vector.broadcast %cst_6 : f32 to vector<1x128xf32>
    %14 = arith.addf %13, %2 : vector<1x128xf32>
    %15 = vector.broadcast %14 : vector<1x128xf32> to vector<8x128xf32>
    %16 = arith.mulf %12, %15 : vector<8x128xf32>
    %17 = arith.truncf %16 : vector<8x128xf32> to vector<8x128xbf16>
    %c0_7 = arith.constant 0 : index
    %c0_8 = arith.constant 0 : index
    %18 = vector.load %arg6[%c0_7, %c0_8] : memref<128x256xbf16, #tpu.memory_space<vmem>>, vector<128x256xbf16>
    %cst_9 = arith.constant dense<0.000000e+00> : vector<8x256xf32>
    %19 = tpu.matmul %17, %18, %cst_9 {dimension_numbers = #tpu.dot_dimension_numbers<[1], [0], [0], [1], [0, 0, 1, 1], [], []>} : vector<8x128xbf16>, vector<128x256xbf16>, vector<8x256xf32> -> vector<8x256xf32>
    %c0_10 = arith.constant 0 : index
    %c0_11 = arith.constant 0 : index
    %20 = vector.load %arg4[%c0_10, %c0_11] : memref<8x16xf32, #tpu.memory_space<vmem>>, vector<8x16xf32>
    %c0_12 = arith.constant 0 : index
    %c0_13 = arith.constant 0 : index
    %21 = vector.load %arg5[%c0_12, %c0_13] : memref<8x16xf32, #tpu.memory_space<vmem>>, vector<8x16xf32>
    %22 = vector.extract_strided_slice %19 {offsets = [0, 0], sizes = [8, 32], strides = [1, 1]} : vector<8x256xf32> to vector<8x32xf32>
    %23 = vector.extract_strided_slice %22 {offsets = [0, 0], sizes = [8, 16], strides = [1, 1]} : vector<8x32xf32> to vector<8x16xf32>
    %24 = vector.extract_strided_slice %22 {offsets = [0, 16], sizes = [8, 16], strides = [1, 1]} : vector<8x32xf32> to vector<8x16xf32>
    %25 = arith.mulf %23, %20 : vector<8x16xf32>
    %26 = arith.mulf %24, %21 : vector<8x16xf32>
    %27 = arith.subf %25, %26 : vector<8x16xf32>
    %28 = arith.mulf %23, %21 : vector<8x16xf32>
    %29 = arith.mulf %24, %20 : vector<8x16xf32>
    %30 = arith.addf %28, %29 : vector<8x16xf32>
    %31 = tpu.concatenate %27, %30 in 1 : vector<8x16xf32>, vector<8x16xf32> -> vector<8x32xf32>
    %32 = vector.extract_strided_slice %19 {offsets = [0, 32], sizes = [8, 32], strides = [1, 1]} : vector<8x256xf32> to vector<8x32xf32>
    %33 = vector.extract_strided_slice %32 {offsets = [0, 0], sizes = [8, 16], strides = [1, 1]} : vector<8x32xf32> to vector<8x16xf32>
    %34 = vector.extract_strided_slice %32 {offsets = [0, 16], sizes = [8, 16], strides = [1, 1]} : vector<8x32xf32> to vector<8x16xf32>
    %35 = arith.mulf %33, %20 : vector<8x16xf32>
    %36 = arith.mulf %34, %21 : vector<8x16xf32>
    %37 = arith.subf %35, %36 : vector<8x16xf32>
    %38 = arith.mulf %33, %21 : vector<8x16xf32>
    %39 = arith.mulf %34, %20 : vector<8x16xf32>
    %40 = arith.addf %38, %39 : vector<8x16xf32>
    %41 = tpu.concatenate %37, %40 in 1 : vector<8x16xf32>, vector<8x16xf32> -> vector<8x32xf32>
    %42 = vector.extract_strided_slice %19 {offsets = [0, 64], sizes = [8, 32], strides = [1, 1]} : vector<8x256xf32> to vector<8x32xf32>
    %43 = vector.extract_strided_slice %42 {offsets = [0, 0], sizes = [8, 16], strides = [1, 1]} : vector<8x32xf32> to vector<8x16xf32>
    %44 = vector.extract_strided_slice %42 {offsets = [0, 16], sizes = [8, 16], strides = [1, 1]} : vector<8x32xf32> to vector<8x16xf32>
    %45 = arith.mulf %43, %20 : vector<8x16xf32>
    %46 = arith.mulf %44, %21 : vector<8x16xf32>
    %47 = arith.subf %45, %46 : vector<8x16xf32>
    %48 = arith.mulf %43, %21 : vector<8x16xf32>
    %49 = arith.mulf %44, %20 : vector<8x16xf32>
    %50 = arith.addf %48, %49 : vector<8x16xf32>
    %51 = tpu.concatenate %47, %50 in 1 : vector<8x16xf32>, vector<8x16xf32> -> vector<8x32xf32>
    %52 = vector.extract_strided_slice %19 {offsets = [0, 96], sizes = [8, 32], strides = [1, 1]} : vector<8x256xf32> to vector<8x32xf32>
    %53 = vector.extract_strided_slice %52 {offsets = [0, 0], sizes = [8, 16], strides = [1, 1]} : vector<8x32xf32> to vector<8x16xf32>
    %54 = vector.extract_strided_slice %52 {offsets = [0, 16], sizes = [8, 16], strides = [1, 1]} : vector<8x32xf32> to vector<8x16xf32>
    %55 = arith.mulf %53, %20 : vector<8x16xf32>
    %56 = arith.mulf %54, %21 : vector<8x16xf32>
    %57 = arith.subf %55, %56 : vector<8x16xf32>
    %58 = arith.mulf %53, %21 : vector<8x16xf32>
    %59 = arith.mulf %54, %20 : vector<8x16xf32>
    %60 = arith.addf %58, %59 : vector<8x16xf32>
    %61 = tpu.concatenate %57, %60 in 1 : vector<8x16xf32>, vector<8x16xf32> -> vector<8x32xf32>
    %62 = vector.extract_strided_slice %19 {offsets = [0, 128], sizes = [8, 32], strides = [1, 1]} : vector<8x256xf32> to vector<8x32xf32>
    %63 = vector.extract_strided_slice %62 {offsets = [0, 0], sizes = [8, 16], strides = [1, 1]} : vector<8x32xf32> to vector<8x16xf32>
    %64 = vector.extract_strided_slice %62 {offsets = [0, 16], sizes = [8, 16], strides = [1, 1]} : vector<8x32xf32> to vector<8x16xf32>
    %65 = arith.mulf %63, %20 : vector<8x16xf32>
    %66 = arith.mulf %64, %21 : vector<8x16xf32>
    %67 = arith.subf %65, %66 : vector<8x16xf32>
    %68 = arith.mulf %63, %21 : vector<8x16xf32>
    %69 = arith.mulf %64, %20 : vector<8x16xf32>
    %70 = arith.addf %68, %69 : vector<8x16xf32>
    %71 = tpu.concatenate %67, %70 in 1 : vector<8x16xf32>, vector<8x16xf32> -> vector<8x32xf32>
    %72 = vector.extract_strided_slice %19 {offsets = [0, 160], sizes = [8, 32], strides = [1, 1]} : vector<8x256xf32> to vector<8x32xf32>
    %73 = vector.extract_strided_slice %72 {offsets = [0, 0], sizes = [8, 16], strides = [1, 1]} : vector<8x32xf32> to vector<8x16xf32>
    %74 = vector.extract_strided_slice %72 {offsets = [0, 16], sizes = [8, 16], strides = [1, 1]} : vector<8x32xf32> to vector<8x16xf32>
    %75 = arith.mulf %73, %20 : vector<8x16xf32>
    %76 = arith.mulf %74, %21 : vector<8x16xf32>
    %77 = arith.subf %75, %76 : vector<8x16xf32>
    %78 = arith.mulf %73, %21 : vector<8x16xf32>
    %79 = arith.mulf %74, %20 : vector<8x16xf32>
    %80 = arith.addf %78, %79 : vector<8x16xf32>
    %81 = tpu.concatenate %77, %80 in 1 : vector<8x16xf32>, vector<8x16xf32> -> vector<8x32xf32>
    %82 = vector.extract_strided_slice %19 {offsets = [0, 192], sizes = [8, 32], strides = [1, 1]} : vector<8x256xf32> to vector<8x32xf32>
    %83 = vector.extract_strided_slice %19 {offsets = [0, 224], sizes = [8, 32], strides = [1, 1]} : vector<8x256xf32> to vector<8x32xf32>
    %c0_14 = arith.constant 0 : index
    %c0_15 = arith.constant 0 : index
    %84 = vector.load %arg1[%c0_14, %c0_15] : memref<8x1xi32, #tpu.memory_space<vmem>>, vector<8x1xi32>
    %c0_16 = arith.constant 0 : index
    %c0_17 = arith.constant 0 : index
    %85 = vector.load %arg2[%c0_16, %c0_17] : memref<1x8xi32, #tpu.memory_space<vmem>>, vector<1x8xi32>
    %86 = tpu.iota {dimensions = array<i32: 0>} : vector<16x1xi32>
    %87 = vector.broadcast %86 : vector<16x1xi32> to vector<16x8xi32>
    %88 = vector.broadcast %85 : vector<1x8xi32> to vector<16x8xi32>
    %89 = arith.cmpi eq, %87, %88 : vector<16x8xi32>
    %90 = arith.extui %89 : vector<16x8xi1> to vector<16x8xi32>
    %91 = arith.sitofp %90 : vector<16x8xi32> to vector<16x8xf32>
    %cst_18 = arith.constant dense<0.000000e+00> : vector<16xf32>
    %92 = vector.multi_reduction <add>, %91, %cst_18 [1] : vector<16x8xf32> to vector<16xf32>
    %93 = vector.shape_cast %92 : vector<16xf32> to vector<16x1xf32>
    %94 = tpu.iota {dimensions = array<i32: 1>} : vector<8x16xi32>
    %95 = vector.broadcast %84 : vector<8x1xi32> to vector<8x16xi32>
    %96 = arith.cmpi sle, %94, %95 : vector<8x16xi32>
    %c4_i32 = arith.constant 4 : i32
    %97 = vector.broadcast %c4_i32 : i32 to vector<8x1xi32>
    %98 = arith.subi %84, %97 : vector<8x1xi32>
    %99 = vector.broadcast %98 : vector<8x1xi32> to vector<8x16xi32>
    %100 = arith.cmpi sgt, %94, %99 : vector<8x16xi32>
    %101 = arith.andi %96, %100 : vector<8x16xi1>
    %cst_19 = arith.constant 0.000000e+00 : f32
    %cst_20 = arith.constant -2.38197633E+38 : f32
    %102 = vector.broadcast %cst_19 : f32 to vector<8x16xf32>
    %103 = vector.broadcast %cst_20 : f32 to vector<8x16xf32>
    %104 = arith.select %101, %102, %103 : vector<8x16xi1>, vector<8x16xf32>
    %105 = tpu.concatenate %104, %104 in 0 : vector<8x16xf32>, vector<8x16xf32> -> vector<16x16xf32>
    %cst_21 = arith.constant dense<0.000000e+00> : vector<16x32xf32>
    %106 = tpu.matmul %91, %71, %cst_21 {dimension_numbers = #tpu.dot_dimension_numbers<[1], [0], [0], [1], [0, 0, 1, 1], [], []>} : vector<16x8xf32>, vector<8x32xf32>, vector<16x32xf32> -> vector<16x32xf32>
    %cst_22 = arith.constant dense<0.000000e+00> : vector<16x32xf32>
    %107 = tpu.matmul %91, %82, %cst_22 {dimension_numbers = #tpu.dot_dimension_numbers<[1], [0], [0], [1], [0, 0, 1, 1], [], []>} : vector<16x8xf32>, vector<8x32xf32>, vector<16x32xf32> -> vector<16x32xf32>
    %cst_23 = arith.constant 5.000000e-01 : f32
    %108 = vector.broadcast %cst_23 : f32 to vector<16x1xf32>
    %109 = arith.cmpf ogt, %93, %108 : vector<16x1xf32>
    %c0_24 = arith.constant 0 : index
    %c0_25 = arith.constant 0 : index
    %c0_26 = arith.constant 0 : index
    %c0_27 = arith.constant 0 : index
    %110 = vector.load %arg10[%c0_24, %c0_25, %c0_26, %c0_27] : memref<1x2x16x32xf32, #tpu.memory_space<vmem>>, vector<1x1x16x32xf32>
    %111 = vector.shape_cast %110 : vector<1x1x16x32xf32> to vector<16x32xf32>
    %112 = vector.shape_cast %109 : vector<16x1xi1> to vector<16x1xi1>
    %113 = vector.broadcast %112 : vector<16x1xi1> to vector<16x32xi1>
    %114 = arith.select %113, %106, %111 : vector<16x32xi1>, vector<16x32xf32>
    %cst_28 = arith.constant 5.000000e-01 : f32
    %115 = vector.broadcast %cst_28 : f32 to vector<16x1xf32>
    %116 = arith.cmpf ogt, %93, %115 : vector<16x1xf32>
    %c0_29 = arith.constant 0 : index
    %c0_30 = arith.constant 0 : index
    %c0_31 = arith.constant 0 : index
    %c0_32 = arith.constant 0 : index
    %117 = vector.load %arg11[%c0_29, %c0_30, %c0_31, %c0_32] : memref<1x2x16x32xf32, #tpu.memory_space<vmem>>, vector<1x1x16x32xf32>
    %118 = vector.shape_cast %117 : vector<1x1x16x32xf32> to vector<16x32xf32>
    %119 = vector.shape_cast %116 : vector<16x1xi1> to vector<16x1xi1>
    %120 = vector.broadcast %119 : vector<16x1xi1> to vector<16x32xi1>
    %121 = arith.select %120, %107, %118 : vector<16x32xi1>, vector<16x32xf32>
    %c0_33 = arith.constant 0 : index
    %c0_34 = arith.constant 0 : index
    %c0_35 = arith.constant 0 : index
    %c0_36 = arith.constant 0 : index
    %122 = vector.load %arg13[%c0_33, %c0_34, %c0_35, %c0_36] : memref<1x2x16x32xf32, #tpu.memory_space<vmem>>, vector<1x1x16x32xf32>
    %123 = vector.shape_cast %122 : vector<1x1x16x32xf32> to vector<16x32xf32>
    %124 = vector.shape_cast %114 : vector<16x32xf32> to vector<1x1x16x32xf32>
    tpu.vector_store %arg13[%c0_33, %c0_34, %c0_35, %c0_36], %124 {strides = array<i32>} : memref<1x2x16x32xf32, #tpu.memory_space<vmem>>, vector<1x1x16x32xf32>,
    %c0_37 = arith.constant 0 : index
    %c0_38 = arith.constant 0 : index
    %c0_39 = arith.constant 0 : index
    %c0_40 = arith.constant 0 : index
    %125 = vector.load %arg14[%c0_37, %c0_38, %c0_39, %c0_40] : memref<1x2x16x32xf32, #tpu.memory_space<vmem>>, vector<1x1x16x32xf32>
    %126 = vector.shape_cast %125 : vector<1x1x16x32xf32> to vector<16x32xf32>
    %127 = vector.shape_cast %121 : vector<16x32xf32> to vector<1x1x16x32xf32>
    tpu.vector_store %arg14[%c0_37, %c0_38, %c0_39, %c0_40], %127 {strides = array<i32>} : memref<1x2x16x32xf32, #tpu.memory_space<vmem>>, vector<1x1x16x32xf32>,
    %128 = tpu.concatenate %31, %41 in 0 : vector<8x32xf32>, vector<8x32xf32> -> vector<16x32xf32>
    %129 = arith.truncf %128 : vector<16x32xf32> to vector<16x32xbf16>
    %130 = arith.truncf %114 : vector<16x32xf32> to vector<16x32xbf16>
    %cst_41 = arith.constant dense<0.000000e+00> : vector<16x16xf32>
    %131 = tpu.matmul %129, %130, %cst_41 {dimension_numbers = #tpu.dot_dimension_numbers<[1], [1], [0], [0], [0, 0, 1, 0], [], []>} : vector<16x32xbf16>, vector<16x32xbf16>, vector<16x16xf32> -> vector<16x16xf32>
    %cst_42 = arith.constant 0.176776692 : f32
    %132 = vector.broadcast %cst_42 : f32 to vector<16x16xf32>
    %133 = arith.mulf %131, %132 : vector<16x16xf32>
    %cst_43 = arith.constant 2.000000e-02 : f32
    %134 = vector.broadcast %cst_43 : f32 to vector<16x16xf32>
    %135 = arith.mulf %133, %134 : vector<16x16xf32>
    %136 = math.tanh %135 : vector<16x16xf32>
    %cst_44 = arith.constant 5.000000e+01 : f32
    %137 = vector.broadcast %cst_44 : f32 to vector<16x16xf32>
    %138 = arith.mulf %136, %137 : vector<16x16xf32>
    %139 = arith.addf %138, %105 : vector<16x16xf32>
    %cst_45 = arith.constant dense<0xFF800000> : vector<16xf32>
    %140 = vector.multi_reduction <maximumf>, %139, %cst_45 [1] : vector<16x16xf32> to vector<16xf32>
    %141 = vector.shape_cast %140 : vector<16xf32> to vector<16x1xf32>
    %142 = vector.broadcast %141 : vector<16x1xf32> to vector<16x16xf32>
    %143 = arith.subf %139, %142 : vector<16x16xf32>
    %144 = math.exp %143 : vector<16x16xf32>
    %cst_46 = arith.constant dense<0.000000e+00> : vector<16xf32>
    %145 = vector.multi_reduction <add>, %144, %cst_46 [1] : vector<16x16xf32> to vector<16xf32>
    %146 = vector.shape_cast %145 : vector<16xf32> to vector<16x1xf32>
    %147 = tpu.reciprocal %146 {approx = true} : vector<16x1xf32> -> vector<16x1xf32>
    %148 = vector.broadcast %147 : vector<16x1xf32> to vector<16x16xf32>
    %149 = arith.mulf %144, %148 : vector<16x16xf32>
    %150 = arith.truncf %149 : vector<16x16xf32> to vector<16x16xbf16>
    %151 = arith.truncf %121 : vector<16x32xf32> to vector<16x32xbf16>
    %cst_47 = arith.constant dense<0.000000e+00> : vector<16x32xf32>
    %152 = tpu.matmul %150, %151, %cst_47 {dimension_numbers = #tpu.dot_dimension_numbers<[1], [0], [0], [1], [0, 0, 1, 1], [], []>} : vector<16x16xbf16>, vector<16x32xbf16>, vector<16x32xf32> -> vector<16x32xf32>
    %153 = vector.extract_strided_slice %152 {offsets = [0, 0], sizes = [8, 32], strides = [1, 1]} : vector<16x32xf32> to vector<8x32xf32>
    %154 = vector.extract_strided_slice %152 {offsets = [8, 0], sizes = [8, 32], strides = [1, 1]} : vector<16x32xf32> to vector<8x32xf32>
    %cst_48 = arith.constant dense<0.000000e+00> : vector<16x32xf32>
    %155 = tpu.matmul %91, %81, %cst_48 {dimension_numbers = #tpu.dot_dimension_numbers<[1], [0], [0], [1], [0, 0, 1, 1], [], []>} : vector<16x8xf32>, vector<8x32xf32>, vector<16x32xf32> -> vector<16x32xf32>
    %cst_49 = arith.constant dense<0.000000e+00> : vector<16x32xf32>
    %156 = tpu.matmul %91, %83, %cst_49 {dimension_numbers = #tpu.dot_dimension_numbers<[1], [0], [0], [1], [0, 0, 1, 1], [], []>} : vector<16x8xf32>, vector<8x32xf32>, vector<16x32xf32> -> vector<16x32xf32>
    %cst_50 = arith.constant 5.000000e-01 : f32
    %157 = vector.broadcast %cst_50 : f32 to vector<16x1xf32>
    %158 = arith.cmpf ogt, %93, %157 : vector<16x1xf32>
    %c0_51 = arith.constant 0 : index
    %c1 = arith.constant 1 : index
    %c0_52 = arith.constant 0 : index
    %c0_53 = arith.constant 0 : index
    %159 = vector.load %arg10[%c0_51, %c1, %c0_52, %c0_53] : memref<1x2x16x32xf32, #tpu.memory_space<vmem>>, vector<1x1x16x32xf32>
    %160 = vector.shape_cast %159 : vector<1x1x16x32xf32> to vector<16x32xf32>
    %161 = vector.shape_cast %158 : vector<16x1xi1> to vector<16x1xi1>
    %162 = vector.broadcast %161 : vector<16x1xi1> to vector<16x32xi1>
    %163 = arith.select %162, %155, %160 : vector<16x32xi1>, vector<16x32xf32>
    %cst_54 = arith.constant 5.000000e-01 : f32
    %164 = vector.broadcast %cst_54 : f32 to vector<16x1xf32>
    %165 = arith.cmpf ogt, %93, %164 : vector<16x1xf32>
    %c0_55 = arith.constant 0 : index
    %c1_56 = arith.constant 1 : index
    %c0_57 = arith.constant 0 : index
    %c0_58 = arith.constant 0 : index
    %166 = vector.load %arg11[%c0_55, %c1_56, %c0_57, %c0_58] : memref<1x2x16x32xf32, #tpu.memory_space<vmem>>, vector<1x1x16x32xf32>
    %167 = vector.shape_cast %166 : vector<1x1x16x32xf32> to vector<16x32xf32>
    %168 = vector.shape_cast %165 : vector<16x1xi1> to vector<16x1xi1>
    %169 = vector.broadcast %168 : vector<16x1xi1> to vector<16x32xi1>
    %170 = arith.select %169, %156, %167 : vector<16x32xi1>, vector<16x32xf32>
    %c0_59 = arith.constant 0 : index
    %c1_60 = arith.constant 1 : index
    %c0_61 = arith.constant 0 : index
    %c0_62 = arith.constant 0 : index
    %171 = vector.load %arg13[%c0_59, %c1_60, %c0_61, %c0_62] : memref<1x2x16x32xf32, #tpu.memory_space<vmem>>, vector<1x1x16x32xf32>
    %172 = vector.shape_cast %171 : vector<1x1x16x32xf32> to vector<16x32xf32>
    %173 = vector.shape_cast %163 : vector<16x32xf32> to vector<1x1x16x32xf32>
    tpu.vector_store %arg13[%c0_59, %c1_60, %c0_61, %c0_62], %173 {strides = array<i32>} : memref<1x2x16x32xf32, #tpu.memory_space<vmem>>, vector<1x1x16x32xf32>,
    %c0_63 = arith.constant 0 : index
    %c1_64 = arith.constant 1 : index
    %c0_65 = arith.constant 0 : index
    %c0_66 = arith.constant 0 : index
    %174 = vector.load %arg14[%c0_63, %c1_64, %c0_65, %c0_66] : memref<1x2x16x32xf32, #tpu.memory_space<vmem>>, vector<1x1x16x32xf32>
    %175 = vector.shape_cast %174 : vector<1x1x16x32xf32> to vector<16x32xf32>
    %176 = vector.shape_cast %170 : vector<16x32xf32> to vector<1x1x16x32xf32>
    tpu.vector_store %arg14[%c0_63, %c1_64, %c0_65, %c0_66], %176 {strides = array<i32>} : memref<1x2x16x32xf32, #tpu.memory_space<vmem>>, vector<1x1x16x32xf32>,
    %177 = tpu.concatenate %51, %61 in 0 : vector<8x32xf32>, vector<8x32xf32> -> vector<16x32xf32>
    %178 = arith.truncf %177 : vector<16x32xf32> to vector<16x32xbf16>
    %179 = arith.truncf %163 : vector<16x32xf32> to vector<16x32xbf16>
    %cst_67 = arith.constant dense<0.000000e+00> : vector<16x16xf32>
    %180 = tpu.matmul %178, %179, %cst_67 {dimension_numbers = #tpu.dot_dimension_numbers<[1], [1], [0], [0], [0, 0, 1, 0], [], []>} : vector<16x32xbf16>, vector<16x32xbf16>, vector<16x16xf32> -> vector<16x16xf32>
    %cst_68 = arith.constant 0.176776692 : f32
    %181 = vector.broadcast %cst_68 : f32 to vector<16x16xf32>
    %182 = arith.mulf %180, %181 : vector<16x16xf32>
    %cst_69 = arith.constant 2.000000e-02 : f32
    %183 = vector.broadcast %cst_69 : f32 to vector<16x16xf32>
    %184 = arith.mulf %182, %183 : vector<16x16xf32>
    %185 = math.tanh %184 : vector<16x16xf32>
    %cst_70 = arith.constant 5.000000e+01 : f32
    %186 = vector.broadcast %cst_70 : f32 to vector<16x16xf32>
    %187 = arith.mulf %185, %186 : vector<16x16xf32>
    %188 = arith.addf %187, %105 : vector<16x16xf32>
    %cst_71 = arith.constant dense<0xFF800000> : vector<16xf32>
    %189 = vector.multi_reduction <maximumf>, %188, %cst_71 [1] : vector<16x16xf32> to vector<16xf32>
    %190 = vector.shape_cast %189 : vector<16xf32> to vector<16x1xf32>
    %191 = vector.broadcast %190 : vector<16x1xf32> to vector<16x16xf32>
    %192 = arith.subf %188, %191 : vector<16x16xf32>
    %193 = math.exp %192 : vector<16x16xf32>
    %cst_72 = arith.constant dense<0.000000e+00> : vector<16xf32>
    %194 = vector.multi_reduction <add>, %193, %cst_72 [1] : vector<16x16xf32> to vector<16xf32>
    %195 = vector.shape_cast %194 : vector<16xf32> to vector<16x1xf32>
    %196 = tpu.reciprocal %195 {approx = true} : vector<16x1xf32> -> vector<16x1xf32>
    %197 = vector.broadcast %196 : vector<16x1xf32> to vector<16x16xf32>
    %198 = arith.mulf %193, %197 : vector<16x16xf32>
    %199 = arith.truncf %198 : vector<16x16xf32> to vector<16x16xbf16>
    %200 = arith.truncf %170 : vector<16x32xf32> to vector<16x32xbf16>
    %cst_73 = arith.constant dense<0.000000e+00> : vector<16x32xf32>
    %201 = tpu.matmul %199, %200, %cst_73 {dimension_numbers = #tpu.dot_dimension_numbers<[1], [0], [0], [1], [0, 0, 1, 1], [], []>} : vector<16x16xbf16>, vector<16x32xbf16>, vector<16x32xf32> -> vector<16x32xf32>
    %202 = vector.extract_strided_slice %201 {offsets = [0, 0], sizes = [8, 32], strides = [1, 1]} : vector<16x32xf32> to vector<8x32xf32>
    %203 = vector.extract_strided_slice %201 {offsets = [8, 0], sizes = [8, 32], strides = [1, 1]} : vector<16x32xf32> to vector<8x32xf32>
    %204 = tpu.concatenate %153, %154, %202, %203 in 1 : vector<8x32xf32>, vector<8x32xf32>, vector<8x32xf32>, vector<8x32xf32> -> vector<8x128xf32>
    %205 = arith.truncf %204 : vector<8x128xf32> to vector<8x128xbf16>
    %c0_74 = arith.constant 0 : index
    %c0_75 = arith.constant 0 : index
    %206 = vector.load %arg7[%c0_74, %c0_75] : memref<128x128xbf16, #tpu.memory_space<vmem>>, vector<128x128xbf16>
    %cst_76 = arith.constant dense<0.000000e+00> : vector<8x128xf32>
    %207 = tpu.matmul %205, %206, %cst_76 {dimension_numbers = #tpu.dot_dimension_numbers<[1], [0], [0], [1], [0, 0, 1, 1], [], []>} : vector<8x128xbf16>, vector<128x128xbf16>, vector<8x128xf32> -> vector<8x128xf32>
    %c0_77 = arith.constant 0 : index
    %c0_78 = arith.constant 0 : index
    %208 = vector.load %arg9[%c0_77, %c0_78] : memref<1x128xf32, #tpu.memory_space<vmem>>, vector<1x128xf32>
    %209 = arith.mulf %207, %207 : vector<8x128xf32>
    %cst_79 = arith.constant dense<0.000000e+00> : vector<8xf32>
    %210 = vector.multi_reduction <add>, %209, %cst_79 [1] : vector<8x128xf32> to vector<8xf32>
    %211 = vector.shape_cast %210 : vector<8xf32> to vector<8x1xf32>
    %cst_80 = arith.constant 1.280000e+02 : f32
    %212 = vector.broadcast %cst_80 : f32 to vector<8x1xf32>
    %213 = arith.divf %211, %212 : vector<8x1xf32>
    %cst_81 = arith.constant 9.99999997E-7 : f32
    %214 = vector.broadcast %cst_81 : f32 to vector<8x1xf32>
    %215 = arith.addf %213, %214 : vector<8x1xf32>
    %216 = math.rsqrt %215 : vector<8x1xf32>
    %217 = vector.broadcast %216 : vector<8x1xf32> to vector<8x128xf32>
    %218 = arith.mulf %207, %217 : vector<8x128xf32>
    %cst_82 = arith.constant 1.000000e+00 : f32
    %219 = vector.broadcast %cst_82 : f32 to vector<1x128xf32>
    %220 = arith.addf %219, %208 : vector<1x128xf32>
    %221 = vector.broadcast %220 : vector<1x128xf32> to vector<8x128xf32>
    %222 = arith.mulf %218, %221 : vector<8x128xf32>
    %223 = arith.addf %1, %222 : vector<8x128xf32>
    %c0_83 = arith.constant 0 : index
    %c0_84 = arith.constant 0 : index
    %c0_85 = arith.constant 0 : index
    %224 = vector.load %arg12[%c0_83, %c0_84, %c0_85] : memref<1x8x128xf32, #tpu.memory_space<vmem>>, vector<1x8x128xf32>
    %225 = vector.shape_cast %224 : vector<1x8x128xf32> to vector<8x128xf32>
    %226 = vector.shape_cast %223 : vector<8x128xf32> to vector<1x8x128xf32>
    tpu.vector_store %arg12[%c0_83, %c0_84, %c0_85], %226 {strides = array<i32>} : memref<1x8x128xf32, #tpu.memory_space<vmem>>, vector<1x8x128xf32>,
    return
  }
  func.func @transform_0(%arg0: i32) -> (i32, i32) {
    %c0_i32 = arith.constant 0 : i32
    %c0_i32_0 = arith.constant 0 : i32
    %c0_i32_1 = arith.constant 0 : i32
    return %c0_i32, %c0_i32_0 : i32, i32
  }
  func.func @transform_1(%arg0: i32) -> (i32, i32) {
    %c0_i32 = arith.constant 0 : i32
    %c0_i32_0 = arith.constant 0 : i32
    %c0_i32_1 = arith.constant 0 : i32
    return %c0_i32, %c0_i32_0 : i32, i32
  }
  func.func @transform_2(%arg0: i32) -> (i32, i32, i32) {
    %c0_i32 = arith.constant 0 : i32
    %c0_i32_0 = arith.constant 0 : i32
    %c0_i32_1 = arith.constant 0 : i32
    return %arg0, %c0_i32, %c0_i32_0 : i32, i32, i32
  }
  func.func @transform_3(%arg0: i32) -> (i32, i32) {
    %c0_i32 = arith.constant 0 : i32
    %c0_i32_0 = arith.constant 0 : i32
    %c0_i32_1 = arith.constant 0 : i32
    return %c0_i32, %c0_i32_0 : i32, i32
  }
  func.func @transform_4(%arg0: i32) -> (i32, i32) {
    %c0_i32 = arith.constant 0 : i32
    %c0_i32_0 = arith.constant 0 : i32
    %c0_i32_1 = arith.constant 0 : i32
    return %c0_i32, %c0_i32_0 : i32, i32
  }
  func.func @transform_5(%arg0: i32) -> (i32, i32) {
    %c0_i32 = arith.constant 0 : i32
    %c0_i32_0 = arith.constant 0 : i32
    %c0_i32_1 = arith.constant 0 : i32
    return %c0_i32, %c0_i32_0 : i32, i32
  }
  func.func @transform_6(%arg0: i32) -> (i32, i32) {
    %c0_i32 = arith.constant 0 : i32
    %c0_i32_0 = arith.constant 0 : i32
    %c0_i32_1 = arith.constant 0 : i32
    return %c0_i32, %c0_i32_0 : i32, i32
  }
  func.func @transform_7(%arg0: i32) -> (i32, i32) {
    %c0_i32 = arith.constant 0 : i32
    %c0_i32_0 = arith.constant 0 : i32
    %c0_i32_1 = arith.constant 0 : i32
    return %c0_i32, %c0_i32_0 : i32, i32
  }
  func.func @transform_8(%arg0: i32) -> (i32, i32) {
    %c0_i32 = arith.constant 0 : i32
    %c0_i32_0 = arith.constant 0 : i32
    %c0_i32_1 = arith.constant 0 : i32
    return %c0_i32, %c0_i32_0 : i32, i32
  }
  func.func @transform_9(%arg0: i32) -> (i32, i32, i32, i32) {
    %c0_i32 = arith.constant 0 : i32
    %c0_i32_0 = arith.constant 0 : i32
    %c0_i32_1 = arith.constant 0 : i32
    %c0_i32_2 = arith.constant 0 : i32
    return %arg0, %c0_i32, %c0_i32_0, %c0_i32_1 : i32, i32, i32, i32
  }
  func.func @transform_10(%arg0: i32) -> (i32, i32, i32, i32) {
    %c0_i32 = arith.constant 0 : i32
    %c0_i32_0 = arith.constant 0 : i32
    %c0_i32_1 = arith.constant 0 : i32
    %c0_i32_2 = arith.constant 0 : i32
    return %arg0, %c0_i32, %c0_i32_0, %c0_i32_1 : i32, i32, i32, i32
  }
  func.func @transform_11(%arg0: i32) -> (i32, i32, i32) {
    %c0_i32 = arith.constant 0 : i32
    %c0_i32_0 = arith.constant 0 : i32
    %c0_i32_1 = arith.constant 0 : i32
    return %arg0, %c0_i32, %c0_i32_0 : i32, i32, i32
  }
  func.func @transform_12(%arg0: i32) -> (i32, i32, i32, i32) {
    %c0_i32 = arith.constant 0 : i32
    %c0_i32_0 = arith.constant 0 : i32
    %c0_i32_1 = arith.constant 0 : i32
    %c0_i32_2 = arith.constant 0 : i32
    return %arg0, %c0_i32, %c0_i32_0, %c0_i32_1 : i32, i32, i32, i32
  }
  func.func @transform_13(%arg0: i32) -> (i32, i32, i32, i32) {
    %c0_i32 = arith.constant 0 : i32
    %c0_i32_0 = arith.constant 0 : i32
    %c0_i32_1 = arith.constant 0 : i32
    %c0_i32_2 = arith.constant 0 : i32
    return %arg0, %c0_i32, %c0_i32_0, %c0_i32_1 : i32, i32, i32, i32
  }
}

module attributes {stable_mosaic.version = 11 : i64} {
  func.func @_final_norm_kernel(%arg0: i32, %arg1: memref<1x8x128xf32, #tpu.memory_space<vmem>>, %arg2: memref<1x128xf32, #tpu.memory_space<vmem>>, %arg3: memref<1x8x128xf32, #tpu.memory_space<vmem>>) attributes {dimension_semantics = [#tpu.dimension_semantics<parallel>], iteration_bounds = array<i64: 2>, scalar_prefetch = 0 : i64, scratch_operands = 0 : i64, tpu.core_type = #tpu.core_type<tc>, window_params = [{transform_indices = @transform_0, window_bounds = array<i64: 1, 8, 128>}, {pipeline_mode = #tpu.pipeline_mode<synchronous>, transform_indices = @transform_1, window_bounds = array<i64: 1, 128>}, {transform_indices = @transform_2, window_bounds = array<i64: 1, 8, 128>}]} {
    %c0 = arith.constant 0 : index
    %c0_0 = arith.constant 0 : index
    %c0_1 = arith.constant 0 : index
    %0 = vector.load %arg1[%c0, %c0_0, %c0_1] : memref<1x8x128xf32, #tpu.memory_space<vmem>>, vector<1x8x128xf32>
    %1 = vector.shape_cast %0 : vector<1x8x128xf32> to vector<8x128xf32>
    %c0_2 = arith.constant 0 : index
    %c0_3 = arith.constant 0 : index
    %2 = vector.load %arg2[%c0_2, %c0_3] : memref<1x128xf32, #tpu.memory_space<vmem>>, vector<1x128xf32>
    %3 = arith.mulf %1, %1 : vector<8x128xf32>
    %cst = arith.constant dense<0.000000e+00> : vector<8xf32>
    %4 = vector.multi_reduction <add>, %3, %cst [1] : vector<8x128xf32> to vector<8xf32>
    %5 = vector.shape_cast %4 : vector<8xf32> to vector<8x1xf32>
    %cst_4 = arith.constant 1.280000e+02 : f32
    %6 = vector.broadcast %cst_4 : f32 to vector<8x1xf32>
    %7 = arith.divf %5, %6 : vector<8x1xf32>
    %cst_5 = arith.constant 9.99999997E-7 : f32
    %8 = vector.broadcast %cst_5 : f32 to vector<8x1xf32>
    %9 = arith.addf %7, %8 : vector<8x1xf32>
    %10 = math.rsqrt %9 : vector<8x1xf32>
    %11 = vector.broadcast %10 : vector<8x1xf32> to vector<8x128xf32>
    %12 = arith.mulf %1, %11 : vector<8x128xf32>
    %cst_6 = arith.constant 1.000000e+00 : f32
    %13 = vector.broadcast %cst_6 : f32 to vector<1x128xf32>
    %14 = arith.addf %13, %2 : vector<1x128xf32>
    %15 = vector.broadcast %14 : vector<1x128xf32> to vector<8x128xf32>
    %16 = arith.mulf %12, %15 : vector<8x128xf32>
    %c0_7 = arith.constant 0 : index
    %c0_8 = arith.constant 0 : index
    %c0_9 = arith.constant 0 : index
    %17 = vector.load %arg3[%c0_7, %c0_8, %c0_9] : memref<1x8x128xf32, #tpu.memory_space<vmem>>, vector<1x8x128xf32>
    %18 = vector.shape_cast %17 : vector<1x8x128xf32> to vector<8x128xf32>
    %19 = vector.shape_cast %16 : vector<8x128xf32> to vector<1x8x128xf32>
    tpu.vector_store %arg3[%c0_7, %c0_8, %c0_9], %19 {strides = array<i32>} : memref<1x8x128xf32, #tpu.memory_space<vmem>>, vector<1x8x128xf32>,
    return
  }
  func.func @transform_0(%arg0: i32) -> (i32, i32, i32) {
    %c0_i32 = arith.constant 0 : i32
    %c0_i32_0 = arith.constant 0 : i32
    %c0_i32_1 = arith.constant 0 : i32
    return %arg0, %c0_i32, %c0_i32_0 : i32, i32, i32
  }
  func.func @transform_1(%arg0: i32) -> (i32, i32) {
    %c0_i32 = arith.constant 0 : i32
    %c0_i32_0 = arith.constant 0 : i32
    %c0_i32_1 = arith.constant 0 : i32
    return %c0_i32, %c0_i32_0 : i32, i32
  }
  func.func @transform_2(%arg0: i32) -> (i32, i32, i32) {
    %c0_i32 = arith.constant 0 : i32
    %c0_i32_0 = arith.constant 0 : i32
    %c0_i32_1 = arith.constant 0 : i32
    return %arg0, %c0_i32, %c0_i32_0 : i32, i32, i32
  }
}

</mosaic_0001>

<llo_original>
// kernel: gemma2_forward.17
$region0: #{gemma2_forward.17}
  #allocation0 [shape = 'u32[]', space=smem, size = 0x4, offset = 0x4, fixed_abs, tag = 'smem constant byte address 0x4 - core index']
  #allocation1 [shape = 'u32[144,128]{1,0:T(1,128)}', space=vmem, size = 0x12000, scoped, tag = 'internal scratch']
  %s0 = inlined_call_operand.vmem [shape: f32[2,8,128], index: 0, kind: input, shape index: {}]
  %s1 = inlined_call_operand.vmem [shape: f32[1,128], index: 1, kind: input, shape index: {}]
  %s2 = inlined_call_operand.hbm [shape: f32[2,8,128], index: 2, kind: output, shape index: {}]
  %s3 = sld [smem:[#allocation0]]
  $region41: #{gemma2_forward.17} parent=0
    _
  %s5 = ssub.s32 1, %s3
  %s6 = scalar_select 0, %s5, %s3
  $region1: #{gemma2_forward.17} parent=0
    #allocation2 [shape = 'u8[8192]{0}', space=vmem, size = 0x2000, scoped, tag = 'output window, operand 0']
    #allocation3 [shape = 's32[2]{0}', space=sflag, size = 0x8, scoped, tag = 'scoped memory for gemma2_forward.17']
    %7 = vsyncpa [#allocation3], 0
    %s8 = scalar_lea.sflag [#allocation3], 1
    %9 = vsyncpa %s8, 0
    loop: start=0, step=1, limit=4
    $region2: #{gemma2_forward.17} parent=1 // loop_pre_header
      _
    $region3: #{gemma2_forward.17} parent=1 // loop_header
      %s11 = sphi 0, %s15
      %p12 = scmp.ge.s32.totalorder %s11, 4
      %s21 = sphi 0, %s23
      %s24 = sphi 0, %s21
      %s25 = sphi 0, %s24
      %s41 = sphi 0, %s25
      %s45 = sphi 0, %s45
      %s47 = sphi 0, %s45
      %s48 = sphi 0, %s47
      %s62 = sphi 0, %s48
      %s68 = sphi 0, %s70
      %s71 = sphi 0, %s68
      %s72 = sphi 0, %s71
      %s88 = sphi 0, %s72
    $region4: #{gemma2_forward.17} parent=1 // loop_header_branch
      %14 = sbr.rel (%p12) target = $region8
    $region5: #{gemma2_forward.17} parent=1 // loop_body
      %s16 = ssub.s32 %s11, 1
      %s17 = ssub.s32 %s11, 2
      %s18 = sadd.s32 %s11, 1
      %s19 = ssub.s32 %s11, %s18
      %p20 = scmp.eq.s32.totalorder %s19, 0
      %s22 = sadd.s32 %s21, 1
      %s23 = scalar_select %p20, %s21, %s22
      %p26 = pneg %p20
      %p27 = scmp.eq.s32.totalorder %s11, 1
      %p28 = por %p26, %p27
      %p29 = scmp.ne.s32.totalorder %s21, %s24
      %p30 = scmp.eq.s32.totalorder %s11, 0
      %p31 = por %p29, %p30
      %p32 = scmp.ne.s32.totalorder %s21, %s24
      %p33 = scmp.eq.s32.totalorder %s16, 1
      %p34 = por %p32, %p33
      %p35 = scmp.ne.s32.totalorder %s24, %s25
      %p36 = scmp.eq.s32.totalorder %s16, 0
      %p37 = por %p35, %p36
      %p38 = scmp.ne.s32.totalorder %s24, %s25
      %p39 = scmp.eq.s32.totalorder %s17, 1
      %p40 = por %p38, %p39
      %p42 = scmp.ne.s32.totalorder %s25, %s41
      %p43 = scmp.eq.s32.totalorder %s17, 0
      %p44 = por %p42, %p43
      %s46 = sadd.s32 %s45, 1
      %p49 = scmp.eq.s32.totalorder %s11, 1
      %p50 = scmp.ne.s32.totalorder %s45, %s47
      %p51 = scmp.eq.s32.totalorder %s11, 0
      %p52 = por %p50, %p51
      %p53 = scmp.ne.s32.totalorder %s45, %s47
      %p54 = scmp.eq.s32.totalorder %s16, 1
      %p55 = por %p53, %p54
      %p56 = scmp.ne.s32.totalorder %s47, %s48
      %p57 = scmp.eq.s32.totalorder %s16, 0
      %p58 = por %p56, %p57
      %p59 = scmp.ne.s32.totalorder %s47, %s48
      %p60 = scmp.eq.s32.totalorder %s17, 1
      %p61 = por %p59, %p60
      %p63 = scmp.ne.s32.totalorder %s48, %s62
      %p64 = scmp.eq.s32.totalorder %s17, 0
      %p65 = por %p63, %p64
      %s66 = ssub.s32 %s11, %s18
      %p67 = scmp.eq.s32.totalorder %s66, 0
      %s69 = sadd.s32 %s68, 1
      %s70 = scalar_select %p67, %s68, %s69
      %p73 = pneg %p67
      %p74 = scmp.eq.s32.totalorder %s11, 1
      %p75 = por %p73, %p74
      %p76 = scmp.ne.s32.totalorder %s68, %s71
      %p77 = scmp.eq.s32.totalorder %s11, 0
      %p78 = por %p76, %p77
      %p79 = scmp.ne.s32.totalorder %s68, %s71
      %p80 = scmp.eq.s32.totalorder %s16, 1
      %p81 = por %p79, %p80
      %p82 = scmp.ne.s32.totalorder %s71, %s72
      %p83 = scmp.eq.s32.totalorder %s16, 0
      %p84 = por %p82, %p83
      %p85 = scmp.ne.s32.totalorder %s71, %s72
      %p86 = scmp.eq.s32.totalorder %s17, 1
      %p87 = por %p85, %p86
      %p89 = scmp.ne.s32.totalorder %s72, %s88
      %p90 = scmp.eq.s32.totalorder %s17, 0
      %p91 = por %p89, %p90
      %p92 = scmp.le.s32.totalorder 1, %s11
      %p93 = scmp.lt.s32.totalorder %s11, 3
      %p94 = pnand %p92, %p93
      %p95 = pneg %p94
      // Predicated region
      $region9: #{gemma2_forward.17} parent=5 // pred_check
        _
      $region10: #{gemma2_forward.17} parent=5 // pred_check_branch
        %97 = sbr.rel (%p94) target = $region12
      $region11: #{gemma2_forward.17} parent=5 // pred_region
        %s98 = ssub.s32 %s11, 1
        // Predicated region
        $region13: #{gemma2_forward.17} parent=11 // pred_check
          %p99 = pneg %p58
        $region14: #{gemma2_forward.17} parent=11 // pred_check_branch
          %101 = sbr.rel (%p99) target = $region16
        $region15: #{gemma2_forward.17} parent=11 // pred_region
          _
        $region16: #{gemma2_forward.17} parent=11 // pred_fallthru
          _
      $region12: #{gemma2_forward.17} parent=5 // pred_fallthru
        _
      %p102 = scmp.lt.s32.totalorder %s11, 2
      // Predicated region
      $region17: #{gemma2_forward.17} parent=5 // pred_check
        %p103 = pneg %p102
      $region18: #{gemma2_forward.17} parent=5 // pred_check_branch
        %105 = sbr.rel (%p103) target = $region20
      $region19: #{gemma2_forward.17} parent=5 // pred_region
        // Predicated region
        $region21: #{gemma2_forward.17} parent=19 // pred_check
          %p106 = pneg %p31
        $region22: #{gemma2_forward.17} parent=19 // pred_check_branch
          %108 = sbr.rel (%p106) target = $region24
        $region23: #{gemma2_forward.17} parent=19 // pred_region
          %p109 = scmp.lt.s32.totalorder %s11, 1
          %s110 = scalar_select %p109, %s11, 1
          %s111 = smul.addr %s110, 8
          %s112 = scalar_lea.vmem %s0, %s111
        $region24: #{gemma2_forward.17} parent=19 // pred_fallthru
          _
      $region20: #{gemma2_forward.17} parent=5 // pred_fallthru
        _
      %p113 = scmp.le.s32.totalorder 1, %s11
      %p114 = scmp.lt.s32.totalorder %s11, 3
      %p115 = pnand %p113, %p114
      %p116 = pneg %p115
      // Predicated region
      $region25: #{gemma2_forward.17} parent=5 // pred_check
        _
      $region26: #{gemma2_forward.17} parent=5 // pred_check_branch
        %118 = sbr.rel (%p115) target = $region28
      $region27: #{gemma2_forward.17} parent=5 // pred_region
        %s119 = ssub.s32 %s11, 1
        %p120 = scmp.lt.s32.totalorder %s16, 1
        %s121 = scalar_select %p120, %s16, 1
        %s122 = smul.addr %s121, 8
        %s123 = scalar_lea.vmem %s0, %s122
        %p124 = pneg %p37
        %p125 = pneg %p34
        %p126 = pneg %p58
        %p127 = pneg %p55
        %p128 = pneg %p84
        %p129 = pneg %p81
        %s130 = sand.u32 %s71, 1
        %s131 = scalar_lea.sflag [#allocation3], %s130
        %s132 = sand.u32 %s71, 1
        %s133 = smul.addr %s132, 8
        %s134 = scalar_lea.vmem [#allocation2], %s133
        %p135 = scmp.lt.s32.totalorder %s16, 1
        %s136 = scalar_select %p135, %s16, 1
        %s137 = smul.addr %s136, 8
        %s138 = scalar_lea.vmem %s0, %s137
        %v139 = vld [vmem:[%s138] sm:$0xff]
        %v140 = vld [vmem:[%s1] sm:$0x1]
        %v141 = vmul.f32 %v139, %v139
        %142 = vadd.xlane.f32.xlu0 %v141
        %v143 = vpop.xlane.xlu0 %142
        %v144 = vrcp.pop 128.0
        %v145 = vmul.f32 %v143, %v144
        %v146 = vadd.f32 %v145, 1e-06
        %v147 = vrsqrt.pop %v146
        %v148 = vmul.f32 %v139, %v147
        %v149 = vadd.f32 %v140, 1.0
        %v151 = vlaneseq
        %v152 = vshrl.u32 %v151, 7
        %v153 = vsub.s32 0, %v152
        %v154 = vrot.slane %v149, %v153
        %v156 = vmul.f32 %v148, %v154
        %157 = vst [vmem:[%s134] sm:$0xff] %v156
        %s158 = sand.u32 %s71, 1
        %s159 = scalar_lea.sflag [#allocation3], %s158
        %s160 = sand.u32 %s71, 1
        %s161 = smul.addr %s160, 8
        %s162 = scalar_lea.vmem [#allocation2], %s161
        // Predicated region
        $region29: #{gemma2_forward.17} parent=27 // pred_check
          %p163 = pneg %p81
        $region30: #{gemma2_forward.17} parent=27 // pred_check_branch
          %165 = sbr.rel (%p163) target = $region32
        $region31: #{gemma2_forward.17} parent=27 // pred_region
          %s167 = ssub.s32 128, 128
          %168 = vsyncadd %s159, %s167
          %s169 = smul.addr %s16, 128
          %s170 = scalar_lea.hbm %s2, %s169
          %s172 = sshll.u32 %s162, 4
          %s173 = int_to_ptr.vmem [resolvable:$true] %s172
          %175 = dma.vmem_to_hbm [thread:$0]  %s173, 128, %s170, %s159
        $region32: #{gemma2_forward.17} parent=27 // pred_fallthru
          _
      $region28: #{gemma2_forward.17} parent=5 // pred_fallthru
        _
      %p176 = scmp.le.s32.totalorder 2, %s11
      // Predicated region
      $region33: #{gemma2_forward.17} parent=5 // pred_check
        %p177 = pneg %p176
      $region34: #{gemma2_forward.17} parent=5 // pred_check_branch
        %179 = sbr.rel (%p177) target = $region36
      $region35: #{gemma2_forward.17} parent=5 // pred_region
        %s180 = ssub.s32 %s11, 2
        // Predicated region
        $region37: #{gemma2_forward.17} parent=35 // pred_check
          %p181 = pneg %p87
        $region38: #{gemma2_forward.17} parent=35 // pred_check_branch
          %183 = sbr.rel (%p181) target = $region40
        $region39: #{gemma2_forward.17} parent=35 // pred_region
          %s184 = sand.u32 %s72, 1
          %s185 = scalar_lea.sflag [#allocation3], %s184
          %s186 = sand.u32 %s72, 1
          %s187 = smul.addr %s186, 8
          %s188 = scalar_lea.vmem [#allocation2], %s187
          %189 = dma.done %s185, 128
        $region40: #{gemma2_forward.17} parent=35 // pred_fallthru
          _
      $region36: #{gemma2_forward.17} parent=5 // pred_fallthru
        _
    $region6: #{gemma2_forward.17} parent=1 // loop_footer
      %s15 = sadd.s32 1, %s11
    $region7: #{gemma2_forward.17} parent=1 // loop_footer_branch
      %10 = sbr.rel target = $region3
    $region8: #{gemma2_forward.17} parent=1 // loop_exit
      _
    %190 = vsyncpa [#allocation3], 1
    %s191 = scalar_lea.sflag [#allocation3], 1
    %192 = vsyncpa %s191, 1

// kernel: gemma2_forward.10
$region0: #{gemma2_forward.10}
  #allocation0 [shape = 'u32[]', space=smem, size = 0x4, offset = 0x4, fixed_abs, tag = 'smem constant byte address 0x4 - core index']
  #allocation1 [shape = 'u32[144,128]{1,0:T(1,128)}', space=vmem, size = 0x12000, scoped, tag = 'internal scratch']
  %s0 = inlined_call_operand.vmem [shape: f32[2,8,128], index: 0, kind: input, shape index: {}]
  %s1 = inlined_call_operand.vmem [shape: bf16[128,256], index: 1, kind: input, shape index: {}]
  %s2 = inlined_call_operand.vmem [shape: bf16[128,256], index: 2, kind: input, shape index: {}]
  %s3 = inlined_call_operand.vmem [shape: bf16[256,128], index: 3, kind: input, shape index: {}]
  %s4 = inlined_call_operand.vmem [shape: f32[1,128], index: 4, kind: input, shape index: {}]
  %s5 = inlined_call_operand.vmem [shape: f32[1,128], index: 5, kind: input, shape index: {}]
  %s6 = inlined_call_operand.vmem [shape: f32[2,8,128], index: 6, kind: output, shape index: {}]
  %s7 = sld [smem:[#allocation0]]
  $region57: #{gemma2_forward.10} parent=0
    _
  %s9 = ssub.s32 1, %s7
  %s10 = scalar_select 0, %s9, %s7
  loop: start=0, step=1, limit=4
  $region2: #{gemma2_forward.10} parent=0 // loop_pre_header
    _
  $region3: #{gemma2_forward.10} parent=0 // loop_header
    %s12 = sphi 0, %s16
    %p13 = scmp.ge.s32.totalorder %s12, 4
    %s22 = sphi 0, %s24
    %s25 = sphi 0, %s22
    %s26 = sphi 0, %s25
    %s42 = sphi 0, %s26
    %s46 = sphi 0, %s46
    %s48 = sphi 0, %s46
    %s49 = sphi 0, %s48
    %s63 = sphi 0, %s49
    %s67 = sphi 0, %s67
    %s69 = sphi 0, %s67
    %s70 = sphi 0, %s69
    %s84 = sphi 0, %s70
    %s88 = sphi 0, %s88
    %s90 = sphi 0, %s88
    %s91 = sphi 0, %s90
    %s105 = sphi 0, %s91
    %s109 = sphi 0, %s109
    %s111 = sphi 0, %s109
    %s112 = sphi 0, %s111
    %s126 = sphi 0, %s112
    %s130 = sphi 0, %s130
    %s132 = sphi 0, %s130
    %s133 = sphi 0, %s132
    %s147 = sphi 0, %s133
    %s153 = sphi 0, %s155
    %s156 = sphi 0, %s153
    %s157 = sphi 0, %s156
    %s173 = sphi 0, %s157
  $region4: #{gemma2_forward.10} parent=0 // loop_header_branch
    %15 = sbr.rel (%p13) target = $region8
  $region5: #{gemma2_forward.10} parent=0 // loop_body
    %s17 = ssub.s32 %s12, 1
    %s18 = ssub.s32 %s12, 2
    %s19 = sadd.s32 %s12, 1
    %s20 = ssub.s32 %s12, %s19
    %p21 = scmp.eq.s32.totalorder %s20, 0
    %s23 = sadd.s32 %s22, 1
    %s24 = scalar_select %p21, %s22, %s23
    %p27 = pneg %p21
    %p28 = scmp.eq.s32.totalorder %s12, 1
    %p29 = por %p27, %p28
    %p30 = scmp.ne.s32.totalorder %s22, %s25
    %p31 = scmp.eq.s32.totalorder %s12, 0
    %p32 = por %p30, %p31
    %p33 = scmp.ne.s32.totalorder %s22, %s25
    %p34 = scmp.eq.s32.totalorder %s17, 1
    %p35 = por %p33, %p34
    %p36 = scmp.ne.s32.totalorder %s25, %s26
    %p37 = scmp.eq.s32.totalorder %s17, 0
    %p38 = por %p36, %p37
    %p39 = scmp.ne.s32.totalorder %s25, %s26
    %p40 = scmp.eq.s32.totalorder %s18, 1
    %p41 = por %p39, %p40
    %p43 = scmp.ne.s32.totalorder %s26, %s42
    %p44 = scmp.eq.s32.totalorder %s18, 0
    %p45 = por %p43, %p44
    %s47 = sadd.s32 %s46, 1
    %p50 = scmp.eq.s32.totalorder %s12, 1
    %p51 = scmp.ne.s32.totalorder %s46, %s48
    %p52 = scmp.eq.s32.totalorder %s12, 0
    %p53 = por %p51, %p52
    %p54 = scmp.ne.s32.totalorder %s46, %s48
    %p55 = scmp.eq.s32.totalorder %s17, 1
    %p56 = por %p54, %p55
    %p57 = scmp.ne.s32.totalorder %s48, %s49
    %p58 = scmp.eq.s32.totalorder %s17, 0
    %p59 = por %p57, %p58
    %p60 = scmp.ne.s32.totalorder %s48, %s49
    %p61 = scmp.eq.s32.totalorder %s18, 1
    %p62 = por %p60, %p61
    %p64 = scmp.ne.s32.totalorder %s49, %s63
    %p65 = scmp.eq.s32.totalorder %s18, 0
    %p66 = por %p64, %p65
    %s68 = sadd.s32 %s67, 1
    %p71 = scmp.eq.s32.totalorder %s12, 1
    %p72 = scmp.ne.s32.totalorder %s67, %s69
    %p73 = scmp.eq.s32.totalorder %s12, 0
    %p74 = por %p72, %p73
    %p75 = scmp.ne.s32.totalorder %s67, %s69
    %p76 = scmp.eq.s32.totalorder %s17, 1
    %p77 = por %p75, %p76
    %p78 = scmp.ne.s32.totalorder %s69, %s70
    %p79 = scmp.eq.s32.totalorder %s17, 0
    %p80 = por %p78, %p79
    %p81 = scmp.ne.s32.totalorder %s69, %s70
    %p82 = scmp.eq.s32.totalorder %s18, 1
    %p83 = por %p81, %p82
    %p85 = scmp.ne.s32.totalorder %s70, %s84
    %p86 = scmp.eq.s32.totalorder %s18, 0
    %p87 = por %p85, %p86
    %s89 = sadd.s32 %s88, 1
    %p92 = scmp.eq.s32.totalorder %s12, 1
    %p93 = scmp.ne.s32.totalorder %s88, %s90
    %p94 = scmp.eq.s32.totalorder %s12, 0
    %p95 = por %p93, %p94
    %p96 = scmp.ne.s32.totalorder %s88, %s90
    %p97 = scmp.eq.s32.totalorder %s17, 1
    %p98 = por %p96, %p97
    %p99 = scmp.ne.s32.totalorder %s90, %s91
    %p100 = scmp.eq.s32.totalorder %s17, 0
    %p101 = por %p99, %p100
    %p102 = scmp.ne.s32.totalorder %s90, %s91
    %p103 = scmp.eq.s32.totalorder %s18, 1
    %p104 = por %p102, %p103
    %p106 = scmp.ne.s32.totalorder %s91, %s105
    %p107 = scmp.eq.s32.totalorder %s18, 0
    %p108 = por %p106, %p107
    %s110 = sadd.s32 %s109, 1
    %p113 = scmp.eq.s32.totalorder %s12, 1
    %p114 = scmp.ne.s32.totalorder %s109, %s111
    %p115 = scmp.eq.s32.totalorder %s12, 0
    %p116 = por %p114, %p115
    %p117 = scmp.ne.s32.totalorder %s109, %s111
    %p118 = scmp.eq.s32.totalorder %s17, 1
    %p119 = por %p117, %p118
    %p120 = scmp.ne.s32.totalorder %s111, %s112
    %p121 = scmp.eq.s32.totalorder %s17, 0
    %p122 = por %p120, %p121
    %p123 = scmp.ne.s32.totalorder %s111, %s112
    %p124 = scmp.eq.s32.totalorder %s18, 1
    %p125 = por %p123, %p124
    %p127 = scmp.ne.s32.totalorder %s112, %s126
    %p128 = scmp.eq.s32.totalorder %s18, 0
    %p129 = por %p127, %p128
    %s131 = sadd.s32 %s130, 1
    %p134 = scmp.eq.s32.totalorder %s12, 1
    %p135 = scmp.ne.s32.totalorder %s130, %s132
    %p136 = scmp.eq.s32.totalorder %s12, 0
    %p137 = por %p135, %p136
    %p138 = scmp.ne.s32.totalorder %s130, %s132
    %p139 = scmp.eq.s32.totalorder %s17, 1
    %p140 = por %p138, %p139
    %p141 = scmp.ne.s32.totalorder %s132, %s133
    %p142 = scmp.eq.s32.totalorder %s17, 0
    %p143 = por %p141, %p142
    %p144 = scmp.ne.s32.totalorder %s132, %s133
    %p145 = scmp.eq.s32.totalorder %s18, 1
    %p146 = por %p144, %p145
    %p148 = scmp.ne.s32.totalorder %s133, %s147
    %p149 = scmp.eq.s32.totalorder %s18, 0
    %p150 = por %p148, %p149
    %s151 = ssub.s32 %s12, %s19
    %p152 = scmp.eq.s32.totalorder %s151, 0
    %s154 = sadd.s32 %s153, 1
    %s155 = scalar_select %p152, %s153, %s154
    %p158 = pneg %p152
    %p159 = scmp.eq.s32.totalorder %s12, 1
    %p160 = por %p158, %p159
    %p161 = scmp.ne.s32.totalorder %s153, %s156
    %p162 = scmp.eq.s32.totalorder %s12, 0
    %p163 = por %p161, %p162
    %p164 = scmp.ne.s32.totalorder %s153, %s156
    %p165 = scmp.eq.s32.totalorder %s17, 1
    %p166 = por %p164, %p165
    %p167 = scmp.ne.s32.totalorder %s156, %s157
    %p168 = scmp.eq.s32.totalorder %s17, 0
    %p169 = por %p167, %p168
    %p170 = scmp.ne.s32.totalorder %s156, %s157
    %p171 = scmp.eq.s32.totalorder %s18, 1
    %p172 = por %p170, %p171
    %p174 = scmp.ne.s32.totalorder %s157, %s173
    %p175 = scmp.eq.s32.totalorder %s18, 0
    %p176 = por %p174, %p175
    %p177 = scmp.le.s32.totalorder 1, %s12
    %p178 = scmp.lt.s32.totalorder %s12, 3
    %p179 = pnand %p177, %p178
    %p180 = pneg %p179
    // Predicated region
    $region9: #{gemma2_forward.10} parent=5 // pred_check
      _
    $region10: #{gemma2_forward.10} parent=5 // pred_check_branch
      %182 = sbr.rel (%p179) target = $region12
    $region11: #{gemma2_forward.10} parent=5 // pred_region
      %s183 = ssub.s32 %s12, 1
      // Predicated region
      $region13: #{gemma2_forward.10} parent=11 // pred_check
        %p184 = pneg %p59
      $region14: #{gemma2_forward.10} parent=11 // pred_check_branch
        %186 = sbr.rel (%p184) target = $region16
      $region15: #{gemma2_forward.10} parent=11 // pred_region
        _
      $region16: #{gemma2_forward.10} parent=11 // pred_fallthru
        _
      // Predicated region
      $region17: #{gemma2_forward.10} parent=11 // pred_check
        %p187 = pneg %p80
      $region18: #{gemma2_forward.10} parent=11 // pred_check_branch
        %189 = sbr.rel (%p187) target = $region20
      $region19: #{gemma2_forward.10} parent=11 // pred_region
        _
      $region20: #{gemma2_forward.10} parent=11 // pred_fallthru
        _
      // Predicated region
      $region21: #{gemma2_forward.10} parent=11 // pred_check
        %p190 = pneg %p101
      $region22: #{gemma2_forward.10} parent=11 // pred_check_branch
        %192 = sbr.rel (%p190) target = $region24
      $region23: #{gemma2_forward.10} parent=11 // pred_region
        _
      $region24: #{gemma2_forward.10} parent=11 // pred_fallthru
        _
      // Predicated region
      $region25: #{gemma2_forward.10} parent=11 // pred_check
        %p193 = pneg %p122
      $region26: #{gemma2_forward.10} parent=11 // pred_check_branch
        %195 = sbr.rel (%p193) target = $region28
      $region27: #{gemma2_forward.10} parent=11 // pred_region
        _
      $region28: #{gemma2_forward.10} parent=11 // pred_fallthru
        _
      // Predicated region
      $region29: #{gemma2_forward.10} parent=11 // pred_check
        %p196 = pneg %p143
      $region30: #{gemma2_forward.10} parent=11 // pred_check_branch
        %198 = sbr.rel (%p196) target = $region32
      $region31: #{gemma2_forward.10} parent=11 // pred_region
        _
      $region32: #{gemma2_forward.10} parent=11 // pred_fallthru
        _
    $region12: #{gemma2_forward.10} parent=5 // pred_fallthru
      _
    %p199 = scmp.lt.s32.totalorder %s12, 2
    // Predicated region
    $region33: #{gemma2_forward.10} parent=5 // pred_check
      %p200 = pneg %p199
    $region34: #{gemma2_forward.10} parent=5 // pred_check_branch
      %202 = sbr.rel (%p200) target = $region36
    $region35: #{gemma2_forward.10} parent=5 // pred_region
      // Predicated region
      $region37: #{gemma2_forward.10} parent=35 // pred_check
        %p203 = pneg %p32
      $region38: #{gemma2_forward.10} parent=35 // pred_check_branch
        %205 = sbr.rel (%p203) target = $region40
      $region39: #{gemma2_forward.10} parent=35 // pred_region
        %p206 = scmp.lt.s32.totalorder %s12, 1
        %s207 = scalar_select %p206, %s12, 1
        %s208 = smul.addr %s207, 8
        %s209 = scalar_lea.vmem %s0, %s208
      $region40: #{gemma2_forward.10} parent=35 // pred_fallthru
        _
    $region36: #{gemma2_forward.10} parent=5 // pred_fallthru
      _
    %p210 = scmp.le.s32.totalorder 1, %s12
    %p211 = scmp.lt.s32.totalorder %s12, 3
    %p212 = pnand %p210, %p211
    %p213 = pneg %p212
    // Predicated region
    $region41: #{gemma2_forward.10} parent=5 // pred_check
      _
    $region42: #{gemma2_forward.10} parent=5 // pred_check_branch
      %215 = sbr.rel (%p212) target = $region44
    $region43: #{gemma2_forward.10} parent=5 // pred_region
      %s216 = ssub.s32 %s12, 1
      %p217 = scmp.lt.s32.totalorder %s17, 1
      %s218 = scalar_select %p217, %s17, 1
      %s219 = smul.addr %s218, 8
      %s220 = scalar_lea.vmem %s0, %s219
      %p221 = pneg %p38
      %p222 = pneg %p35
      %p223 = pneg %p59
      %p224 = pneg %p56
      %p225 = pneg %p80
      %p226 = pneg %p77
      %p227 = pneg %p101
      %p228 = pneg %p98
      %p229 = pneg %p122
      %p230 = pneg %p119
      %p231 = pneg %p143
      %p232 = pneg %p140
      %p233 = pneg %p169
      %p234 = pneg %p166
      %p235 = scmp.lt.s32.totalorder %s17, 1
      %s236 = scalar_select %p235, %s17, 1
      %s237 = smul.addr %s236, 8
      %s238 = scalar_lea.vmem %s6, %s237
      %p239 = scmp.lt.s32.totalorder %s17, 1
      %s240 = scalar_select %p239, %s17, 1
      %s241 = smul.addr %s240, 8
      %s242 = scalar_lea.vmem %s0, %s241
      %p243 = scmp.lt.s32.totalorder %s17, 1
      %s244 = scalar_select %p243, %s17, 1
      %s245 = smul.addr %s244, 8
      %s246 = scalar_lea.vmem %s6, %s245
      %v248 = vld [vmem:[%s242] sm:$0xff]
      %v249 = vld [vmem:[%s4] sm:$0x1]
      %v250 = vmul.f32 %v248, %v248
      %251 = vadd.xlane.f32.xlu0 %v250
      %v252 = vpop.xlane.xlu0 %251
      %v253 = vrcp.pop 128.0
      %v254 = vmul.f32 %v252, %v253
      %v255 = vadd.f32 %v254, 1e-06
      %v256 = vrsqrt.pop %v255
      %v257 = vmul.f32 %v248, %v256
      %v258 = vadd.f32 %v249, 1.0
      %v260 = vlaneseq
      %v261 = vshrl.u32 %v260, 7
      %v262 = vsub.s32 0, %v261
      %v263 = vrot.slane %v258, %v262
      %v265 = vmul.f32 %v257, %v263
      %v266 = vpack.c.bf16 %v265, %v265
      %v267 = vld [vmem:[%s1] sm:$0xff]
      %v268 = vld [vmem:[%s1 + $0x8] sm:$0xff]
      %v269 = vld [vmem:[%s1 + $0x10] sm:$0xff]
      %v270 = vld [vmem:[%s1 + $0x18] sm:$0xff]
      %v271 = vld [vmem:[%s1 + $0x20] sm:$0xff]
      %v272 = vld [vmem:[%s1 + $0x28] sm:$0xff]
      %v273 = vld [vmem:[%s1 + $0x30] sm:$0xff]
      %v274 = vld [vmem:[%s1 + $0x38] sm:$0xff]
      %v275 = vld [vmem:[%s1 + $0x40] sm:$0xff]
      %v276 = vld [vmem:[%s1 + $0x48] sm:$0xff]
      %v277 = vld [vmem:[%s1 + $0x50] sm:$0xff]
      %v278 = vld [vmem:[%s1 + $0x58] sm:$0xff]
      %v279 = vld [vmem:[%s1 + $0x60] sm:$0xff]
      %v280 = vld [vmem:[%s1 + $0x68] sm:$0xff]
      %v281 = vld [vmem:[%s1 + $0x70] sm:$0xff]
      %v282 = vld [vmem:[%s1 + $0x78] sm:$0xff]
      %v299 = vunpack.c.l.b16 %v267
      %v300 = vunpack.c.h.b16 %v267
      %v301 = vunpack.c.l.b16 %v268
      %v302 = vunpack.c.h.b16 %v268
      %v303 = vunpack.c.l.b16 %v269
      %v304 = vunpack.c.h.b16 %v269
      %v305 = vunpack.c.l.b16 %v270
      %v306 = vunpack.c.h.b16 %v270
      %v307 = vunpack.c.l.b16 %v271
      %v308 = vunpack.c.h.b16 %v271
      %v309 = vunpack.c.l.b16 %v272
      %v310 = vunpack.c.h.b16 %v272
      %v311 = vunpack.c.l.b16 %v273
      %v312 = vunpack.c.h.b16 %v273
      %v313 = vunpack.c.l.b16 %v274
      %v314 = vunpack.c.h.b16 %v274
      %v315 = vunpack.c.l.b16 %v275
      %v316 = vunpack.c.h.b16 %v275
      %v317 = vunpack.c.l.b16 %v276
      %v318 = vunpack.c.h.b16 %v276
      %v319 = vunpack.c.l.b16 %v277
      %v320 = vunpack.c.h.b16 %v277
      %v321 = vunpack.c.l.b16 %v278
      %v322 = vunpack.c.h.b16 %v278
      %v323 = vunpack.c.l.b16 %v279
      %v324 = vunpack.c.h.b16 %v279
      %v325 = vunpack.c.l.b16 %v280
      %v326 = vunpack.c.h.b16 %v280
      %v327 = vunpack.c.l.b16 %v281
      %v328 = vunpack.c.h.b16 %v281
      %v329 = vunpack.c.l.b16 %v282
      %v330 = vunpack.c.h.b16 %v282
      %v331 = vpack.c.b16 %v301, %v299
      %v332 = vpack.c.b16 %v302, %v300
      %v333 = vpack.c.b16 %v305, %v303
      %v334 = vpack.c.b16 %v306, %v304
      %v335 = vpack.c.b16 %v309, %v307
      %v336 = vpack.c.b16 %v310, %v308
      %v337 = vpack.c.b16 %v313, %v311
      %v338 = vpack.c.b16 %v314, %v312
      %v339 = vpack.c.b16 %v317, %v315
      %v340 = vpack.c.b16 %v318, %v316
      %v341 = vpack.c.b16 %v321, %v319
      %v342 = vpack.c.b16 %v322, %v320
      %v343 = vpack.c.b16 %v325, %v323
      %v344 = vpack.c.b16 %v326, %v324
      %v345 = vpack.c.b16 %v329, %v327
      %v346 = vpack.c.b16 %v330, %v328
      %363 = vmatprep.subr.bf16.mxu0 %v332
      %364 = vmatpush1.bf16.msra.mxu0 %v331
      %365 = vmatprep.subr.bf16.mxu0 %v334
      %366 = vmatpush1.bf16.msra.mxu0 %v333
      %367 = vmatprep.subr.bf16.mxu0 %v336
      %368 = vmatpush1.bf16.msra.mxu0 %v335
      %369 = vmatprep.subr.bf16.mxu0 %v338
      %370 = vmatpush1.bf16.msra.mxu0 %v337
      %371 = vmatprep.subr.bf16.mxu0 %v340
      %372 = vmatpush1.bf16.msra.mxu0 %v339
      %373 = vmatprep.subr.bf16.mxu0 %v342
      %374 = vmatpush1.bf16.msra.mxu0 %v341
      %375 = vmatprep.subr.bf16.mxu0 %v344
      %376 = vmatpush1.bf16.msra.mxu0 %v343
      %377 = vmatprep.subr.bf16.mxu0 %v346
      %378 = vmatpush1.bf16.msra.mxu0 %v345
      %379 = vmatprep.subr.bf16.mxu0 0
      %380 = vmatpush1.bf16.msra.mxu0 0
      %381 = vmatprep.subr.bf16.mxu0 0
      %382 = vmatpush1.bf16.msra.mxu0 0
      %383 = vmatprep.subr.bf16.mxu0 0
      %384 = vmatpush1.bf16.msra.mxu0 0
      %385 = vmatprep.subr.bf16.mxu0 0
      %386 = vmatpush1.bf16.msra.mxu0 0
      %387 = vmatprep.subr.bf16.mxu0 0
      %388 = vmatpush1.bf16.msra.mxu0 0
      %389 = vmatprep.subr.bf16.mxu0 0
      %390 = vmatpush1.bf16.msra.mxu0 0
      %391 = vmatprep.subr.bf16.mxu0 0
      %392 = vmatpush1.bf16.msra.mxu0 0
      %393 = vmatprep.subr.bf16.mxu0 0
      %394 = vmatpush1.bf16.msra.mxu0 0
      %395 = vmatprep.mubr.bf16.mxu0 0
      %396 = vmatmul.mubr.bf16.gmra.mrb[0].mxu0 %v266
      %v397 = vpop.f32.mrb[0].mxu0
      %v398 = vadd.f32 0.0, %v397
      %v399 = vpop.f32.mrb[0].mxu0
      %v400 = vadd.f32 0.0, %v399
      %v401 = vpop.f32.mrb[0].mxu0
      %v402 = vpop.f32.mrb[0].mxu0
      %403 = vdwg.mxu0
      %v404 = vld [vmem:[%s2] sm:$0xff]
      %v405 = vld [vmem:[%s2 + $0x8] sm:$0xff]
      %v406 = vld [vmem:[%s2 + $0x10] sm:$0xff]
      %v407 = vld [vmem:[%s2 + $0x18] sm:$0xff]
      %v408 = vld [vmem:[%s2 + $0x20] sm:$0xff]
      %v409 = vld [vmem:[%s2 + $0x28] sm:$0xff]
      %v410 = vld [vmem:[%s2 + $0x30] sm:$0xff]
      %v411 = vld [vmem:[%s2 + $0x38] sm:$0xff]
      %v412 = vld [vmem:[%s2 + $0x40] sm:$0xff]
      %v413 = vld [vmem:[%s2 + $0x48] sm:$0xff]
      %v414 = vld [vmem:[%s2 + $0x50] sm:$0xff]
      %v415 = vld [vmem:[%s2 + $0x58] sm:$0xff]
      %v416 = vld [vmem:[%s2 + $0x60] sm:$0xff]
      %v417 = vld [vmem:[%s2 + $0x68] sm:$0xff]
      %v418 = vld [vmem:[%s2 + $0x70] sm:$0xff]
      %v419 = vld [vmem:[%s2 + $0x78] sm:$0xff]
      %v436 = vunpack.c.l.b16 %v404
      %v437 = vunpack.c.h.b16 %v404
      %v438 = vunpack.c.l.b16 %v405
      %v439 = vunpack.c.h.b16 %v405
      %v440 = vunpack.c.l.b16 %v406
      %v441 = vunpack.c.h.b16 %v406
      %v442 = vunpack.c.l.b16 %v407
      %v443 = vunpack.c.h.b16 %v407
      %v444 = vunpack.c.l.b16 %v408
      %v445 = vunpack.c.h.b16 %v408
      %v446 = vunpack.c.l.b16 %v409
      %v447 = vunpack.c.h.b16 %v409
      %v448 = vunpack.c.l.b16 %v410
      %v449 = vunpack.c.h.b16 %v410
      %v450 = vunpack.c.l.b16 %v411
      %v451 = vunpack.c.h.b16 %v411
      %v452 = vunpack.c.l.b16 %v412
      %v453 = vunpack.c.h.b16 %v412
      %v454 = vunpack.c.l.b16 %v413
      %v455 = vunpack.c.h.b16 %v413
      %v456 = vunpack.c.l.b16 %v414
      %v457 = vunpack.c.h.b16 %v414
      %v458 = vunpack.c.l.b16 %v415
      %v459 = vunpack.c.h.b16 %v415
      %v460 = vunpack.c.l.b16 %v416
      %v461 = vunpack.c.h.b16 %v416
      %v462 = vunpack.c.l.b16 %v417
      %v463 = vunpack.c.h.b16 %v417
      %v464 = vunpack.c.l.b16 %v418
      %v465 = vunpack.c.h.b16 %v418
      %v466 = vunpack.c.l.b16 %v419
      %v467 = vunpack.c.h.b16 %v419
      %v468 = vpack.c.b16 %v438, %v436
      %v469 = vpack.c.b16 %v439, %v437
      %v470 = vpack.c.b16 %v442, %v440
      %v471 = vpack.c.b16 %v443, %v441
      %v472 = vpack.c.b16 %v446, %v444
      %v473 = vpack.c.b16 %v447, %v445
      %v474 = vpack.c.b16 %v450, %v448
      %v475 = vpack.c.b16 %v451, %v449
      %v476 = vpack.c.b16 %v454, %v452
      %v477 = vpack.c.b16 %v455, %v453
      %v478 = vpack.c.b16 %v458, %v456
      %v479 = vpack.c.b16 %v459, %v457
      %v480 = vpack.c.b16 %v462, %v460
      %v481 = vpack.c.b16 %v463, %v461
      %v482 = vpack.c.b16 %v466, %v464
      %v483 = vpack.c.b16 %v467, %v465
      %500 = vmatprep.subr.bf16.mxu0 %v469
      %501 = vmatpush1.bf16.msra.mxu0 %v468
      %502 = vmatprep.subr.bf16.mxu0 %v471
      %503 = vmatpush1.bf16.msra.mxu0 %v470
      %504 = vmatprep.subr.bf16.mxu0 %v473
      %505 = vmatpush1.bf16.msra.mxu0 %v472
      %506 = vmatprep.subr.bf16.mxu0 %v475
      %507 = vmatpush1.bf16.msra.mxu0 %v474
      %508 = vmatprep.subr.bf16.mxu0 %v477
      %509 = vmatpush1.bf16.msra.mxu0 %v476
      %510 = vmatprep.subr.bf16.mxu0 %v479
      %511 = vmatpush1.bf16.msra.mxu0 %v478
      %512 = vmatprep.subr.bf16.mxu0 %v481
      %513 = vmatpush1.bf16.msra.mxu0 %v480
      %514 = vmatprep.subr.bf16.mxu0 %v483
      %515 = vmatpush1.bf16.msra.mxu0 %v482
      %516 = vmatprep.subr.bf16.mxu0 0
      %517 = vmatpush1.bf16.msra.mxu0 0
      %518 = vmatprep.subr.bf16.mxu0 0
      %519 = vmatpush1.bf16.msra.mxu0 0
      %520 = vmatprep.subr.bf16.mxu0 0
      %521 = vmatpush1.bf16.msra.mxu0 0
      %522 = vmatprep.subr.bf16.mxu0 0
      %523 = vmatpush1.bf16.msra.mxu0 0
      %524 = vmatprep.subr.bf16.mxu0 0
      %525 = vmatpush1.bf16.msra.mxu0 0
      %526 = vmatprep.subr.bf16.mxu0 0
      %527 = vmatpush1.bf16.msra.mxu0 0
      %528 = vmatprep.subr.bf16.mxu0 0
      %529 = vmatpush1.bf16.msra.mxu0 0
      %530 = vmatprep.subr.bf16.mxu0 0
      %531 = vmatpush1.bf16.msra.mxu0 0
      %532 = vmatprep.mubr.bf16.mxu0 0
      %533 = vmatmul.mubr.bf16.gmra.mrb[0].mxu0 %v266
      %v534 = vpop.f32.mrb[0].mxu0
      %v535 = vadd.f32 0.0, %v534
      %v536 = vpop.f32.mrb[0].mxu0
      %v537 = vadd.f32 0.0, %v536
      %v538 = vpop.f32.mrb[0].mxu0
      %v539 = vpop.f32.mrb[0].mxu0
      %540 = vdwg.mxu0
      %v541 = vmul.f32 %v398, %v398
      %v542 = vmul.f32 %v400, %v400
      %v543 = vmul.f32 %v398, %v541
      %v544 = vmul.f32 %v400, %v542
      %v545 = vmul.f32 %v543, 0.044715
      %v546 = vmul.f32 %v544, 0.044715
      %v547 = vadd.f32 %v398, %v545
      %v548 = vadd.f32 %v400, %v546
      %v549 = vmul.f32 %v547, 0.7978846
      %v550 = vmul.f32 %v548, 0.7978846
      %v551 = vtanh.pop %v549
      %v552 = vtanh.pop %v550
      %v553 = vadd.f32 %v551, 1.0
      %v554 = vadd.f32 %v552, 1.0
      %v555 = vmul.f32 %v553, 0.5
      %v556 = vmul.f32 %v554, 0.5
      %v557 = vmul.f32 %v398, %v555
      %v558 = vmul.f32 %v400, %v556
      %v559 = vmul.f32 %v557, %v535
      %v560 = vmul.f32 %v558, %v537
      %v561 = vpack.c.bf16 %v559, %v559
      %v562 = vpack.c.bf16 %v560, %v560
      %v563 = vld [vmem:[%s3] sm:$0xf]
      %v564 = vld [vmem:[%s3 + $0x4] sm:$0xf]
      %v565 = vld [vmem:[%s3 + $0x8] sm:$0xf]
      %v566 = vld [vmem:[%s3 + $0xc] sm:$0xf]
      %v567 = vld [vmem:[%s3 + $0x10] sm:$0xf]
      %v568 = vld [vmem:[%s3 + $0x14] sm:$0xf]
      %v569 = vld [vmem:[%s3 + $0x18] sm:$0xf]
      %v570 = vld [vmem:[%s3 + $0x1c] sm:$0xf]
      %v571 = vld [vmem:[%s3 + $0x20] sm:$0xf]
      %v572 = vld [vmem:[%s3 + $0x24] sm:$0xf]
      %v573 = vld [vmem:[%s3 + $0x28] sm:$0xf]
      %v574 = vld [vmem:[%s3 + $0x2c] sm:$0xf]
      %v575 = vld [vmem:[%s3 + $0x30] sm:$0xf]
      %v576 = vld [vmem:[%s3 + $0x34] sm:$0xf]
      %v577 = vld [vmem:[%s3 + $0x38] sm:$0xf]
      %v578 = vld [vmem:[%s3 + $0x3c] sm:$0xf]
      %v579 = vld [vmem:[%s3 + $0x40] sm:$0xf]
      %v580 = vld [vmem:[%s3 + $0x44] sm:$0xf]
      %v581 = vld [vmem:[%s3 + $0x48] sm:$0xf]
      %v582 = vld [vmem:[%s3 + $0x4c] sm:$0xf]
      %v583 = vld [vmem:[%s3 + $0x50] sm:$0xf]
      %v584 = vld [vmem:[%s3 + $0x54] sm:$0xf]
      %v585 = vld [vmem:[%s3 + $0x58] sm:$0xf]
      %v586 = vld [vmem:[%s3 + $0x5c] sm:$0xf]
      %v587 = vld [vmem:[%s3 + $0x60] sm:$0xf]
      %v588 = vld [vmem:[%s3 + $0x64] sm:$0xf]
      %v589 = vld [vmem:[%s3 + $0x68] sm:$0xf]
      %v590 = vld [vmem:[%s3 + $0x6c] sm:$0xf]
      %v591 = vld [vmem:[%s3 + $0x70] sm:$0xf]
      %v592 = vld [vmem:[%s3 + $0x74] sm:$0xf]
      %v593 = vld [vmem:[%s3 + $0x78] sm:$0xf]
      %v594 = vld [vmem:[%s3 + $0x7c] sm:$0xf]
      %v627 = vunpack.c.l.b16 %v563
      %v628 = vunpack.c.l.b16 %v564
      %v629 = vunpack.c.l.b16 %v565
      %v630 = vunpack.c.l.b16 %v566
      %v631 = vunpack.c.l.b16 %v567
      %v632 = vunpack.c.l.b16 %v568
      %v633 = vunpack.c.l.b16 %v569
      %v634 = vunpack.c.l.b16 %v570
      %v635 = vunpack.c.l.b16 %v571
      %v636 = vunpack.c.l.b16 %v572
      %v637 = vunpack.c.l.b16 %v573
      %v638 = vunpack.c.l.b16 %v574
      %v639 = vunpack.c.l.b16 %v575
      %v640 = vunpack.c.l.b16 %v576
      %v641 = vunpack.c.l.b16 %v577
      %v642 = vunpack.c.l.b16 %v578
      %v643 = vunpack.c.l.b16 %v579
      %v644 = vunpack.c.l.b16 %v580
      %v645 = vunpack.c.l.b16 %v581
      %v646 = vunpack.c.l.b16 %v582
      %v647 = vunpack.c.l.b16 %v583
      %v648 = vunpack.c.l.b16 %v584
      %v649 = vunpack.c.l.b16 %v585
      %v650 = vunpack.c.l.b16 %v586
      %v651 = vunpack.c.l.b16 %v587
      %v652 = vunpack.c.l.b16 %v588
      %v653 = vunpack.c.l.b16 %v589
      %v654 = vunpack.c.l.b16 %v590
      %v655 = vunpack.c.l.b16 %v591
      %v656 = vunpack.c.l.b16 %v592
      %v657 = vunpack.c.l.b16 %v593
      %v658 = vunpack.c.l.b16 %v594
      %v659 = vpack.c.b16 %v628, %v627
      %v660 = vpack.c.b16 %v630, %v629
      %v661 = vpack.c.b16 %v632, %v631
      %v662 = vpack.c.b16 %v634, %v633
      %v663 = vpack.c.b16 %v636, %v635
      %v664 = vpack.c.b16 %v638, %v637
      %v665 = vpack.c.b16 %v640, %v639
      %v666 = vpack.c.b16 %v642, %v641
      %v667 = vpack.c.b16 %v644, %v643
      %v668 = vpack.c.b16 %v646, %v645
      %v669 = vpack.c.b16 %v648, %v647
      %v670 = vpack.c.b16 %v650, %v649
      %v671 = vpack.c.b16 %v652, %v651
      %v672 = vpack.c.b16 %v654, %v653
      %v673 = vpack.c.b16 %v656, %v655
      %v674 = vpack.c.b16 %v658, %v657
      %691 = vmatprep.subr.bf16.mxu0 0
      %692 = vmatpush1.bf16.msra.mxu0 %v659
      %693 = vmatprep.subr.bf16.mxu0 0
      %694 = vmatpush1.bf16.msra.mxu0 %v660
      %695 = vmatprep.subr.bf16.mxu0 0
      %696 = vmatpush1.bf16.msra.mxu0 %v661
      %697 = vmatprep.subr.bf16.mxu0 0
      %698 = vmatpush1.bf16.msra.mxu0 %v662
      %699 = vmatprep.subr.bf16.mxu0 0
      %700 = vmatpush1.bf16.msra.mxu0 %v663
      %701 = vmatprep.subr.bf16.mxu0 0
      %702 = vmatpush1.bf16.msra.mxu0 %v664
      %703 = vmatprep.subr.bf16.mxu0 0
      %704 = vmatpush1.bf16.msra.mxu0 %v665
      %705 = vmatprep.subr.bf16.mxu0 0
      %706 = vmatpush1.bf16.msra.mxu0 %v666
      %707 = vmatprep.subr.bf16.mxu0 0
      %708 = vmatpush1.bf16.msra.mxu0 %v667
      %709 = vmatprep.subr.bf16.mxu0 0
      %710 = vmatpush1.bf16.msra.mxu0 %v668
      %711 = vmatprep.subr.bf16.mxu0 0
      %712 = vmatpush1.bf16.msra.mxu0 %v669
      %713 = vmatprep.subr.bf16.mxu0 0
      %714 = vmatpush1.bf16.msra.mxu0 %v670
      %715 = vmatprep.subr.bf16.mxu0 0
      %716 = vmatpush1.bf16.msra.mxu0 %v671
      %717 = vmatprep.subr.bf16.mxu0 0
      %718 = vmatpush1.bf16.msra.mxu0 %v672
      %719 = vmatprep.subr.bf16.mxu0 0
      %720 = vmatpush1.bf16.msra.mxu0 %v673
      %721 = vmatprep.subr.bf16.mxu0 0
      %722 = vmatpush1.bf16.msra.mxu0 %v674
      %723 = vmatprep.mubr.bf16.mxu0 %v562
      %724 = vmatmul.mubr.bf16.gmra.mrb[0].mxu0 %v561
      %v725 = vpop.f32.mrb[0].mxu0
      %v726 = vadd.f32 0.0, %v725
      %v727 = vpop.f32.mrb[0].mxu0
      %v728 = vpop.f32.mrb[0].mxu0
      %v729 = vpop.f32.mrb[0].mxu0
      %730 = vdwg.mxu0
      %v731 = vld [vmem:[%s5] sm:$0x1]
      %v732 = vmul.f32 %v726, %v726
      %733 = vadd.xlane.f32.xlu0 %v732
      %v734 = vpop.xlane.xlu0 %733
      %v735 = vmul.f32 %v734, %v253
      %v736 = vadd.f32 %v735, 1e-06
      %v737 = vrsqrt.pop %v736
      %v738 = vmul.f32 %v726, %v737
      %v739 = vadd.f32 %v731, 1.0
      %v741 = vlaneseq
      %v742 = vshrl.u32 %v741, 7
      %v743 = vsub.s32 0, %v742
      %v744 = vrot.slane %v739, %v743
      %v746 = vmul.f32 %v738, %v744
      %v747 = vadd.f32 %v248, %v746
      %748 = vst [vmem:[%s246] sm:$0xff] %v747
      %p749 = scmp.lt.s32.totalorder %s17, 1
      %s750 = scalar_select %p749, %s17, 1
      %s751 = smul.addr %s750, 8
      %s752 = scalar_lea.vmem %s6, %s751
      // Predicated region
      $region45: #{gemma2_forward.10} parent=43 // pred_check
        %p753 = pneg %p166
      $region46: #{gemma2_forward.10} parent=43 // pred_check_branch
        %755 = sbr.rel (%p753) target = $region48
      $region47: #{gemma2_forward.10} parent=43 // pred_region
        _
      $region48: #{gemma2_forward.10} parent=43 // pred_fallthru
        _
    $region44: #{gemma2_forward.10} parent=5 // pred_fallthru
      _
    %p756 = scmp.le.s32.totalorder 2, %s12
    // Predicated region
    $region49: #{gemma2_forward.10} parent=5 // pred_check
      %p757 = pneg %p756
    $region50: #{gemma2_forward.10} parent=5 // pred_check_branch
      %759 = sbr.rel (%p757) target = $region52
    $region51: #{gemma2_forward.10} parent=5 // pred_region
      %s760 = ssub.s32 %s12, 2
      // Predicated region
      $region53: #{gemma2_forward.10} parent=51 // pred_check
        %p761 = pneg %p172
      $region54: #{gemma2_forward.10} parent=51 // pred_check_branch
        %763 = sbr.rel (%p761) target = $region56
      $region55: #{gemma2_forward.10} parent=51 // pred_region
        %p764 = scmp.lt.s32.totalorder %s18, 1
        %s765 = scalar_select %p764, %s18, 1
        %s766 = smul.addr %s765, 8
        %s767 = scalar_lea.vmem %s6, %s766
      $region56: #{gemma2_forward.10} parent=51 // pred_fallthru
        _
    $region52: #{gemma2_forward.10} parent=5 // pred_fallthru
      _
  $region6: #{gemma2_forward.10} parent=0 // loop_footer
    %s16 = sadd.s32 1, %s12
  $region7: #{gemma2_forward.10} parent=0 // loop_footer_branch
    %11 = sbr.rel target = $region3
  $region8: #{gemma2_forward.10} parent=0 // loop_exit
    _

// kernel: gemma2_forward.11
$region0: #{gemma2_forward.11}
  #allocation0 [shape = 'u32[]', space=smem, size = 0x4, offset = 0x4, fixed_abs, tag = 'smem constant byte address 0x4 - core index']
  #allocation1 [shape = 'u32[144,128]{1,0:T(1,128)}', space=vmem, size = 0x12000, scoped, tag = 'internal scratch']
  %s0 = inlined_call_operand.vmem [shape: s32[8,1], index: 0, kind: input, shape index: {}]
  %s1 = inlined_call_operand.vmem [shape: s32[1,8], index: 1, kind: input, shape index: {}]
  %s2 = inlined_call_operand.vmem [shape: f32[2,8,128], index: 2, kind: input, shape index: {}]
  %s3 = inlined_call_operand.vmem [shape: f32[8,16], index: 3, kind: input, shape index: {}]
  %s4 = inlined_call_operand.vmem [shape: f32[8,16], index: 4, kind: input, shape index: {}]
  %s5 = inlined_call_operand.vmem [shape: bf16[128,256], index: 5, kind: input, shape index: {}]
  %s6 = inlined_call_operand.vmem [shape: bf16[128,128], index: 6, kind: input, shape index: {}]
  %s7 = inlined_call_operand.vmem [shape: f32[1,128], index: 7, kind: input, shape index: {}]
  %s8 = inlined_call_operand.vmem [shape: f32[1,128], index: 8, kind: input, shape index: {}]
  %s9 = inlined_call_operand.vmem [shape: f32[2,2,16,32], index: 9, kind: input, shape index: {}, may-alias: {9,12}]
  %s10 = inlined_call_operand.vmem [shape: f32[2,2,16,32], index: 10, kind: input, shape index: {}, may-alias: {10,13}]
  %s11 = inlined_call_operand.vmem [shape: f32[2,8,128], index: 11, kind: output, shape index: {0}]
  %s12 = inlined_call_operand.vmem [shape: f32[2,2,16,32], index: 12, kind: output, shape index: {1}, may-alias: {9,12}]
  %s13 = inlined_call_operand.vmem [shape: f32[2,2,16,32], index: 13, kind: output, shape index: {2}, may-alias: {10,13}]
  %14 = xla_tuple %s11, %s12, %s13
  %s15 = sld [smem:[#allocation0]]
  $region93: #{gemma2_forward.11} parent=0
    _
  %s17 = ssub.s32 1, %s15
  %s18 = scalar_select 0, %s17, %s15
  loop: start=0, step=1, limit=4
  $region2: #{gemma2_forward.11} parent=0 // loop_pre_header
    _
  $region3: #{gemma2_forward.11} parent=0 // loop_header
    %s20 = sphi 0, %s24
    %p21 = scmp.ge.s32.totalorder %s20, 4
    %s28 = sphi 0, %s28
    %s30 = sphi 0, %s28
    %s31 = sphi 0, %s30
    %s45 = sphi 0, %s31
    %s49 = sphi 0, %s49
    %s51 = sphi 0, %s49
    %s52 = sphi 0, %s51
    %s66 = sphi 0, %s52
    %s72 = sphi 0, %s74
    %s75 = sphi 0, %s72
    %s76 = sphi 0, %s75
    %s92 = sphi 0, %s76
    %s96 = sphi 0, %s96
    %s98 = sphi 0, %s96
    %s99 = sphi 0, %s98
    %s113 = sphi 0, %s99
    %s117 = sphi 0, %s117
    %s119 = sphi 0, %s117
    %s120 = sphi 0, %s119
    %s134 = sphi 0, %s120
    %s138 = sphi 0, %s138
    %s140 = sphi 0, %s138
    %s141 = sphi 0, %s140
    %s155 = sphi 0, %s141
    %s159 = sphi 0, %s159
    %s161 = sphi 0, %s159
    %s162 = sphi 0, %s161
    %s176 = sphi 0, %s162
    %s180 = sphi 0, %s180
    %s182 = sphi 0, %s180
    %s183 = sphi 0, %s182
    %s197 = sphi 0, %s183
    %s201 = sphi 0, %s201
    %s203 = sphi 0, %s201
    %s204 = sphi 0, %s203
    %s218 = sphi 0, %s204
    %s224 = sphi 0, %s226
    %s227 = sphi 0, %s224
    %s228 = sphi 0, %s227
    %s244 = sphi 0, %s228
    %s250 = sphi 0, %s252
    %s253 = sphi 0, %s250
    %s254 = sphi 0, %s253
    %s270 = sphi 0, %s254
    %s276 = sphi 0, %s278
    %s279 = sphi 0, %s276
    %s280 = sphi 0, %s279
    %s296 = sphi 0, %s280
    %s302 = sphi 0, %s304
    %s305 = sphi 0, %s302
    %s306 = sphi 0, %s305
    %s322 = sphi 0, %s306
    %s328 = sphi 0, %s330
    %s331 = sphi 0, %s328
    %s332 = sphi 0, %s331
    %s348 = sphi 0, %s332
  $region4: #{gemma2_forward.11} parent=0 // loop_header_branch
    %23 = sbr.rel (%p21) target = $region8
  $region5: #{gemma2_forward.11} parent=0 // loop_body
    %s25 = ssub.s32 %s20, 1
    %s26 = ssub.s32 %s20, 2
    %s27 = sadd.s32 %s20, 1
    %s29 = sadd.s32 %s28, 1
    %p32 = scmp.eq.s32.totalorder %s20, 1
    %p33 = scmp.ne.s32.totalorder %s28, %s30
    %p34 = scmp.eq.s32.totalorder %s20, 0
    %p35 = por %p33, %p34
    %p36 = scmp.ne.s32.totalorder %s28, %s30
    %p37 = scmp.eq.s32.totalorder %s25, 1
    %p38 = por %p36, %p37
    %p39 = scmp.ne.s32.totalorder %s30, %s31
    %p40 = scmp.eq.s32.totalorder %s25, 0
    %p41 = por %p39, %p40
    %p42 = scmp.ne.s32.totalorder %s30, %s31
    %p43 = scmp.eq.s32.totalorder %s26, 1
    %p44 = por %p42, %p43
    %p46 = scmp.ne.s32.totalorder %s31, %s45
    %p47 = scmp.eq.s32.totalorder %s26, 0
    %p48 = por %p46, %p47
    %s50 = sadd.s32 %s49, 1
    %p53 = scmp.eq.s32.totalorder %s20, 1
    %p54 = scmp.ne.s32.totalorder %s49, %s51
    %p55 = scmp.eq.s32.totalorder %s20, 0
    %p56 = por %p54, %p55
    %p57 = scmp.ne.s32.totalorder %s49, %s51
    %p58 = scmp.eq.s32.totalorder %s25, 1
    %p59 = por %p57, %p58
    %p60 = scmp.ne.s32.totalorder %s51, %s52
    %p61 = scmp.eq.s32.totalorder %s25, 0
    %p62 = por %p60, %p61
    %p63 = scmp.ne.s32.totalorder %s51, %s52
    %p64 = scmp.eq.s32.totalorder %s26, 1
    %p65 = por %p63, %p64
    %p67 = scmp.ne.s32.totalorder %s52, %s66
    %p68 = scmp.eq.s32.totalorder %s26, 0
    %p69 = por %p67, %p68
    %s70 = ssub.s32 %s20, %s27
    %p71 = scmp.eq.s32.totalorder %s70, 0
    %s73 = sadd.s32 %s72, 1
    %s74 = scalar_select %p71, %s72, %s73
    %p77 = pneg %p71
    %p78 = scmp.eq.s32.totalorder %s20, 1
    %p79 = por %p77, %p78
    %p80 = scmp.ne.s32.totalorder %s72, %s75
    %p81 = scmp.eq.s32.totalorder %s20, 0
    %p82 = por %p80, %p81
    %p83 = scmp.ne.s32.totalorder %s72, %s75
    %p84 = scmp.eq.s32.totalorder %s25, 1
    %p85 = por %p83, %p84
    %p86 = scmp.ne.s32.totalorder %s75, %s76
    %p87 = scmp.eq.s32.totalorder %s25, 0
    %p88 = por %p86, %p87
    %p89 = scmp.ne.s32.totalorder %s75, %s76
    %p90 = scmp.eq.s32.totalorder %s26, 1
    %p91 = por %p89, %p90
    %p93 = scmp.ne.s32.totalorder %s76, %s92
    %p94 = scmp.eq.s32.totalorder %s26, 0
    %p95 = por %p93, %p94
    %s97 = sadd.s32 %s96, 1
    %p100 = scmp.eq.s32.totalorder %s20, 1
    %p101 = scmp.ne.s32.totalorder %s96, %s98
    %p102 = scmp.eq.s32.totalorder %s20, 0
    %p103 = por %p101, %p102
    %p104 = scmp.ne.s32.totalorder %s96, %s98
    %p105 = scmp.eq.s32.totalorder %s25, 1
    %p106 = por %p104, %p105
    %p107 = scmp.ne.s32.totalorder %s98, %s99
    %p108 = scmp.eq.s32.totalorder %s25, 0
    %p109 = por %p107, %p108
    %p110 = scmp.ne.s32.totalorder %s98, %s99
    %p111 = scmp.eq.s32.totalorder %s26, 1
    %p112 = por %p110, %p111
    %p114 = scmp.ne.s32.totalorder %s99, %s113
    %p115 = scmp.eq.s32.totalorder %s26, 0
    %p116 = por %p114, %p115
    %s118 = sadd.s32 %s117, 1
    %p121 = scmp.eq.s32.totalorder %s20, 1
    %p122 = scmp.ne.s32.totalorder %s117, %s119
    %p123 = scmp.eq.s32.totalorder %s20, 0
    %p124 = por %p122, %p123
    %p125 = scmp.ne.s32.totalorder %s117, %s119
    %p126 = scmp.eq.s32.totalorder %s25, 1
    %p127 = por %p125, %p126
    %p128 = scmp.ne.s32.totalorder %s119, %s120
    %p129 = scmp.eq.s32.totalorder %s25, 0
    %p130 = por %p128, %p129
    %p131 = scmp.ne.s32.totalorder %s119, %s120
    %p132 = scmp.eq.s32.totalorder %s26, 1
    %p133 = por %p131, %p132
    %p135 = scmp.ne.s32.totalorder %s120, %s134
    %p136 = scmp.eq.s32.totalorder %s26, 0
    %p137 = por %p135, %p136
    %s139 = sadd.s32 %s138, 1
    %p142 = scmp.eq.s32.totalorder %s20, 1
    %p143 = scmp.ne.s32.totalorder %s138, %s140
    %p144 = scmp.eq.s32.totalorder %s20, 0
    %p145 = por %p143, %p144
    %p146 = scmp.ne.s32.totalorder %s138, %s140
    %p147 = scmp.eq.s32.totalorder %s25, 1
    %p148 = por %p146, %p147
    %p149 = scmp.ne.s32.totalorder %s140, %s141
    %p150 = scmp.eq.s32.totalorder %s25, 0
    %p151 = por %p149, %p150
    %p152 = scmp.ne.s32.totalorder %s140, %s141
    %p153 = scmp.eq.s32.totalorder %s26, 1
    %p154 = por %p152, %p153
    %p156 = scmp.ne.s32.totalorder %s141, %s155
    %p157 = scmp.eq.s32.totalorder %s26, 0
    %p158 = por %p156, %p157
    %s160 = sadd.s32 %s159, 1
    %p163 = scmp.eq.s32.totalorder %s20, 1
    %p164 = scmp.ne.s32.totalorder %s159, %s161
    %p165 = scmp.eq.s32.totalorder %s20, 0
    %p166 = por %p164, %p165
    %p167 = scmp.ne.s32.totalorder %s159, %s161
    %p168 = scmp.eq.s32.totalorder %s25, 1
    %p169 = por %p167, %p168
    %p170 = scmp.ne.s32.totalorder %s161, %s162
    %p171 = scmp.eq.s32.totalorder %s25, 0
    %p172 = por %p170, %p171
    %p173 = scmp.ne.s32.totalorder %s161, %s162
    %p174 = scmp.eq.s32.totalorder %s26, 1
    %p175 = por %p173, %p174
    %p177 = scmp.ne.s32.totalorder %s162, %s176
    %p178 = scmp.eq.s32.totalorder %s26, 0
    %p179 = por %p177, %p178
    %s181 = sadd.s32 %s180, 1
    %p184 = scmp.eq.s32.totalorder %s20, 1
    %p185 = scmp.ne.s32.totalorder %s180, %s182
    %p186 = scmp.eq.s32.totalorder %s20, 0
    %p187 = por %p185, %p186
    %p188 = scmp.ne.s32.totalorder %s180, %s182
    %p189 = scmp.eq.s32.totalorder %s25, 1
    %p190 = por %p188, %p189
    %p191 = scmp.ne.s32.totalorder %s182, %s183
    %p192 = scmp.eq.s32.totalorder %s25, 0
    %p193 = por %p191, %p192
    %p194 = scmp.ne.s32.totalorder %s182, %s183
    %p195 = scmp.eq.s32.totalorder %s26, 1
    %p196 = por %p194, %p195
    %p198 = scmp.ne.s32.totalorder %s183, %s197
    %p199 = scmp.eq.s32.totalorder %s26, 0
    %p200 = por %p198, %p199
    %s202 = sadd.s32 %s201, 1
    %p205 = scmp.eq.s32.totalorder %s20, 1
    %p206 = scmp.ne.s32.totalorder %s201, %s203
    %p207 = scmp.eq.s32.totalorder %s20, 0
    %p208 = por %p206, %p207
    %p209 = scmp.ne.s32.totalorder %s201, %s203
    %p210 = scmp.eq.s32.totalorder %s25, 1
    %p211 = por %p209, %p210
    %p212 = scmp.ne.s32.totalorder %s203, %s204
    %p213 = scmp.eq.s32.totalorder %s25, 0
    %p214 = por %p212, %p213
    %p215 = scmp.ne.s32.totalorder %s203, %s204
    %p216 = scmp.eq.s32.totalorder %s26, 1
    %p217 = por %p215, %p216
    %p219 = scmp.ne.s32.totalorder %s204, %s218
    %p220 = scmp.eq.s32.totalorder %s26, 0
    %p221 = por %p219, %p220
    %s222 = ssub.s32 %s20, %s27
    %p223 = scmp.eq.s32.totalorder %s222, 0
    %s225 = sadd.s32 %s224, 1
    %s226 = scalar_select %p223, %s224, %s225
    %p229 = pneg %p223
    %p230 = scmp.eq.s32.totalorder %s20, 1
    %p231 = por %p229, %p230
    %p232 = scmp.ne.s32.totalorder %s224, %s227
    %p233 = scmp.eq.s32.totalorder %s20, 0
    %p234 = por %p232, %p233
    %p235 = scmp.ne.s32.totalorder %s224, %s227
    %p236 = scmp.eq.s32.totalorder %s25, 1
    %p237 = por %p235, %p236
    %p238 = scmp.ne.s32.totalorder %s227, %s228
    %p239 = scmp.eq.s32.totalorder %s25, 0
    %p240 = por %p238, %p239
    %p241 = scmp.ne.s32.totalorder %s227, %s228
    %p242 = scmp.eq.s32.totalorder %s26, 1
    %p243 = por %p241, %p242
    %p245 = scmp.ne.s32.totalorder %s228, %s244
    %p246 = scmp.eq.s32.totalorder %s26, 0
    %p247 = por %p245, %p246
    %s248 = ssub.s32 %s20, %s27
    %p249 = scmp.eq.s32.totalorder %s248, 0
    %s251 = sadd.s32 %s250, 1
    %s252 = scalar_select %p249, %s250, %s251
    %p255 = pneg %p249
    %p256 = scmp.eq.s32.totalorder %s20, 1
    %p257 = por %p255, %p256
    %p258 = scmp.ne.s32.totalorder %s250, %s253
    %p259 = scmp.eq.s32.totalorder %s20, 0
    %p260 = por %p258, %p259
    %p261 = scmp.ne.s32.totalorder %s250, %s253
    %p262 = scmp.eq.s32.totalorder %s25, 1
    %p263 = por %p261, %p262
    %p264 = scmp.ne.s32.totalorder %s253, %s254
    %p265 = scmp.eq.s32.totalorder %s25, 0
    %p266 = por %p264, %p265
    %p267 = scmp.ne.s32.totalorder %s253, %s254
    %p268 = scmp.eq.s32.totalorder %s26, 1
    %p269 = por %p267, %p268
    %p271 = scmp.ne.s32.totalorder %s254, %s270
    %p272 = scmp.eq.s32.totalorder %s26, 0
    %p273 = por %p271, %p272
    %s274 = ssub.s32 %s20, %s27
    %p275 = scmp.eq.s32.totalorder %s274, 0
    %s277 = sadd.s32 %s276, 1
    %s278 = scalar_select %p275, %s276, %s277
    %p281 = pneg %p275
    %p282 = scmp.eq.s32.totalorder %s20, 1
    %p283 = por %p281, %p282
    %p284 = scmp.ne.s32.totalorder %s276, %s279
    %p285 = scmp.eq.s32.totalorder %s20, 0
    %p286 = por %p284, %p285
    %p287 = scmp.ne.s32.totalorder %s276, %s279
    %p288 = scmp.eq.s32.totalorder %s25, 1
    %p289 = por %p287, %p288
    %p290 = scmp.ne.s32.totalorder %s279, %s280
    %p291 = scmp.eq.s32.totalorder %s25, 0
    %p292 = por %p290, %p291
    %p293 = scmp.ne.s32.totalorder %s279, %s280
    %p294 = scmp.eq.s32.totalorder %s26, 1
    %p295 = por %p293, %p294
    %p297 = scmp.ne.s32.totalorder %s280, %s296
    %p298 = scmp.eq.s32.totalorder %s26, 0
    %p299 = por %p297, %p298
    %s300 = ssub.s32 %s20, %s27
    %p301 = scmp.eq.s32.totalorder %s300, 0
    %s303 = sadd.s32 %s302, 1
    %s304 = scalar_select %p301, %s302, %s303
    %p307 = pneg %p301
    %p308 = scmp.eq.s32.totalorder %s20, 1
    %p309 = por %p307, %p308
    %p310 = scmp.ne.s32.totalorder %s302, %s305
    %p311 = scmp.eq.s32.totalorder %s20, 0
    %p312 = por %p310, %p311
    %p313 = scmp.ne.s32.totalorder %s302, %s305
    %p314 = scmp.eq.s32.totalorder %s25, 1
    %p315 = por %p313, %p314
    %p316 = scmp.ne.s32.totalorder %s305, %s306
    %p317 = scmp.eq.s32.totalorder %s25, 0
    %p318 = por %p316, %p317
    %p319 = scmp.ne.s32.totalorder %s305, %s306
    %p320 = scmp.eq.s32.totalorder %s26, 1
    %p321 = por %p319, %p320
    %p323 = scmp.ne.s32.totalorder %s306, %s322
    %p324 = scmp.eq.s32.totalorder %s26, 0
    %p325 = por %p323, %p324
    %s326 = ssub.s32 %s20, %s27
    %p327 = scmp.eq.s32.totalorder %s326, 0
    %s329 = sadd.s32 %s328, 1
    %s330 = scalar_select %p327, %s328, %s329
    %p333 = pneg %p327
    %p334 = scmp.eq.s32.totalorder %s20, 1
    %p335 = por %p333, %p334
    %p336 = scmp.ne.s32.totalorder %s328, %s331
    %p337 = scmp.eq.s32.totalorder %s20, 0
    %p338 = por %p336, %p337
    %p339 = scmp.ne.s32.totalorder %s328, %s331
    %p340 = scmp.eq.s32.totalorder %s25, 1
    %p341 = por %p339, %p340
    %p342 = scmp.ne.s32.totalorder %s331, %s332
    %p343 = scmp.eq.s32.totalorder %s25, 0
    %p344 = por %p342, %p343
    %p345 = scmp.ne.s32.totalorder %s331, %s332
    %p346 = scmp.eq.s32.totalorder %s26, 1
    %p347 = por %p345, %p346
    %p349 = scmp.ne.s32.totalorder %s332, %s348
    %p350 = scmp.eq.s32.totalorder %s26, 0
    %p351 = por %p349, %p350
    %p352 = scmp.le.s32.totalorder 1, %s20
    %p353 = scmp.lt.s32.totalorder %s20, 3
    %p354 = pnand %p352, %p353
    %p355 = pneg %p354
    // Predicated region
    $region9: #{gemma2_forward.11} parent=5 // pred_check
      _
    $region10: #{gemma2_forward.11} parent=5 // pred_check_branch
      %357 = sbr.rel (%p354) target = $region12
    $region11: #{gemma2_forward.11} parent=5 // pred_region
      %s358 = ssub.s32 %s20, 1
      // Predicated region
      $region13: #{gemma2_forward.11} parent=11 // pred_check
        %p359 = pneg %p41
      $region14: #{gemma2_forward.11} parent=11 // pred_check_branch
        %361 = sbr.rel (%p359) target = $region16
      $region15: #{gemma2_forward.11} parent=11 // pred_region
        _
      $region16: #{gemma2_forward.11} parent=11 // pred_fallthru
        _
      // Predicated region
      $region17: #{gemma2_forward.11} parent=11 // pred_check
        %p362 = pneg %p62
      $region18: #{gemma2_forward.11} parent=11 // pred_check_branch
        %364 = sbr.rel (%p362) target = $region20
      $region19: #{gemma2_forward.11} parent=11 // pred_region
        _
      $region20: #{gemma2_forward.11} parent=11 // pred_fallthru
        _
      // Predicated region
      $region21: #{gemma2_forward.11} parent=11 // pred_check
        %p365 = pneg %p109
      $region22: #{gemma2_forward.11} parent=11 // pred_check_branch
        %367 = sbr.rel (%p365) target = $region24
      $region23: #{gemma2_forward.11} parent=11 // pred_region
        _
      $region24: #{gemma2_forward.11} parent=11 // pred_fallthru
        _
      // Predicated region
      $region25: #{gemma2_forward.11} parent=11 // pred_check
        %p368 = pneg %p130
      $region26: #{gemma2_forward.11} parent=11 // pred_check_branch
        %370 = sbr.rel (%p368) target = $region28
      $region27: #{gemma2_forward.11} parent=11 // pred_region
        _
      $region28: #{gemma2_forward.11} parent=11 // pred_fallthru
        _
      // Predicated region
      $region29: #{gemma2_forward.11} parent=11 // pred_check
        %p371 = pneg %p151
      $region30: #{gemma2_forward.11} parent=11 // pred_check_branch
        %373 = sbr.rel (%p371) target = $region32
      $region31: #{gemma2_forward.11} parent=11 // pred_region
        _
      $region32: #{gemma2_forward.11} parent=11 // pred_fallthru
        _
      // Predicated region
      $region33: #{gemma2_forward.11} parent=11 // pred_check
        %p374 = pneg %p172
      $region34: #{gemma2_forward.11} parent=11 // pred_check_branch
        %376 = sbr.rel (%p374) target = $region36
      $region35: #{gemma2_forward.11} parent=11 // pred_region
        _
      $region36: #{gemma2_forward.11} parent=11 // pred_fallthru
        _
      // Predicated region
      $region37: #{gemma2_forward.11} parent=11 // pred_check
        %p377 = pneg %p193
      $region38: #{gemma2_forward.11} parent=11 // pred_check_branch
        %379 = sbr.rel (%p377) target = $region40
      $region39: #{gemma2_forward.11} parent=11 // pred_region
        _
      $region40: #{gemma2_forward.11} parent=11 // pred_fallthru
        _
      // Predicated region
      $region41: #{gemma2_forward.11} parent=11 // pred_check
        %p380 = pneg %p214
      $region42: #{gemma2_forward.11} parent=11 // pred_check_branch
        %382 = sbr.rel (%p380) target = $region44
      $region43: #{gemma2_forward.11} parent=11 // pred_region
        _
      $region44: #{gemma2_forward.11} parent=11 // pred_fallthru
        _
    $region12: #{gemma2_forward.11} parent=5 // pred_fallthru
      _
    %p383 = scmp.lt.s32.totalorder %s20, 2
    // Predicated region
    $region45: #{gemma2_forward.11} parent=5 // pred_check
      %p384 = pneg %p383
    $region46: #{gemma2_forward.11} parent=5 // pred_check_branch
      %386 = sbr.rel (%p384) target = $region48
    $region47: #{gemma2_forward.11} parent=5 // pred_region
      // Predicated region
      $region49: #{gemma2_forward.11} parent=47 // pred_check
        %p387 = pneg %p82
      $region50: #{gemma2_forward.11} parent=47 // pred_check_branch
        %389 = sbr.rel (%p387) target = $region52
      $region51: #{gemma2_forward.11} parent=47 // pred_region
        %p390 = scmp.lt.s32.totalorder %s20, 1
        %s391 = scalar_select %p390, %s20, 1
        %s392 = smul.addr %s391, 8
        %s393 = scalar_lea.vmem %s2, %s392
      $region52: #{gemma2_forward.11} parent=47 // pred_fallthru
        _
      // Predicated region
      $region53: #{gemma2_forward.11} parent=47 // pred_check
        %p394 = pneg %p234
      $region54: #{gemma2_forward.11} parent=47 // pred_check_branch
        %396 = sbr.rel (%p394) target = $region56
      $region55: #{gemma2_forward.11} parent=47 // pred_region
        %p397 = scmp.lt.s32.totalorder %s20, 1
        %s398 = scalar_select %p397, %s20, 1
        %s399 = smul.addr %s398, 4
        %s400 = smul.addr %s399, 8
        %s401 = scalar_lea.vmem %s9, %s400
      $region56: #{gemma2_forward.11} parent=47 // pred_fallthru
        _
      // Predicated region
      $region57: #{gemma2_forward.11} parent=47 // pred_check
        %p402 = pneg %p260
      $region58: #{gemma2_forward.11} parent=47 // pred_check_branch
        %404 = sbr.rel (%p402) target = $region60
      $region59: #{gemma2_forward.11} parent=47 // pred_region
        %p405 = scmp.lt.s32.totalorder %s20, 1
        %s406 = scalar_select %p405, %s20, 1
        %s407 = smul.addr %s406, 4
        %s408 = smul.addr %s407, 8
        %s409 = scalar_lea.vmem %s10, %s408
      $region60: #{gemma2_forward.11} parent=47 // pred_fallthru
        _
    $region48: #{gemma2_forward.11} parent=5 // pred_fallthru
      _
    %p410 = scmp.le.s32.totalorder 1, %s20
    %p411 = scmp.lt.s32.totalorder %s20, 3
    %p412 = pnand %p410, %p411
    %p413 = pneg %p412
    // Predicated region
    $region61: #{gemma2_forward.11} parent=5 // pred_check
      _
    $region62: #{gemma2_forward.11} parent=5 // pred_check_branch
      %415 = sbr.rel (%p412) target = $region64
    $region63: #{gemma2_forward.11} parent=5 // pred_region
      %s416 = ssub.s32 %s20, 1
      %p417 = pneg %p41
      %p418 = pneg %p38
      %p419 = pneg %p62
      %p420 = pneg %p59
      %p421 = scmp.lt.s32.totalorder %s25, 1
      %s422 = scalar_select %p421, %s25, 1
      %s423 = smul.addr %s422, 8
      %s424 = scalar_lea.vmem %s2, %s423
      %p425 = pneg %p88
      %p426 = pneg %p85
      %p427 = pneg %p109
      %p428 = pneg %p106
      %p429 = pneg %p130
      %p430 = pneg %p127
      %p431 = pneg %p151
      %p432 = pneg %p148
      %p433 = pneg %p172
      %p434 = pneg %p169
      %p435 = pneg %p193
      %p436 = pneg %p190
      %p437 = pneg %p214
      %p438 = pneg %p211
      %p439 = scmp.lt.s32.totalorder %s25, 1
      %s440 = scalar_select %p439, %s25, 1
      %s441 = smul.addr %s440, 4
      %s442 = smul.addr %s441, 8
      %s443 = scalar_lea.vmem %s9, %s442
      %p444 = pneg %p240
      %p445 = pneg %p237
      %p446 = scmp.lt.s32.totalorder %s25, 1
      %s447 = scalar_select %p446, %s25, 1
      %s448 = smul.addr %s447, 4
      %s449 = smul.addr %s448, 8
      %s450 = scalar_lea.vmem %s10, %s449
      %p451 = pneg %p266
      %p452 = pneg %p263
      %p453 = pneg %p292
      %p454 = pneg %p289
      %p455 = scmp.lt.s32.totalorder %s25, 1
      %s456 = scalar_select %p455, %s25, 1
      %s457 = smul.addr %s456, 8
      %s458 = scalar_lea.vmem %s11, %s457
      %p459 = pneg %p318
      %p460 = pneg %p315
      %p461 = scmp.lt.s32.totalorder %s25, 1
      %s462 = scalar_select %p461, %s25, 1
      %s463 = smul.addr %s462, 4
      %s464 = smul.addr %s463, 8
      %s465 = scalar_lea.vmem %s12, %s464
      %p466 = pneg %p344
      %p467 = pneg %p341
      %p468 = scmp.lt.s32.totalorder %s25, 1
      %s469 = scalar_select %p468, %s25, 1
      %s470 = smul.addr %s469, 4
      %s471 = smul.addr %s470, 8
      %s472 = scalar_lea.vmem %s13, %s471
      %p473 = scmp.lt.s32.totalorder %s25, 1
      %s474 = scalar_select %p473, %s25, 1
      %s475 = smul.addr %s474, 8
      %s476 = scalar_lea.vmem %s2, %s475
      %p477 = scmp.lt.s32.totalorder %s25, 1
      %s478 = scalar_select %p477, %s25, 1
      %s479 = smul.addr %s478, 4
      %s480 = smul.addr %s479, 8
      %s481 = scalar_lea.vmem %s9, %s480
      %p482 = scmp.lt.s32.totalorder %s25, 1
      %s483 = scalar_select %p482, %s25, 1
      %s484 = smul.addr %s483, 4
      %s485 = smul.addr %s484, 8
      %s486 = scalar_lea.vmem %s10, %s485
      %p487 = scmp.lt.s32.totalorder %s25, 1
      %s488 = scalar_select %p487, %s25, 1
      %s489 = smul.addr %s488, 8
      %s490 = scalar_lea.vmem %s11, %s489
      %p491 = scmp.lt.s32.totalorder %s25, 1
      %s492 = scalar_select %p491, %s25, 1
      %s493 = smul.addr %s492, 4
      %s494 = smul.addr %s493, 8
      %s495 = scalar_lea.vmem %s12, %s494
      %p496 = scmp.lt.s32.totalorder %s25, 1
      %s497 = scalar_select %p496, %s25, 1
      %s498 = smul.addr %s497, 4
      %s499 = smul.addr %s498, 8
      %s500 = scalar_lea.vmem %s13, %s499
      %v502 = vld [vmem:[%s476] sm:$0xff]
      %v503 = vld [vmem:[%s7] sm:$0x1]
      %v504 = vmul.f32 %v502, %v502
      %505 = vadd.xlane.f32.xlu0 %v504
      %v506 = vpop.xlane.xlu0 %505
      %v507 = vrcp.pop 128.0
      %v508 = vmul.f32 %v506, %v507
      %v509 = vadd.f32 %v508, 1e-06
      %v510 = vrsqrt.pop %v509
      %v511 = vmul.f32 %v502, %v510
      %v512 = vadd.f32 %v503, 1.0
      %v514 = vlaneseq
      %v515 = vshrl.u32 %v514, 7
      %v516 = vsub.s32 0, %v515
      %v517 = vrot.slane %v512, %v516
      %v519 = vmul.f32 %v511, %v517
      %v520 = vpack.c.bf16 %v519, %v519
      %v521 = vld [vmem:[%s5] sm:$0xff]
      %v522 = vld [vmem:[%s5 + $0x8] sm:$0xff]
      %v523 = vld [vmem:[%s5 + $0x10] sm:$0xff]
      %v524 = vld [vmem:[%s5 + $0x18] sm:$0xff]
      %v525 = vld [vmem:[%s5 + $0x20] sm:$0xff]
      %v526 = vld [vmem:[%s5 + $0x28] sm:$0xff]
      %v527 = vld [vmem:[%s5 + $0x30] sm:$0xff]
      %v528 = vld [vmem:[%s5 + $0x38] sm:$0xff]
      %v529 = vld [vmem:[%s5 + $0x40] sm:$0xff]
      %v530 = vld [vmem:[%s5 + $0x48] sm:$0xff]
      %v531 = vld [vmem:[%s5 + $0x50] sm:$0xff]
      %v532 = vld [vmem:[%s5 + $0x58] sm:$0xff]
      %v533 = vld [vmem:[%s5 + $0x60] sm:$0xff]
      %v534 = vld [vmem:[%s5 + $0x68] sm:$0xff]
      %v535 = vld [vmem:[%s5 + $0x70] sm:$0xff]
      %v536 = vld [vmem:[%s5 + $0x78] sm:$0xff]
      %v553 = vunpack.c.l.b16 %v521
      %v554 = vunpack.c.h.b16 %v521
      %v555 = vunpack.c.l.b16 %v522
      %v556 = vunpack.c.h.b16 %v522
      %v557 = vunpack.c.l.b16 %v523
      %v558 = vunpack.c.h.b16 %v523
      %v559 = vunpack.c.l.b16 %v524
      %v560 = vunpack.c.h.b16 %v524
      %v561 = vunpack.c.l.b16 %v525
      %v562 = vunpack.c.h.b16 %v525
      %v563 = vunpack.c.l.b16 %v526
      %v564 = vunpack.c.h.b16 %v526
      %v565 = vunpack.c.l.b16 %v527
      %v566 = vunpack.c.h.b16 %v527
      %v567 = vunpack.c.l.b16 %v528
      %v568 = vunpack.c.h.b16 %v528
      %v569 = vunpack.c.l.b16 %v529
      %v570 = vunpack.c.h.b16 %v529
      %v571 = vunpack.c.l.b16 %v530
      %v572 = vunpack.c.h.b16 %v530
      %v573 = vunpack.c.l.b16 %v531
      %v574 = vunpack.c.h.b16 %v531
      %v575 = vunpack.c.l.b16 %v532
      %v576 = vunpack.c.h.b16 %v532
      %v577 = vunpack.c.l.b16 %v533
      %v578 = vunpack.c.h.b16 %v533
      %v579 = vunpack.c.l.b16 %v534
      %v580 = vunpack.c.h.b16 %v534
      %v581 = vunpack.c.l.b16 %v535
      %v582 = vunpack.c.h.b16 %v535
      %v583 = vunpack.c.l.b16 %v536
      %v584 = vunpack.c.h.b16 %v536
      %v585 = vpack.c.b16 %v555, %v553
      %v586 = vpack.c.b16 %v556, %v554
      %v587 = vpack.c.b16 %v559, %v557
      %v588 = vpack.c.b16 %v560, %v558
      %v589 = vpack.c.b16 %v563, %v561
      %v590 = vpack.c.b16 %v564, %v562
      %v591 = vpack.c.b16 %v567, %v565
      %v592 = vpack.c.b16 %v568, %v566
      %v593 = vpack.c.b16 %v571, %v569
      %v594 = vpack.c.b16 %v572, %v570
      %v595 = vpack.c.b16 %v575, %v573
      %v596 = vpack.c.b16 %v576, %v574
      %v597 = vpack.c.b16 %v579, %v577
      %v598 = vpack.c.b16 %v580, %v578
      %v599 = vpack.c.b16 %v583, %v581
      %v600 = vpack.c.b16 %v584, %v582
      %617 = vmatprep.subr.bf16.mxu0 %v586
      %618 = vmatpush1.bf16.msra.mxu0 %v585
      %619 = vmatprep.subr.bf16.mxu0 %v588
      %620 = vmatpush1.bf16.msra.mxu0 %v587
      %621 = vmatprep.subr.bf16.mxu0 %v590
      %622 = vmatpush1.bf16.msra.mxu0 %v589
      %623 = vmatprep.subr.bf16.mxu0 %v592
      %624 = vmatpush1.bf16.msra.mxu0 %v591
      %625 = vmatprep.subr.bf16.mxu0 %v594
      %626 = vmatpush1.bf16.msra.mxu0 %v593
      %627 = vmatprep.subr.bf16.mxu0 %v596
      %628 = vmatpush1.bf16.msra.mxu0 %v595
      %629 = vmatprep.subr.bf16.mxu0 %v598
      %630 = vmatpush1.bf16.msra.mxu0 %v597
      %631 = vmatprep.subr.bf16.mxu0 %v600
      %632 = vmatpush1.bf16.msra.mxu0 %v599
      %633 = vmatprep.subr.bf16.mxu0 0
      %634 = vmatpush1.bf16.msra.mxu0 0
      %635 = vmatprep.subr.bf16.mxu0 0
      %636 = vmatpush1.bf16.msra.mxu0 0
      %637 = vmatprep.subr.bf16.mxu0 0
      %638 = vmatpush1.bf16.msra.mxu0 0
      %639 = vmatprep.subr.bf16.mxu0 0
      %640 = vmatpush1.bf16.msra.mxu0 0
      %641 = vmatprep.subr.bf16.mxu0 0
      %642 = vmatpush1.bf16.msra.mxu0 0
      %643 = vmatprep.subr.bf16.mxu0 0
      %644 = vmatpush1.bf16.msra.mxu0 0
      %645 = vmatprep.subr.bf16.mxu0 0
      %646 = vmatpush1.bf16.msra.mxu0 0
      %647 = vmatprep.subr.bf16.mxu0 0
      %648 = vmatpush1.bf16.msra.mxu0 0
      %649 = vmatprep.mubr.bf16.mxu0 0
      %650 = vmatmul.mubr.bf16.gmra.mrb[0].mxu0 %v520
      %v651 = vpop.f32.mrb[0].mxu0
      %v652 = vadd.f32 0.0, %v651
      %v653 = vpop.f32.mrb[0].mxu0
      %v654 = vadd.f32 0.0, %v653
      %v655 = vpop.f32.mrb[0].mxu0
      %v656 = vpop.f32.mrb[0].mxu0
      %657 = vdwg.mxu0
      %v658 = vld [vmem:[%s3] sm:$0xff]
      %v659 = vld [vmem:[%s4] sm:$0xff]
      %v660 = vmul.f32 %v652, %v658
      %662 = vrot.lane.b32.xlu0 %v659, 16
      %v663 = vpop.permute.xlu0 %662
      %v665 = vmul.f32 %v652, %v663
      %667 = vrot.lane.b32.xlu0 %v665, 112
      %v668 = vpop.permute.xlu0 %667
      %v670 = vsub.f32 %v660, %v668
      %v671 = vmul.f32 %v652, %v659
      %673 = vrot.lane.b32.xlu0 %v658, 16
      %v674 = vpop.permute.xlu0 %673
      %v676 = vmul.f32 %v652, %v674
      %678 = vrot.lane.b32.xlu0 %v676, 112
      %v679 = vpop.permute.xlu0 %678
      %v681 = vadd.f32 %v671, %v679
      %683 = vrot.lane.b32.xlu0 %v681, 16
      %v684 = vpop.permute.xlu0 %683
      %vm686 = vcmask 130048
      %v687 = vsel %vm686, %v670, %v684
      %688 = vrot.lane.b32.xlu0 %v658, 32
      %v689 = vpop.permute.xlu0 %688
      %v691 = vmul.f32 %v652, %v689
      %692 = vrot.lane.b32.xlu0 %v659, 48
      %v693 = vpop.permute.xlu0 %692
      %v695 = vmul.f32 %v652, %v693
      %697 = vrot.lane.b32.xlu0 %v695, 112
      %v698 = vpop.permute.xlu0 %697
      %v700 = vsub.f32 %v691, %v698
      %701 = vrot.lane.b32.xlu0 %v659, 32
      %v702 = vpop.permute.xlu0 %701
      %v704 = vmul.f32 %v652, %v702
      %705 = vrot.lane.b32.xlu0 %v658, 48
      %v706 = vpop.permute.xlu0 %705
      %v708 = vmul.f32 %v652, %v706
      %710 = vrot.lane.b32.xlu0 %v708, 112
      %v711 = vpop.permute.xlu0 %710
      %v713 = vadd.f32 %v704, %v711
      %715 = vrot.lane.b32.xlu0 %v700, 96
      %v716 = vpop.permute.xlu0 %715
      %719 = vrot.lane.b32.xlu0 %v713, 112
      %v720 = vpop.permute.xlu0 %719
      %v722 = vsel %vm686, %v716, %v720
      %723 = vrot.lane.b32.xlu0 %v658, 64
      %v724 = vpop.permute.xlu0 %723
      %v726 = vmul.f32 %v652, %v724
      %727 = vrot.lane.b32.xlu0 %v659, 80
      %v728 = vpop.permute.xlu0 %727
      %v730 = vmul.f32 %v652, %v728
      %732 = vrot.lane.b32.xlu0 %v730, 112
      %v733 = vpop.permute.xlu0 %732
      %v735 = vsub.f32 %v726, %v733
      %736 = vrot.lane.b32.xlu0 %v659, 64
      %v737 = vpop.permute.xlu0 %736
      %v739 = vmul.f32 %v652, %v737
      %740 = vrot.lane.b32.xlu0 %v658, 80
      %v741 = vpop.permute.xlu0 %740
      %v743 = vmul.f32 %v652, %v741
      %745 = vrot.lane.b32.xlu0 %v743, 112
      %v746 = vpop.permute.xlu0 %745
      %v748 = vadd.f32 %v739, %v746
      %750 = vrot.lane.b32.xlu0 %v735, 64
      %v751 = vpop.permute.xlu0 %750
      %754 = vrot.lane.b32.xlu0 %v748, 80
      %v755 = vpop.permute.xlu0 %754
      %v757 = vsel %vm686, %v751, %v755
      %758 = vrot.lane.b32.xlu0 %v658, 96
      %v759 = vpop.permute.xlu0 %758
      %v761 = vmul.f32 %v652, %v759
      %762 = vrot.lane.b32.xlu0 %v659, 112
      %v763 = vpop.permute.xlu0 %762
      %v765 = vmul.f32 %v652, %v763
      %767 = vrot.lane.b32.xlu0 %v765, 112
      %v768 = vpop.permute.xlu0 %767
      %v770 = vsub.f32 %v761, %v768
      %771 = vrot.lane.b32.xlu0 %v659, 96
      %v772 = vpop.permute.xlu0 %771
      %v774 = vmul.f32 %v652, %v772
      %775 = vrot.lane.b32.xlu0 %v658, 112
      %v776 = vpop.permute.xlu0 %775
      %v778 = vmul.f32 %v652, %v776
      %780 = vrot.lane.b32.xlu0 %v778, 112
      %v781 = vpop.permute.xlu0 %780
      %v783 = vadd.f32 %v774, %v781
      %785 = vrot.lane.b32.xlu0 %v770, 32
      %v786 = vpop.permute.xlu0 %785
      %789 = vrot.lane.b32.xlu0 %v783, 48
      %v790 = vpop.permute.xlu0 %789
      %v792 = vsel %vm686, %v786, %v790
      %v793 = vmul.f32 %v654, %v658
      %v794 = vmul.f32 %v654, %v663
      %796 = vrot.lane.b32.xlu0 %v794, 112
      %v797 = vpop.permute.xlu0 %796
      %v799 = vsub.f32 %v793, %v797
      %v800 = vmul.f32 %v654, %v659
      %v801 = vmul.f32 %v654, %v674
      %803 = vrot.lane.b32.xlu0 %v801, 112
      %v804 = vpop.permute.xlu0 %803
      %v806 = vadd.f32 %v800, %v804
      %808 = vrot.lane.b32.xlu0 %v806, 16
      %v809 = vpop.permute.xlu0 %808
      %v811 = vsel %vm686, %v799, %v809
      %v812 = vmul.f32 %v654, %v689
      %v813 = vmul.f32 %v654, %v693
      %815 = vrot.lane.b32.xlu0 %v813, 112
      %v816 = vpop.permute.xlu0 %815
      %v818 = vsub.f32 %v812, %v816
      %v819 = vmul.f32 %v654, %v702
      %v820 = vmul.f32 %v654, %v706
      %822 = vrot.lane.b32.xlu0 %v820, 112
      %v823 = vpop.permute.xlu0 %822
      %v825 = vadd.f32 %v819, %v823
      %827 = vrot.lane.b32.xlu0 %v818, 96
      %v828 = vpop.permute.xlu0 %827
      %831 = vrot.lane.b32.xlu0 %v825, 112
      %v832 = vpop.permute.xlu0 %831
      %v834 = vsel %vm686, %v828, %v832
      %v835 = vld [vmem:[%s0] sm:$0xff]
      %v836 = vld [vmem:[%s1] sm:$0x1]
      %v837 = vlaneseq
      %v838 = vshrl.u32 %v837, 7
      %v839 = vadd.s32 %v838, 8
      %v840 = vlaneseq
      %v841 = vshrl.u32 %v840, 7
      %v842 = vsub.s32 0, %v841
      %v843 = vrot.slane %v836, %v842
      %vm844 = vcmp.eq.s32.totalorder %v838, %v843
      %vm845 = vcmp.eq.s32.totalorder %v839, %v843
      %v846 = vsel %vm844, 1, 0
      %v847 = vsel %vm845, 1, 0
      %v848 = vcvt.s32.f32 %v846
      %v849 = vcvt.s32.f32 %v847
      %vm850 = vcmask 64512
      %v851 = vsel %vm850, %v848, 0.0
      %852 = vadd.xlane.f32.xlu0 %v851
      %v853 = vpop.xlane.xlu0 %852
      %v854 = vsel %vm850, %v849, 0.0
      %855 = vadd.xlane.f32.xlu0 %v854
      %v856 = vpop.xlane.xlu0 %855
      %v857 = vlaneseq
      %v858 = vand.u32 %v857, 127
      %859 = vset.pattern.permute.xlu0 0
      %860 = vperm.xlu0 %859, %v835
      %v861 = vpop.permute.xlu0 %860
      %vm862 = vcmp.le.s32.totalorder %v858, %v861
      %v863 = vsel %vm862, 0.0, -2.3819763e+38
      %v865 = vsel %vm850, %v848, 0
      %v868 = vsel %vm850, %v849, 0
      %870 = vmatprep.subr.mxu0 0.0
      %871 = vmatpush1.msra.mxu0 %v811
      %872 = vmatprep.subr.mxu0 0.0
      %873 = vmatpush1.msra.mxu0 0.0
      %874 = vmatprep.subr.mxu0 0.0
      %875 = vmatpush1.msra.mxu0 0.0
      %876 = vmatprep.subr.mxu0 0.0
      %877 = vmatpush1.msra.mxu0 0.0
      %878 = vmatprep.subr.mxu0 0.0
      %879 = vmatpush1.msra.mxu0 0.0
      %880 = vmatprep.subr.mxu0 0.0
      %881 = vmatpush1.msra.mxu0 0.0
      %882 = vmatprep.subr.mxu0 0.0
      %883 = vmatpush1.msra.mxu0 0.0
      %884 = vmatprep.subr.mxu0 0.0
      %885 = vmatpush1.msra.mxu0 0.0
      %886 = vmatprep.subr.mxu0 0.0
      %887 = vmatpush1.msra.mxu0 0.0
      %888 = vmatprep.subr.mxu0 0.0
      %889 = vmatpush1.msra.mxu0 0.0
      %890 = vmatprep.subr.mxu0 0.0
      %891 = vmatpush1.msra.mxu0 0.0
      %892 = vmatprep.subr.mxu0 0.0
      %893 = vmatpush1.msra.mxu0 0.0
      %894 = vmatprep.subr.mxu0 0.0
      %895 = vmatpush1.msra.mxu0 0.0
      %896 = vmatprep.subr.mxu0 0.0
      %897 = vmatpush1.msra.mxu0 0.0
      %898 = vmatprep.subr.mxu0 0.0
      %899 = vmatpush1.msra.mxu0 0.0
      %900 = vmatprep.subr.mxu0 0.0
      %901 = vmatpush1.msra.mxu0 0.0
      %902 = vmatprep.subr.mxu0 0.0
      %903 = vmatpush1.msra.mxu0 0.0
      %904 = vmatprep.subr.mxu0 0.0
      %905 = vmatpush1.msra.mxu0 0.0
      %906 = vmatprep.subr.mxu0 0.0
      %907 = vmatpush1.msra.mxu0 0.0
      %908 = vmatprep.subr.mxu0 0.0
      %909 = vmatpush1.msra.mxu0 0.0
      %910 = vmatprep.subr.mxu0 0.0
      %911 = vmatpush1.msra.mxu0 0.0
      %912 = vmatprep.subr.mxu0 0.0
      %913 = vmatpush1.msra.mxu0 0.0
      %914 = vmatprep.subr.mxu0 0.0
      %915 = vmatpush1.msra.mxu0 0.0
      %916 = vmatprep.subr.mxu0 0.0
      %917 = vmatpush1.msra.mxu0 0.0
      %918 = vmatprep.subr.mxu0 0.0
      %919 = vmatpush1.msra.mxu0 0.0
      %920 = vmatprep.subr.mxu0 0.0
      %921 = vmatpush1.msra.mxu0 0.0
      %922 = vmatprep.subr.mxu0 0.0
      %923 = vmatpush1.msra.mxu0 0.0
      %924 = vmatprep.subr.mxu0 0.0
      %925 = vmatpush1.msra.mxu0 0.0
      %926 = vmatprep.subr.mxu0 0.0
      %927 = vmatpush1.msra.mxu0 0.0
      %928 = vmatprep.subr.mxu0 0.0
      %929 = vmatpush1.msra.mxu0 0.0
      %930 = vmatprep.subr.mxu0 0.0
      %931 = vmatpush1.msra.mxu0 0.0
      %932 = vmatprep.subr.mxu0 0.0
      %933 = vmatpush1.msra.mxu0 0.0
      %934 = vmatprep.mubr.f32.mxu0 0.0
      %935 = vmatmul.mubr.f32.gmra.mrb[0].mxu0 %v865
      %v936 = vpop.f32.mrb[0].mxu0
      %v937 = vadd.f32 0.0, %v936
      %v938 = vpop.f32.mrb[0].mxu0
      %939 = vmatprep.mubr.f32.mxu0 0.0
      %940 = vmatmul.mubr.f32.gmra.mrb[0].mxu0 %v868
      %v941 = vpop.f32.mrb[0].mxu0
      %v942 = vadd.f32 0.0, %v941
      %v943 = vpop.f32.mrb[0].mxu0
      %944 = vdwg.mxu0
      %946 = vrot.lane.b32.xlu0 %v654, 64
      %v947 = vpop.permute.xlu0 %946
      %949 = vmatprep.subr.mxu0 0.0
      %950 = vmatpush1.msra.mxu0 %v947
      %951 = vmatprep.subr.mxu0 0.0
      %952 = vmatpush1.msra.mxu0 0.0
      %953 = vmatprep.subr.mxu0 0.0
      %954 = vmatpush1.msra.mxu0 0.0
      %955 = vmatprep.subr.mxu0 0.0
      %956 = vmatpush1.msra.mxu0 0.0
      %957 = vmatprep.subr.mxu0 0.0
      %958 = vmatpush1.msra.mxu0 0.0
      %959 = vmatprep.subr.mxu0 0.0
      %960 = vmatpush1.msra.mxu0 0.0
      %961 = vmatprep.subr.mxu0 0.0
      %962 = vmatpush1.msra.mxu0 0.0
      %963 = vmatprep.subr.mxu0 0.0
      %964 = vmatpush1.msra.mxu0 0.0
      %965 = vmatprep.subr.mxu0 0.0
      %966 = vmatpush1.msra.mxu0 0.0
      %967 = vmatprep.subr.mxu0 0.0
      %968 = vmatpush1.msra.mxu0 0.0
      %969 = vmatprep.subr.mxu0 0.0
      %970 = vmatpush1.msra.mxu0 0.0
      %971 = vmatprep.subr.mxu0 0.0
      %972 = vmatpush1.msra.mxu0 0.0
      %973 = vmatprep.subr.mxu0 0.0
      %974 = vmatpush1.msra.mxu0 0.0
      %975 = vmatprep.subr.mxu0 0.0
      %976 = vmatpush1.msra.mxu0 0.0
      %977 = vmatprep.subr.mxu0 0.0
      %978 = vmatpush1.msra.mxu0 0.0
      %979 = vmatprep.subr.mxu0 0.0
      %980 = vmatpush1.msra.mxu0 0.0
      %981 = vmatprep.subr.mxu0 0.0
      %982 = vmatpush1.msra.mxu0 0.0
      %983 = vmatprep.subr.mxu0 0.0
      %984 = vmatpush1.msra.mxu0 0.0
      %985 = vmatprep.subr.mxu0 0.0
      %986 = vmatpush1.msra.mxu0 0.0
      %987 = vmatprep.subr.mxu0 0.0
      %988 = vmatpush1.msra.mxu0 0.0
      %989 = vmatprep.subr.mxu0 0.0
      %990 = vmatpush1.msra.mxu0 0.0
      %991 = vmatprep.subr.mxu0 0.0
      %992 = vmatpush1.msra.mxu0 0.0
      %993 = vmatprep.subr.mxu0 0.0
      %994 = vmatpush1.msra.mxu0 0.0
      %995 = vmatprep.subr.mxu0 0.0
      %996 = vmatpush1.msra.mxu0 0.0
      %997 = vmatprep.subr.mxu0 0.0
      %998 = vmatpush1.msra.mxu0 0.0
      %999 = vmatprep.subr.mxu0 0.0
      %1000 = vmatpush1.msra.mxu0 0.0
      %1001 = vmatprep.subr.mxu0 0.0
      %1002 = vmatpush1.msra.mxu0 0.0
      %1003 = vmatprep.subr.mxu0 0.0
      %1004 = vmatpush1.msra.mxu0 0.0
      %1005 = vmatprep.subr.mxu0 0.0
      %1006 = vmatpush1.msra.mxu0 0.0
      %1007 = vmatprep.subr.mxu0 0.0
      %1008 = vmatpush1.msra.mxu0 0.0
      %1009 = vmatprep.subr.mxu0 0.0
      %1010 = vmatpush1.msra.mxu0 0.0
      %1011 = vmatprep.subr.mxu0 0.0
      %1012 = vmatpush1.msra.mxu0 0.0
      %1013 = vmatprep.mubr.f32.mxu0 0.0
      %1014 = vmatmul.mubr.f32.gmra.mrb[0].mxu0 %v865
      %v1015 = vpop.f32.mrb[0].mxu0
      %v1016 = vadd.f32 0.0, %v1015
      %v1017 = vpop.f32.mrb[0].mxu0
      %1018 = vmatprep.mubr.f32.mxu0 0.0
      %1019 = vmatmul.mubr.f32.gmra.mrb[0].mxu0 %v868
      %v1020 = vpop.f32.mrb[0].mxu0
      %v1021 = vadd.f32 0.0, %v1020
      %v1022 = vpop.f32.mrb[0].mxu0
      %1023 = vdwg.mxu0
      %vm1024 = vcmp.gt.f32.partialorder %v853, 0.5
      %vm1025 = vcmp.gt.f32.partialorder %v856, 0.5
      %v1026 = vld [vmem:[%s481] sm:$0xff]
      %v1027 = vld [vmem:[%s481 + $0x8] sm:$0xff]
      %v1028 = vsel %vm1024, 1, 0
      %v1029 = vsel %vm1025, 1, 0
      %vm1030 = vcmp.eq.s32.totalorder %v1028, 1
      %vm1031 = vcmp.eq.s32.totalorder %v1029, 1
      %v1032 = vsel %vm1030, %v937, %v1026
      %v1033 = vsel %vm1031, %v942, %v1027
      %v1034 = vld [vmem:[%s486] sm:$0xff]
      %v1035 = vld [vmem:[%s486 + $0x8] sm:$0xff]
      %v1036 = vsel %vm1030, %v1016, %v1034
      %v1037 = vsel %vm1031, %v1021, %v1035
      %vm1038 = vcmask 261120
      %1039 = vst.msk [vmem:[%s495] sm:$0xff] %vm1038, %v1032
      %1040 = vst.msk [vmem:[%s495 + $0x8] sm:$0xff] %vm1038, %v1033
      %1041 = vst.msk [vmem:[%s500] sm:$0xff] %vm1038, %v1036
      %1042 = vst.msk [vmem:[%s500 + $0x8] sm:$0xff] %vm1038, %v1037
      %v1043 = vpack.c.bf16 %v722, %v687
      %v1044 = vpack.c.bf16 %v1033, %v1032
      %v1046 = vsel %vm1038, %v1043, 0
      %v1049 = vsel %vm1038, %v1044, 0
      %1051 = vmatprep.subr.bf16.mxu0 0
      %1052 = vmatpush1.bf16.xpose.msra.mxu0 %v1049
      %1053 = vmatprep.subr.bf16.mxu0 0
      %1054 = vmatpush1.bf16.xpose.msra.mxu0 0
      %1055 = vmatprep.subr.bf16.mxu0 0
      %1056 = vmatpush1.bf16.xpose.msra.mxu0 0
      %1057 = vmatprep.subr.bf16.mxu0 0
      %1058 = vmatpush1.bf16.xpose.msra.mxu0 0
      %1059 = vmatprep.subr.bf16.mxu0 0
      %1060 = vmatpush1.bf16.xpose.msra.mxu0 0
      %1061 = vmatprep.subr.bf16.mxu0 0
      %1062 = vmatpush1.bf16.xpose.msra.mxu0 0
      %1063 = vmatprep.subr.bf16.mxu0 0
      %1064 = vmatpush1.bf16.xpose.msra.mxu0 0
      %1065 = vmatprep.subr.bf16.mxu0 0
      %1066 = vmatpush1.bf16.xpose.msra.mxu0 0
      %1067 = vmatprep.subr.bf16.mxu0 0
      %1068 = vmatpush1.bf16.xpose.msra.mxu0 0
      %1069 = vmatprep.subr.bf16.mxu0 0
      %1070 = vmatpush1.bf16.xpose.msra.mxu0 0
      %1071 = vmatprep.subr.bf16.mxu0 0
      %1072 = vmatpush1.bf16.xpose.msra.mxu0 0
      %1073 = vmatprep.subr.bf16.mxu0 0
      %1074 = vmatpush1.bf16.xpose.msra.mxu0 0
      %1075 = vmatprep.subr.bf16.mxu0 0
      %1076 = vmatpush1.bf16.xpose.msra.mxu0 0
      %1077 = vmatprep.subr.bf16.mxu0 0
      %1078 = vmatpush1.bf16.xpose.msra.mxu0 0
      %1079 = vmatprep.subr.bf16.mxu0 0
      %1080 = vmatpush1.bf16.xpose.msra.mxu0 0
      %1081 = vmatprep.subr.bf16.mxu0 0
      %1082 = vmatpush1.bf16.xpose.msra.mxu0 0
      %1083 = vmatprep.mubr.bf16.mxu0 0
      %1084 = vmatmul.mubr.bf16.gmra.mrb[0].mxu0 %v1046
      %v1085 = vpop.f32.mrb[0].mxu0
      %v1086 = vadd.f32 0.0, %v1085
      %v1087 = vpop.f32.mrb[0].mxu0
      %v1088 = vpop.f32.mrb[0].mxu0
      %v1089 = vadd.f32 0.0, %v1088
      %v1090 = vpop.f32.mrb[0].mxu0
      %1091 = vdwg.mxu0
      %v1092 = vmul.f32 %v1086, 0.17677669
      %v1093 = vmul.f32 %v1089, 0.17677669
      %v1094 = vmul.f32 %v1092, 0.02
      %v1095 = vmul.f32 %v1093, 0.02
      %v1096 = vtanh.pop %v1094
      %v1097 = vtanh.pop %v1095
      %v1098 = vmul.f32 %v1096, 50.0
      %v1099 = vmul.f32 %v1097, 50.0
      %v1100 = vadd.f32 %v1098, %v863
      %v1101 = vadd.f32 %v1099, %v863
      %v1102 = vsel %vm686, %v1100, -inf
      %1103 = vmax.xlane.f32.xlu0 %v1102
      %v1104 = vpop.xlane.xlu0 %1103
      %v1105 = vsel %vm686, %v1101, -inf
      %1106 = vmax.xlane.f32.xlu0 %v1105
      %v1107 = vpop.xlane.xlu0 %1106
      %v1108 = vsub.f32 %v1100, %v1104
      %v1109 = vsub.f32 %v1101, %v1107
      %v1110 = vmul.f32 %v1108, 1.442695
      %v1111 = vpow.pop %v1110
      %v1112 = vmul.f32 %v1109, 1.442695
      %v1113 = vpow.pop %v1112
      %v1114 = vsel %vm686, %v1111, 0.0
      %1115 = vadd.xlane.f32.xlu0 %v1114
      %v1116 = vpop.xlane.xlu0 %1115
      %v1117 = vsel %vm686, %v1113, 0.0
      %1118 = vadd.xlane.f32.xlu0 %v1117
      %v1119 = vpop.xlane.xlu0 %1118
      %v1120 = vrcp.pop %v1116
      %v1121 = vrcp.pop %v1119
      %v1122 = vmul.f32 %v1111, %v1120
      %v1123 = vmul.f32 %v1113, %v1121
      %v1124 = vpack.c.bf16 %v1123, %v1122
      %v1125 = vpack.c.bf16 %v1037, %v1036
      %v1127 = vsel %vm686, %v1124, 0
      %1129 = vmatprep.subr.bf16.mxu0 0
      %1130 = vmatpush1.bf16.msra.mxu0 %v1125
      %1131 = vmatprep.subr.bf16.mxu0 0
      %1132 = vmatpush1.bf16.msra.mxu0 0
      %1133 = vmatprep.subr.bf16.mxu0 0
      %1134 = vmatpush1.bf16.msra.mxu0 0
      %1135 = vmatprep.subr.bf16.mxu0 0
      %1136 = vmatpush1.bf16.msra.mxu0 0
      %1137 = vmatprep.subr.bf16.mxu0 0
      %1138 = vmatpush1.bf16.msra.mxu0 0
      %1139 = vmatprep.subr.bf16.mxu0 0
      %1140 = vmatpush1.bf16.msra.mxu0 0
      %1141 = vmatprep.subr.bf16.mxu0 0
      %1142 = vmatpush1.bf16.msra.mxu0 0
      %1143 = vmatprep.subr.bf16.mxu0 0
      %1144 = vmatpush1.bf16.msra.mxu0 0
      %1145 = vmatprep.subr.bf16.mxu0 0
      %1146 = vmatpush1.bf16.msra.mxu0 0
      %1147 = vmatprep.subr.bf16.mxu0 0
      %1148 = vmatpush1.bf16.msra.mxu0 0
      %1149 = vmatprep.subr.bf16.mxu0 0
      %1150 = vmatpush1.bf16.msra.mxu0 0
      %1151 = vmatprep.subr.bf16.mxu0 0
      %1152 = vmatpush1.bf16.msra.mxu0 0
      %1153 = vmatprep.subr.bf16.mxu0 0
      %1154 = vmatpush1.bf16.msra.mxu0 0
      %1155 = vmatprep.subr.bf16.mxu0 0
      %1156 = vmatpush1.bf16.msra.mxu0 0
      %1157 = vmatprep.subr.bf16.mxu0 0
      %1158 = vmatpush1.bf16.msra.mxu0 0
      %1159 = vmatprep.subr.bf16.mxu0 0
      %1160 = vmatpush1.bf16.msra.mxu0 0
      %1161 = vmatprep.mubr.bf16.mxu0 0
      %1162 = vmatmul.mubr.bf16.gmra.mrb[0].mxu0 %v1127
      %v1163 = vpop.f32.mrb[0].mxu0
      %v1164 = vadd.f32 0.0, %v1163
      %v1165 = vpop.f32.mrb[0].mxu0
      %v1166 = vpop.f32.mrb[0].mxu0
      %v1167 = vadd.f32 0.0, %v1166
      %v1168 = vpop.f32.mrb[0].mxu0
      %1169 = vdwg.mxu0
      %1170 = vmatprep.subr.mxu0 0.0
      %1171 = vmatpush1.msra.mxu0 %v834
      %1172 = vmatprep.subr.mxu0 0.0
      %1173 = vmatpush1.msra.mxu0 0.0
      %1174 = vmatprep.subr.mxu0 0.0
      %1175 = vmatpush1.msra.mxu0 0.0
      %1176 = vmatprep.subr.mxu0 0.0
      %1177 = vmatpush1.msra.mxu0 0.0
      %1178 = vmatprep.subr.mxu0 0.0
      %1179 = vmatpush1.msra.mxu0 0.0
      %1180 = vmatprep.subr.mxu0 0.0
      %1181 = vmatpush1.msra.mxu0 0.0
      %1182 = vmatprep.subr.mxu0 0.0
      %1183 = vmatpush1.msra.mxu0 0.0
      %1184 = vmatprep.subr.mxu0 0.0
      %1185 = vmatpush1.msra.mxu0 0.0
      %1186 = vmatprep.subr.mxu0 0.0
      %1187 = vmatpush1.msra.mxu0 0.0
      %1188 = vmatprep.subr.mxu0 0.0
      %1189 = vmatpush1.msra.mxu0 0.0
      %1190 = vmatprep.subr.mxu0 0.0
      %1191 = vmatpush1.msra.mxu0 0.0
      %1192 = vmatprep.subr.mxu0 0.0
      %1193 = vmatpush1.msra.mxu0 0.0
      %1194 = vmatprep.subr.mxu0 0.0
      %1195 = vmatpush1.msra.mxu0 0.0
      %1196 = vmatprep.subr.mxu0 0.0
      %1197 = vmatpush1.msra.mxu0 0.0
      %1198 = vmatprep.subr.mxu0 0.0
      %1199 = vmatpush1.msra.mxu0 0.0
      %1200 = vmatprep.subr.mxu0 0.0
      %1201 = vmatpush1.msra.mxu0 0.0
      %1202 = vmatprep.subr.mxu0 0.0
      %1203 = vmatpush1.msra.mxu0 0.0
      %1204 = vmatprep.subr.mxu0 0.0
      %1205 = vmatpush1.msra.mxu0 0.0
      %1206 = vmatprep.subr.mxu0 0.0
      %1207 = vmatpush1.msra.mxu0 0.0
      %1208 = vmatprep.subr.mxu0 0.0
      %1209 = vmatpush1.msra.mxu0 0.0
      %1210 = vmatprep.subr.mxu0 0.0
      %1211 = vmatpush1.msra.mxu0 0.0
      %1212 = vmatprep.subr.mxu0 0.0
      %1213 = vmatpush1.msra.mxu0 0.0
      %1214 = vmatprep.subr.mxu0 0.0
      %1215 = vmatpush1.msra.mxu0 0.0
      %1216 = vmatprep.subr.mxu0 0.0
      %1217 = vmatpush1.msra.mxu0 0.0
      %1218 = vmatprep.subr.mxu0 0.0
      %1219 = vmatpush1.msra.mxu0 0.0
      %1220 = vmatprep.subr.mxu0 0.0
      %1221 = vmatpush1.msra.mxu0 0.0
      %1222 = vmatprep.subr.mxu0 0.0
      %1223 = vmatpush1.msra.mxu0 0.0
      %1224 = vmatprep.subr.mxu0 0.0
      %1225 = vmatpush1.msra.mxu0 0.0
      %1226 = vmatprep.subr.mxu0 0.0
      %1227 = vmatpush1.msra.mxu0 0.0
      %1228 = vmatprep.subr.mxu0 0.0
      %1229 = vmatpush1.msra.mxu0 0.0
      %1230 = vmatprep.subr.mxu0 0.0
      %1231 = vmatpush1.msra.mxu0 0.0
      %1232 = vmatprep.subr.mxu0 0.0
      %1233 = vmatpush1.msra.mxu0 0.0
      %1234 = vmatprep.mubr.f32.mxu0 0.0
      %1235 = vmatmul.mubr.f32.gmra.mrb[0].mxu0 %v865
      %v1236 = vpop.f32.mrb[0].mxu0
      %v1237 = vadd.f32 0.0, %v1236
      %v1238 = vpop.f32.mrb[0].mxu0
      %1239 = vmatprep.mubr.f32.mxu0 0.0
      %1240 = vmatmul.mubr.f32.gmra.mrb[0].mxu0 %v868
      %v1241 = vpop.f32.mrb[0].mxu0
      %v1242 = vadd.f32 0.0, %v1241
      %v1243 = vpop.f32.mrb[0].mxu0
      %1244 = vdwg.mxu0
      %1245 = vrot.lane.b32.xlu0 %v654, 32
      %v1246 = vpop.permute.xlu0 %1245
      %1248 = vmatprep.subr.mxu0 0.0
      %1249 = vmatpush1.msra.mxu0 %v1246
      %1250 = vmatprep.subr.mxu0 0.0
      %1251 = vmatpush1.msra.mxu0 0.0
      %1252 = vmatprep.subr.mxu0 0.0
      %1253 = vmatpush1.msra.mxu0 0.0
      %1254 = vmatprep.subr.mxu0 0.0
      %1255 = vmatpush1.msra.mxu0 0.0
      %1256 = vmatprep.subr.mxu0 0.0
      %1257 = vmatpush1.msra.mxu0 0.0
      %1258 = vmatprep.subr.mxu0 0.0
      %1259 = vmatpush1.msra.mxu0 0.0
      %1260 = vmatprep.subr.mxu0 0.0
      %1261 = vmatpush1.msra.mxu0 0.0
      %1262 = vmatprep.subr.mxu0 0.0
      %1263 = vmatpush1.msra.mxu0 0.0
      %1264 = vmatprep.subr.mxu0 0.0
      %1265 = vmatpush1.msra.mxu0 0.0
      %1266 = vmatprep.subr.mxu0 0.0
      %1267 = vmatpush1.msra.mxu0 0.0
      %1268 = vmatprep.subr.mxu0 0.0
      %1269 = vmatpush1.msra.mxu0 0.0
      %1270 = vmatprep.subr.mxu0 0.0
      %1271 = vmatpush1.msra.mxu0 0.0
      %1272 = vmatprep.subr.mxu0 0.0
      %1273 = vmatpush1.msra.mxu0 0.0
      %1274 = vmatprep.subr.mxu0 0.0
      %1275 = vmatpush1.msra.mxu0 0.0
      %1276 = vmatprep.subr.mxu0 0.0
      %1277 = vmatpush1.msra.mxu0 0.0
      %1278 = vmatprep.subr.mxu0 0.0
      %1279 = vmatpush1.msra.mxu0 0.0
      %1280 = vmatprep.subr.mxu0 0.0
      %1281 = vmatpush1.msra.mxu0 0.0
      %1282 = vmatprep.subr.mxu0 0.0
      %1283 = vmatpush1.msra.mxu0 0.0
      %1284 = vmatprep.subr.mxu0 0.0
      %1285 = vmatpush1.msra.mxu0 0.0
      %1286 = vmatprep.subr.mxu0 0.0
      %1287 = vmatpush1.msra.mxu0 0.0
      %1288 = vmatprep.subr.mxu0 0.0
      %1289 = vmatpush1.msra.mxu0 0.0
      %1290 = vmatprep.subr.mxu0 0.0
      %1291 = vmatpush1.msra.mxu0 0.0
      %1292 = vmatprep.subr.mxu0 0.0
      %1293 = vmatpush1.msra.mxu0 0.0
      %1294 = vmatprep.subr.mxu0 0.0
      %1295 = vmatpush1.msra.mxu0 0.0
      %1296 = vmatprep.subr.mxu0 0.0
      %1297 = vmatpush1.msra.mxu0 0.0
      %1298 = vmatprep.subr.mxu0 0.0
      %1299 = vmatpush1.msra.mxu0 0.0
      %1300 = vmatprep.subr.mxu0 0.0
      %1301 = vmatpush1.msra.mxu0 0.0
      %1302 = vmatprep.subr.mxu0 0.0
      %1303 = vmatpush1.msra.mxu0 0.0
      %1304 = vmatprep.subr.mxu0 0.0
      %1305 = vmatpush1.msra.mxu0 0.0
      %1306 = vmatprep.subr.mxu0 0.0
      %1307 = vmatpush1.msra.mxu0 0.0
      %1308 = vmatprep.subr.mxu0 0.0
      %1309 = vmatpush1.msra.mxu0 0.0
      %1310 = vmatprep.subr.mxu0 0.0
      %1311 = vmatpush1.msra.mxu0 0.0
      %1312 = vmatprep.mubr.f32.mxu0 0.0
      %1313 = vmatmul.mubr.f32.gmra.mrb[0].mxu0 %v865
      %v1314 = vpop.f32.mrb[0].mxu0
      %v1315 = vadd.f32 0.0, %v1314
      %v1316 = vpop.f32.mrb[0].mxu0
      %1317 = vmatprep.mubr.f32.mxu0 0.0
      %1318 = vmatmul.mubr.f32.gmra.mrb[0].mxu0 %v868
      %v1319 = vpop.f32.mrb[0].mxu0
      %v1320 = vadd.f32 0.0, %v1319
      %v1321 = vpop.f32.mrb[0].mxu0
      %1322 = vdwg.mxu0
      %s1323 = scalar_lea.vmem %s481, 16
      %v1324 = vld [vmem:[%s1323] sm:$0xff]
      %v1325 = vld [vmem:[%s1323 + $0x8] sm:$0xff]
      %v1326 = vsel %vm1030, %v1237, %v1324
      %v1327 = vsel %vm1031, %v1242, %v1325
      %s1328 = scalar_lea.vmem %s486, 16
      %v1329 = vld [vmem:[%s1328] sm:$0xff]
      %v1330 = vld [vmem:[%s1328 + $0x8] sm:$0xff]
      %v1331 = vsel %vm1030, %v1315, %v1329
      %v1332 = vsel %vm1031, %v1320, %v1330
      %s1333 = scalar_lea.vmem %s495, 16
      %1334 = vst.msk [vmem:[%s1333] sm:$0xff] %vm1038, %v1326
      %1335 = vst.msk [vmem:[%s1333 + $0x8] sm:$0xff] %vm1038, %v1327
      %s1336 = scalar_lea.vmem %s500, 16
      %1337 = vst.msk [vmem:[%s1336] sm:$0xff] %vm1038, %v1331
      %1338 = vst.msk [vmem:[%s1336 + $0x8] sm:$0xff] %vm1038, %v1332
      %v1339 = vpack.c.bf16 %v792, %v757
      %v1340 = vpack.c.bf16 %v1327, %v1326
      %v1342 = vsel %vm1038, %v1339, 0
      %v1345 = vsel %vm1038, %v1340, 0
      %1347 = vmatprep.subr.bf16.mxu0 0
      %1348 = vmatpush1.bf16.xpose.msra.mxu0 %v1345
      %1349 = vmatprep.subr.bf16.mxu0 0
      %1350 = vmatpush1.bf16.xpose.msra.mxu0 0
      %1351 = vmatprep.subr.bf16.mxu0 0
      %1352 = vmatpush1.bf16.xpose.msra.mxu0 0
      %1353 = vmatprep.subr.bf16.mxu0 0
      %1354 = vmatpush1.bf16.xpose.msra.mxu0 0
      %1355 = vmatprep.subr.bf16.mxu0 0
      %1356 = vmatpush1.bf16.xpose.msra.mxu0 0
      %1357 = vmatprep.subr.bf16.mxu0 0
      %1358 = vmatpush1.bf16.xpose.msra.mxu0 0
      %1359 = vmatprep.subr.bf16.mxu0 0
      %1360 = vmatpush1.bf16.xpose.msra.mxu0 0
      %1361 = vmatprep.subr.bf16.mxu0 0
      %1362 = vmatpush1.bf16.xpose.msra.mxu0 0
      %1363 = vmatprep.subr.bf16.mxu0 0
      %1364 = vmatpush1.bf16.xpose.msra.mxu0 0
      %1365 = vmatprep.subr.bf16.mxu0 0
      %1366 = vmatpush1.bf16.xpose.msra.mxu0 0
      %1367 = vmatprep.subr.bf16.mxu0 0
      %1368 = vmatpush1.bf16.xpose.msra.mxu0 0
      %1369 = vmatprep.subr.bf16.mxu0 0
      %1370 = vmatpush1.bf16.xpose.msra.mxu0 0
      %1371 = vmatprep.subr.bf16.mxu0 0
      %1372 = vmatpush1.bf16.xpose.msra.mxu0 0
      %1373 = vmatprep.subr.bf16.mxu0 0
      %1374 = vmatpush1.bf16.xpose.msra.mxu0 0
      %1375 = vmatprep.subr.bf16.mxu0 0
      %1376 = vmatpush1.bf16.xpose.msra.mxu0 0
      %1377 = vmatprep.subr.bf16.mxu0 0
      %1378 = vmatpush1.bf16.xpose.msra.mxu0 0
      %1379 = vmatprep.mubr.bf16.mxu0 0
      %1380 = vmatmul.mubr.bf16.gmra.mrb[0].mxu0 %v1342
      %v1381 = vpop.f32.mrb[0].mxu0
      %v1382 = vadd.f32 0.0, %v1381
      %v1383 = vpop.f32.mrb[0].mxu0
      %v1384 = vpop.f32.mrb[0].mxu0
      %v1385 = vadd.f32 0.0, %v1384
      %v1386 = vpop.f32.mrb[0].mxu0
      %1387 = vdwg.mxu0
      %v1388 = vmul.f32 %v1382, 0.17677669
      %v1389 = vmul.f32 %v1385, 0.17677669
      %v1390 = vmul.f32 %v1388, 0.02
      %v1391 = vmul.f32 %v1389, 0.02
      %v1392 = vtanh.pop %v1390
      %v1393 = vtanh.pop %v1391
      %v1394 = vmul.f32 %v1392, 50.0
      %v1395 = vmul.f32 %v1393, 50.0
      %v1396 = vadd.f32 %v1394, %v863
      %v1397 = vadd.f32 %v1395, %v863
      %v1398 = vsel %vm686, %v1396, -inf
      %1399 = vmax.xlane.f32.xlu0 %v1398
      %v1400 = vpop.xlane.xlu0 %1399
      %v1401 = vsel %vm686, %v1397, -inf
      %1402 = vmax.xlane.f32.xlu0 %v1401
      %v1403 = vpop.xlane.xlu0 %1402
      %v1404 = vsub.f32 %v1396, %v1400
      %v1405 = vsub.f32 %v1397, %v1403
      %v1406 = vmul.f32 %v1404, 1.442695
      %v1407 = vpow.pop %v1406
      %v1408 = vmul.f32 %v1405, 1.442695
      %v1409 = vpow.pop %v1408
      %v1410 = vsel %vm686, %v1407, 0.0
      %1411 = vadd.xlane.f32.xlu0 %v1410
      %v1412 = vpop.xlane.xlu0 %1411
      %v1413 = vsel %vm686, %v1409, 0.0
      %1414 = vadd.xlane.f32.xlu0 %v1413
      %v1415 = vpop.xlane.xlu0 %1414
      %v1416 = vrcp.pop %v1412
      %v1417 = vrcp.pop %v1415
      %v1418 = vmul.f32 %v1407, %v1416
      %v1419 = vmul.f32 %v1409, %v1417
      %v1420 = vpack.c.bf16 %v1419, %v1418
      %v1421 = vpack.c.bf16 %v1332, %v1331
      %v1423 = vsel %vm686, %v1420, 0
      %1425 = vmatprep.subr.bf16.mxu0 0
      %1426 = vmatpush1.bf16.msra.mxu0 %v1421
      %1427 = vmatprep.subr.bf16.mxu0 0
      %1428 = vmatpush1.bf16.msra.mxu0 0
      %1429 = vmatprep.subr.bf16.mxu0 0
      %1430 = vmatpush1.bf16.msra.mxu0 0
      %1431 = vmatprep.subr.bf16.mxu0 0
      %1432 = vmatpush1.bf16.msra.mxu0 0
      %1433 = vmatprep.subr.bf16.mxu0 0
      %1434 = vmatpush1.bf16.msra.mxu0 0
      %1435 = vmatprep.subr.bf16.mxu0 0
      %1436 = vmatpush1.bf16.msra.mxu0 0
      %1437 = vmatprep.subr.bf16.mxu0 0
      %1438 = vmatpush1.bf16.msra.mxu0 0
      %1439 = vmatprep.subr.bf16.mxu0 0
      %1440 = vmatpush1.bf16.msra.mxu0 0
      %1441 = vmatprep.subr.bf16.mxu0 0
      %1442 = vmatpush1.bf16.msra.mxu0 0
      %1443 = vmatprep.subr.bf16.mxu0 0
      %1444 = vmatpush1.bf16.msra.mxu0 0
      %1445 = vmatprep.subr.bf16.mxu0 0
      %1446 = vmatpush1.bf16.msra.mxu0 0
      %1447 = vmatprep.subr.bf16.mxu0 0
      %1448 = vmatpush1.bf16.msra.mxu0 0
      %1449 = vmatprep.subr.bf16.mxu0 0
      %1450 = vmatpush1.bf16.msra.mxu0 0
      %1451 = vmatprep.subr.bf16.mxu0 0
      %1452 = vmatpush1.bf16.msra.mxu0 0
      %1453 = vmatprep.subr.bf16.mxu0 0
      %1454 = vmatpush1.bf16.msra.mxu0 0
      %1455 = vmatprep.subr.bf16.mxu0 0
      %1456 = vmatpush1.bf16.msra.mxu0 0
      %1457 = vmatprep.mubr.bf16.mxu0 0
      %1458 = vmatmul.mubr.bf16.gmra.mrb[0].mxu0 %v1423
      %v1459 = vpop.f32.mrb[0].mxu0
      %v1460 = vadd.f32 0.0, %v1459
      %v1461 = vpop.f32.mrb[0].mxu0
      %v1462 = vpop.f32.mrb[0].mxu0
      %v1463 = vadd.f32 0.0, %v1462
      %v1464 = vpop.f32.mrb[0].mxu0
      %1465 = vdwg.mxu0
      %1467 = vrot.lane.b32.xlu0 %v1167, 32
      %v1468 = vpop.permute.xlu0 %1467
      %1471 = vrot.lane.b32.xlu0 %v1460, 64
      %v1472 = vpop.permute.xlu0 %1471
      %1475 = vrot.lane.b32.xlu0 %v1463, 96
      %v1476 = vpop.permute.xlu0 %1475
      %v1478 = vsel %vm1038, %v1164, %v1468
      %vm1479 = vcmask 523264
      %v1480 = vsel %vm1479, %v1478, %v1472
      %vm1481 = vcmask 785408
      %v1482 = vsel %vm1481, %v1480, %v1476
      %v1483 = vpack.c.bf16 %v1482, %v1482
      %v1484 = vld [vmem:[%s6] sm:$0xf]
      %v1485 = vld [vmem:[%s6 + $0x4] sm:$0xf]
      %v1486 = vld [vmem:[%s6 + $0x8] sm:$0xf]
      %v1487 = vld [vmem:[%s6 + $0xc] sm:$0xf]
      %v1488 = vld [vmem:[%s6 + $0x10] sm:$0xf]
      %v1489 = vld [vmem:[%s6 + $0x14] sm:$0xf]
      %v1490 = vld [vmem:[%s6 + $0x18] sm:$0xf]
      %v1491 = vld [vmem:[%s6 + $0x1c] sm:$0xf]
      %v1492 = vld [vmem:[%s6 + $0x20] sm:$0xf]
      %v1493 = vld [vmem:[%s6 + $0x24] sm:$0xf]
      %v1494 = vld [vmem:[%s6 + $0x28] sm:$0xf]
      %v1495 = vld [vmem:[%s6 + $0x2c] sm:$0xf]
      %v1496 = vld [vmem:[%s6 + $0x30] sm:$0xf]
      %v1497 = vld [vmem:[%s6 + $0x34] sm:$0xf]
      %v1498 = vld [vmem:[%s6 + $0x38] sm:$0xf]
      %v1499 = vld [vmem:[%s6 + $0x3c] sm:$0xf]
      %v1516 = vunpack.c.l.b16 %v1484
      %v1517 = vunpack.c.l.b16 %v1485
      %v1518 = vunpack.c.l.b16 %v1486
      %v1519 = vunpack.c.l.b16 %v1487
      %v1520 = vunpack.c.l.b16 %v1488
      %v1521 = vunpack.c.l.b16 %v1489
      %v1522 = vunpack.c.l.b16 %v1490
      %v1523 = vunpack.c.l.b16 %v1491
      %v1524 = vunpack.c.l.b16 %v1492
      %v1525 = vunpack.c.l.b16 %v1493
      %v1526 = vunpack.c.l.b16 %v1494
      %v1527 = vunpack.c.l.b16 %v1495
      %v1528 = vunpack.c.l.b16 %v1496
      %v1529 = vunpack.c.l.b16 %v1497
      %v1530 = vunpack.c.l.b16 %v1498
      %v1531 = vunpack.c.l.b16 %v1499
      %v1532 = vpack.c.b16 %v1517, %v1516
      %v1533 = vpack.c.b16 %v1519, %v1518
      %v1534 = vpack.c.b16 %v1521, %v1520
      %v1535 = vpack.c.b16 %v1523, %v1522
      %v1536 = vpack.c.b16 %v1525, %v1524
      %v1537 = vpack.c.b16 %v1527, %v1526
      %v1538 = vpack.c.b16 %v1529, %v1528
      %v1539 = vpack.c.b16 %v1531, %v1530
      %1548 = vmatprep.subr.bf16.mxu0 0
      %1549 = vmatpush1.bf16.msra.mxu0 %v1532
      %1550 = vmatprep.subr.bf16.mxu0 0
      %1551 = vmatpush1.bf16.msra.mxu0 %v1533
      %1552 = vmatprep.subr.bf16.mxu0 0
      %1553 = vmatpush1.bf16.msra.mxu0 %v1534
      %1554 = vmatprep.subr.bf16.mxu0 0
      %1555 = vmatpush1.bf16.msra.mxu0 %v1535
      %1556 = vmatprep.subr.bf16.mxu0 0
      %1557 = vmatpush1.bf16.msra.mxu0 %v1536
      %1558 = vmatprep.subr.bf16.mxu0 0
      %1559 = vmatpush1.bf16.msra.mxu0 %v1537
      %1560 = vmatprep.subr.bf16.mxu0 0
      %1561 = vmatpush1.bf16.msra.mxu0 %v1538
      %1562 = vmatprep.subr.bf16.mxu0 0
      %1563 = vmatpush1.bf16.msra.mxu0 %v1539
      %1564 = vmatprep.subr.bf16.mxu0 0
      %1565 = vmatpush1.bf16.msra.mxu0 0
      %1566 = vmatprep.subr.bf16.mxu0 0
      %1567 = vmatpush1.bf16.msra.mxu0 0
      %1568 = vmatprep.subr.bf16.mxu0 0
      %1569 = vmatpush1.bf16.msra.mxu0 0
      %1570 = vmatprep.subr.bf16.mxu0 0
      %1571 = vmatpush1.bf16.msra.mxu0 0
      %1572 = vmatprep.subr.bf16.mxu0 0
      %1573 = vmatpush1.bf16.msra.mxu0 0
      %1574 = vmatprep.subr.bf16.mxu0 0
      %1575 = vmatpush1.bf16.msra.mxu0 0
      %1576 = vmatprep.subr.bf16.mxu0 0
      %1577 = vmatpush1.bf16.msra.mxu0 0
      %1578 = vmatprep.subr.bf16.mxu0 0
      %1579 = vmatpush1.bf16.msra.mxu0 0
      %1580 = vmatprep.mubr.bf16.mxu0 0
      %1581 = vmatmul.mubr.bf16.gmra.mrb[0].mxu0 %v1483
      %v1582 = vpop.f32.mrb[0].mxu0
      %v1583 = vadd.f32 0.0, %v1582
      %v1584 = vpop.f32.mrb[0].mxu0
      %v1585 = vpop.f32.mrb[0].mxu0
      %v1586 = vpop.f32.mrb[0].mxu0
      %1587 = vdwg.mxu0
      %v1588 = vld [vmem:[%s8] sm:$0x1]
      %v1589 = vmul.f32 %v1583, %v1583
      %1590 = vadd.xlane.f32.xlu0 %v1589
      %v1591 = vpop.xlane.xlu0 %1590
      %v1592 = vmul.f32 %v1591, %v507
      %v1593 = vadd.f32 %v1592, 1e-06
      %v1594 = vrsqrt.pop %v1593
      %v1595 = vmul.f32 %v1583, %v1594
      %v1596 = vadd.f32 %v1588, 1.0
      %v1598 = vlaneseq
      %v1599 = vshrl.u32 %v1598, 7
      %v1600 = vsub.s32 0, %v1599
      %v1601 = vrot.slane %v1596, %v1600
      %v1603 = vmul.f32 %v1595, %v1601
      %v1604 = vadd.f32 %v502, %v1603
      %1605 = vst [vmem:[%s490] sm:$0xff] %v1604
      %p1606 = scmp.lt.s32.totalorder %s25, 1
      %s1607 = scalar_select %p1606, %s25, 1
      %s1608 = smul.addr %s1607, 8
      %s1609 = scalar_lea.vmem %s11, %s1608
      %p1610 = scmp.lt.s32.totalorder %s25, 1
      %s1611 = scalar_select %p1610, %s25, 1
      %s1612 = smul.addr %s1611, 4
      %s1613 = smul.addr %s1612, 8
      %s1614 = scalar_lea.vmem %s12, %s1613
      %p1615 = scmp.lt.s32.totalorder %s25, 1
      %s1616 = scalar_select %p1615, %s25, 1
      %s1617 = smul.addr %s1616, 4
      %s1618 = smul.addr %s1617, 8
      %s1619 = scalar_lea.vmem %s13, %s1618
      // Predicated region
      $region65: #{gemma2_forward.11} parent=63 // pred_check
        %p1620 = pneg %p289
      $region66: #{gemma2_forward.11} parent=63 // pred_check_branch
        %1622 = sbr.rel (%p1620) target = $region68
      $region67: #{gemma2_forward.11} parent=63 // pred_region
        _
      $region68: #{gemma2_forward.11} parent=63 // pred_fallthru
        _
      // Predicated region
      $region69: #{gemma2_forward.11} parent=63 // pred_check
        %p1623 = pneg %p315
      $region70: #{gemma2_forward.11} parent=63 // pred_check_branch
        %1625 = sbr.rel (%p1623) target = $region72
      $region71: #{gemma2_forward.11} parent=63 // pred_region
        _
      $region72: #{gemma2_forward.11} parent=63 // pred_fallthru
        _
      // Predicated region
      $region73: #{gemma2_forward.11} parent=63 // pred_check
        %p1626 = pneg %p341
      $region74: #{gemma2_forward.11} parent=63 // pred_check_branch
        %1628 = sbr.rel (%p1626) target = $region76
      $region75: #{gemma2_forward.11} parent=63 // pred_region
        _
      $region76: #{gemma2_forward.11} parent=63 // pred_fallthru
        _
    $region64: #{gemma2_forward.11} parent=5 // pred_fallthru
      _
    %p1629 = scmp.le.s32.totalorder 2, %s20
    // Predicated region
    $region77: #{gemma2_forward.11} parent=5 // pred_check
      %p1630 = pneg %p1629
    $region78: #{gemma2_forward.11} parent=5 // pred_check_branch
      %1632 = sbr.rel (%p1630) target = $region80
    $region79: #{gemma2_forward.11} parent=5 // pred_region
      %s1633 = ssub.s32 %s20, 2
      // Predicated region
      $region81: #{gemma2_forward.11} parent=79 // pred_check
        %p1634 = pneg %p295
      $region82: #{gemma2_forward.11} parent=79 // pred_check_branch
        %1636 = sbr.rel (%p1634) target = $region84
      $region83: #{gemma2_forward.11} parent=79 // pred_region
        %p1637 = scmp.lt.s32.totalorder %s26, 1
        %s1638 = scalar_select %p1637, %s26, 1
        %s1639 = smul.addr %s1638, 8
        %s1640 = scalar_lea.vmem %s11, %s1639
      $region84: #{gemma2_forward.11} parent=79 // pred_fallthru
        _
      // Predicated region
      $region85: #{gemma2_forward.11} parent=79 // pred_check
        %p1641 = pneg %p321
      $region86: #{gemma2_forward.11} parent=79 // pred_check_branch
        %1643 = sbr.rel (%p1641) target = $region88
      $region87: #{gemma2_forward.11} parent=79 // pred_region
        %p1644 = scmp.lt.s32.totalorder %s26, 1
        %s1645 = scalar_select %p1644, %s26, 1
        %s1646 = smul.addr %s1645, 4
        %s1647 = smul.addr %s1646, 8
        %s1648 = scalar_lea.vmem %s12, %s1647
      $region88: #{gemma2_forward.11} parent=79 // pred_fallthru
        _
      // Predicated region
      $region89: #{gemma2_forward.11} parent=79 // pred_check
        %p1649 = pneg %p347
      $region90: #{gemma2_forward.11} parent=79 // pred_check_branch
        %1651 = sbr.rel (%p1649) target = $region92
      $region91: #{gemma2_forward.11} parent=79 // pred_region
        %p1652 = scmp.lt.s32.totalorder %s26, 1
        %s1653 = scalar_select %p1652, %s26, 1
        %s1654 = smul.addr %s1653, 4
        %s1655 = smul.addr %s1654, 8
        %s1656 = scalar_lea.vmem %s13, %s1655
      $region92: #{gemma2_forward.11} parent=79 // pred_fallthru
        _
    $region80: #{gemma2_forward.11} parent=5 // pred_fallthru
      _
  $region6: #{gemma2_forward.11} parent=0 // loop_footer
    %s24 = sadd.s32 1, %s20
  $region7: #{gemma2_forward.11} parent=0 // loop_footer_branch
    %19 = sbr.rel target = $region3
  $region8: #{gemma2_forward.11} parent=0 // loop_exit
    _

// kernel: gemma2_forward.9
$region0: #{gemma2_forward.9}
  #allocation0 [shape = 'u32[]', space=smem, size = 0x4, offset = 0x4, fixed_abs, tag = 'smem constant byte address 0x4 - core index']
  #allocation1 [shape = 'u32[144,128]{1,0:T(1,128)}', space=vmem, size = 0x12000, scoped, tag = 'internal scratch']
  %s0 = inlined_call_operand.vmem [shape: s32[8,1], index: 0, kind: input, shape index: {}]
  %s1 = inlined_call_operand.vmem [shape: s32[1,8], index: 1, kind: input, shape index: {}]
  %s2 = inlined_call_operand.vmem [shape: f32[2,8,128], index: 2, kind: input, shape index: {}]
  %s3 = inlined_call_operand.vmem [shape: f32[8,16], index: 3, kind: input, shape index: {}]
  %s4 = inlined_call_operand.vmem [shape: f32[8,16], index: 4, kind: input, shape index: {}]
  %s5 = inlined_call_operand.vmem [shape: bf16[128,256], index: 5, kind: input, shape index: {}]
  %s6 = inlined_call_operand.vmem [shape: bf16[128,128], index: 6, kind: input, shape index: {}]
  %s7 = inlined_call_operand.vmem [shape: f32[1,128], index: 7, kind: input, shape index: {}]
  %s8 = inlined_call_operand.vmem [shape: f32[1,128], index: 8, kind: input, shape index: {}]
  %s9 = inlined_call_operand.vmem [shape: f32[2,2,16,32], index: 9, kind: input, shape index: {}, may-alias: {9,12}]
  %s10 = inlined_call_operand.vmem [shape: f32[2,2,16,32], index: 10, kind: input, shape index: {}, may-alias: {10,13}]
  %s11 = inlined_call_operand.vmem [shape: f32[2,8,128], index: 11, kind: output, shape index: {0}]
  %s12 = inlined_call_operand.vmem [shape: f32[2,2,16,32], index: 12, kind: output, shape index: {1}, may-alias: {9,12}]
  %s13 = inlined_call_operand.vmem [shape: f32[2,2,16,32], index: 13, kind: output, shape index: {2}, may-alias: {10,13}]
  %14 = xla_tuple %s11, %s12, %s13
  %s15 = sld [smem:[#allocation0]]
  $region93: #{gemma2_forward.9} parent=0
    _
  %s17 = ssub.s32 1, %s15
  %s18 = scalar_select 0, %s17, %s15
  loop: start=0, step=1, limit=4
  $region2: #{gemma2_forward.9} parent=0 // loop_pre_header
    _
  $region3: #{gemma2_forward.9} parent=0 // loop_header
    %s20 = sphi 0, %s24
    %p21 = scmp.ge.s32.totalorder %s20, 4
    %s28 = sphi 0, %s28
    %s30 = sphi 0, %s28
    %s31 = sphi 0, %s30
    %s45 = sphi 0, %s31
    %s49 = sphi 0, %s49
    %s51 = sphi 0, %s49
    %s52 = sphi 0, %s51
    %s66 = sphi 0, %s52
    %s72 = sphi 0, %s74
    %s75 = sphi 0, %s72
    %s76 = sphi 0, %s75
    %s92 = sphi 0, %s76
    %s96 = sphi 0, %s96
    %s98 = sphi 0, %s96
    %s99 = sphi 0, %s98
    %s113 = sphi 0, %s99
    %s117 = sphi 0, %s117
    %s119 = sphi 0, %s117
    %s120 = sphi 0, %s119
    %s134 = sphi 0, %s120
    %s138 = sphi 0, %s138
    %s140 = sphi 0, %s138
    %s141 = sphi 0, %s140
    %s155 = sphi 0, %s141
    %s159 = sphi 0, %s159
    %s161 = sphi 0, %s159
    %s162 = sphi 0, %s161
    %s176 = sphi 0, %s162
    %s180 = sphi 0, %s180
    %s182 = sphi 0, %s180
    %s183 = sphi 0, %s182
    %s197 = sphi 0, %s183
    %s201 = sphi 0, %s201
    %s203 = sphi 0, %s201
    %s204 = sphi 0, %s203
    %s218 = sphi 0, %s204
    %s224 = sphi 0, %s226
    %s227 = sphi 0, %s224
    %s228 = sphi 0, %s227
    %s244 = sphi 0, %s228
    %s250 = sphi 0, %s252
    %s253 = sphi 0, %s250
    %s254 = sphi 0, %s253
    %s270 = sphi 0, %s254
    %s276 = sphi 0, %s278
    %s279 = sphi 0, %s276
    %s280 = sphi 0, %s279
    %s296 = sphi 0, %s280
    %s302 = sphi 0, %s304
    %s305 = sphi 0, %s302
    %s306 = sphi 0, %s305
    %s322 = sphi 0, %s306
    %s328 = sphi 0, %s330
    %s331 = sphi 0, %s328
    %s332 = sphi 0, %s331
    %s348 = sphi 0, %s332
  $region4: #{gemma2_forward.9} parent=0 // loop_header_branch
    %23 = sbr.rel (%p21) target = $region8
  $region5: #{gemma2_forward.9} parent=0 // loop_body
    %s25 = ssub.s32 %s20, 1
    %s26 = ssub.s32 %s20, 2
    %s27 = sadd.s32 %s20, 1
    %s29 = sadd.s32 %s28, 1
    %p32 = scmp.eq.s32.totalorder %s20, 1
    %p33 = scmp.ne.s32.totalorder %s28, %s30
    %p34 = scmp.eq.s32.totalorder %s20, 0
    %p35 = por %p33, %p34
    %p36 = scmp.ne.s32.totalorder %s28, %s30
    %p37 = scmp.eq.s32.totalorder %s25, 1
    %p38 = por %p36, %p37
    %p39 = scmp.ne.s32.totalorder %s30, %s31
    %p40 = scmp.eq.s32.totalorder %s25, 0
    %p41 = por %p39, %p40
    %p42 = scmp.ne.s32.totalorder %s30, %s31
    %p43 = scmp.eq.s32.totalorder %s26, 1
    %p44 = por %p42, %p43
    %p46 = scmp.ne.s32.totalorder %s31, %s45
    %p47 = scmp.eq.s32.totalorder %s26, 0
    %p48 = por %p46, %p47
    %s50 = sadd.s32 %s49, 1
    %p53 = scmp.eq.s32.totalorder %s20, 1
    %p54 = scmp.ne.s32.totalorder %s49, %s51
    %p55 = scmp.eq.s32.totalorder %s20, 0
    %p56 = por %p54, %p55
    %p57 = scmp.ne.s32.totalorder %s49, %s51
    %p58 = scmp.eq.s32.totalorder %s25, 1
    %p59 = por %p57, %p58
    %p60 = scmp.ne.s32.totalorder %s51, %s52
    %p61 = scmp.eq.s32.totalorder %s25, 0
    %p62 = por %p60, %p61
    %p63 = scmp.ne.s32.totalorder %s51, %s52
    %p64 = scmp.eq.s32.totalorder %s26, 1
    %p65 = por %p63, %p64
    %p67 = scmp.ne.s32.totalorder %s52, %s66
    %p68 = scmp.eq.s32.totalorder %s26, 0
    %p69 = por %p67, %p68
    %s70 = ssub.s32 %s20, %s27
    %p71 = scmp.eq.s32.totalorder %s70, 0
    %s73 = sadd.s32 %s72, 1
    %s74 = scalar_select %p71, %s72, %s73
    %p77 = pneg %p71
    %p78 = scmp.eq.s32.totalorder %s20, 1
    %p79 = por %p77, %p78
    %p80 = scmp.ne.s32.totalorder %s72, %s75
    %p81 = scmp.eq.s32.totalorder %s20, 0
    %p82 = por %p80, %p81
    %p83 = scmp.ne.s32.totalorder %s72, %s75
    %p84 = scmp.eq.s32.totalorder %s25, 1
    %p85 = por %p83, %p84
    %p86 = scmp.ne.s32.totalorder %s75, %s76
    %p87 = scmp.eq.s32.totalorder %s25, 0
    %p88 = por %p86, %p87
    %p89 = scmp.ne.s32.totalorder %s75, %s76
    %p90 = scmp.eq.s32.totalorder %s26, 1
    %p91 = por %p89, %p90
    %p93 = scmp.ne.s32.totalorder %s76, %s92
    %p94 = scmp.eq.s32.totalorder %s26, 0
    %p95 = por %p93, %p94
    %s97 = sadd.s32 %s96, 1
    %p100 = scmp.eq.s32.totalorder %s20, 1
    %p101 = scmp.ne.s32.totalorder %s96, %s98
    %p102 = scmp.eq.s32.totalorder %s20, 0
    %p103 = por %p101, %p102
    %p104 = scmp.ne.s32.totalorder %s96, %s98
    %p105 = scmp.eq.s32.totalorder %s25, 1
    %p106 = por %p104, %p105
    %p107 = scmp.ne.s32.totalorder %s98, %s99
    %p108 = scmp.eq.s32.totalorder %s25, 0
    %p109 = por %p107, %p108
    %p110 = scmp.ne.s32.totalorder %s98, %s99
    %p111 = scmp.eq.s32.totalorder %s26, 1
    %p112 = por %p110, %p111
    %p114 = scmp.ne.s32.totalorder %s99, %s113
    %p115 = scmp.eq.s32.totalorder %s26, 0
    %p116 = por %p114, %p115
    %s118 = sadd.s32 %s117, 1
    %p121 = scmp.eq.s32.totalorder %s20, 1
    %p122 = scmp.ne.s32.totalorder %s117, %s119
    %p123 = scmp.eq.s32.totalorder %s20, 0
    %p124 = por %p122, %p123
    %p125 = scmp.ne.s32.totalorder %s117, %s119
    %p126 = scmp.eq.s32.totalorder %s25, 1
    %p127 = por %p125, %p126
    %p128 = scmp.ne.s32.totalorder %s119, %s120
    %p129 = scmp.eq.s32.totalorder %s25, 0
    %p130 = por %p128, %p129
    %p131 = scmp.ne.s32.totalorder %s119, %s120
    %p132 = scmp.eq.s32.totalorder %s26, 1
    %p133 = por %p131, %p132
    %p135 = scmp.ne.s32.totalorder %s120, %s134
    %p136 = scmp.eq.s32.totalorder %s26, 0
    %p137 = por %p135, %p136
    %s139 = sadd.s32 %s138, 1
    %p142 = scmp.eq.s32.totalorder %s20, 1
    %p143 = scmp.ne.s32.totalorder %s138, %s140
    %p144 = scmp.eq.s32.totalorder %s20, 0
    %p145 = por %p143, %p144
    %p146 = scmp.ne.s32.totalorder %s138, %s140
    %p147 = scmp.eq.s32.totalorder %s25, 1
    %p148 = por %p146, %p147
    %p149 = scmp.ne.s32.totalorder %s140, %s141
    %p150 = scmp.eq.s32.totalorder %s25, 0
    %p151 = por %p149, %p150
    %p152 = scmp.ne.s32.totalorder %s140, %s141
    %p153 = scmp.eq.s32.totalorder %s26, 1
    %p154 = por %p152, %p153
    %p156 = scmp.ne.s32.totalorder %s141, %s155
    %p157 = scmp.eq.s32.totalorder %s26, 0
    %p158 = por %p156, %p157
    %s160 = sadd.s32 %s159, 1
    %p163 = scmp.eq.s32.totalorder %s20, 1
    %p164 = scmp.ne.s32.totalorder %s159, %s161
    %p165 = scmp.eq.s32.totalorder %s20, 0
    %p166 = por %p164, %p165
    %p167 = scmp.ne.s32.totalorder %s159, %s161
    %p168 = scmp.eq.s32.totalorder %s25, 1
    %p169 = por %p167, %p168
    %p170 = scmp.ne.s32.totalorder %s161, %s162
    %p171 = scmp.eq.s32.totalorder %s25, 0
    %p172 = por %p170, %p171
    %p173 = scmp.ne.s32.totalorder %s161, %s162
    %p174 = scmp.eq.s32.totalorder %s26, 1
    %p175 = por %p173, %p174
    %p177 = scmp.ne.s32.totalorder %s162, %s176
    %p178 = scmp.eq.s32.totalorder %s26, 0
    %p179 = por %p177, %p178
    %s181 = sadd.s32 %s180, 1
    %p184 = scmp.eq.s32.totalorder %s20, 1
    %p185 = scmp.ne.s32.totalorder %s180, %s182
    %p186 = scmp.eq.s32.totalorder %s20, 0
    %p187 = por %p185, %p186
    %p188 = scmp.ne.s32.totalorder %s180, %s182
    %p189 = scmp.eq.s32.totalorder %s25, 1
    %p190 = por %p188, %p189
    %p191 = scmp.ne.s32.totalorder %s182, %s183
    %p192 = scmp.eq.s32.totalorder %s25, 0
    %p193 = por %p191, %p192
    %p194 = scmp.ne.s32.totalorder %s182, %s183
    %p195 = scmp.eq.s32.totalorder %s26, 1
    %p196 = por %p194, %p195
    %p198 = scmp.ne.s32.totalorder %s183, %s197
    %p199 = scmp.eq.s32.totalorder %s26, 0
    %p200 = por %p198, %p199
    %s202 = sadd.s32 %s201, 1
    %p205 = scmp.eq.s32.totalorder %s20, 1
    %p206 = scmp.ne.s32.totalorder %s201, %s203
    %p207 = scmp.eq.s32.totalorder %s20, 0
    %p208 = por %p206, %p207
    %p209 = scmp.ne.s32.totalorder %s201, %s203
    %p210 = scmp.eq.s32.totalorder %s25, 1
    %p211 = por %p209, %p210
    %p212 = scmp.ne.s32.totalorder %s203, %s204
    %p213 = scmp.eq.s32.totalorder %s25, 0
    %p214 = por %p212, %p213
    %p215 = scmp.ne.s32.totalorder %s203, %s204
    %p216 = scmp.eq.s32.totalorder %s26, 1
    %p217 = por %p215, %p216
    %p219 = scmp.ne.s32.totalorder %s204, %s218
    %p220 = scmp.eq.s32.totalorder %s26, 0
    %p221 = por %p219, %p220
    %s222 = ssub.s32 %s20, %s27
    %p223 = scmp.eq.s32.totalorder %s222, 0
    %s225 = sadd.s32 %s224, 1
    %s226 = scalar_select %p223, %s224, %s225
    %p229 = pneg %p223
    %p230 = scmp.eq.s32.totalorder %s20, 1
    %p231 = por %p229, %p230
    %p232 = scmp.ne.s32.totalorder %s224, %s227
    %p233 = scmp.eq.s32.totalorder %s20, 0
    %p234 = por %p232, %p233
    %p235 = scmp.ne.s32.totalorder %s224, %s227
    %p236 = scmp.eq.s32.totalorder %s25, 1
    %p237 = por %p235, %p236
    %p238 = scmp.ne.s32.totalorder %s227, %s228
    %p239 = scmp.eq.s32.totalorder %s25, 0
    %p240 = por %p238, %p239
    %p241 = scmp.ne.s32.totalorder %s227, %s228
    %p242 = scmp.eq.s32.totalorder %s26, 1
    %p243 = por %p241, %p242
    %p245 = scmp.ne.s32.totalorder %s228, %s244
    %p246 = scmp.eq.s32.totalorder %s26, 0
    %p247 = por %p245, %p246
    %s248 = ssub.s32 %s20, %s27
    %p249 = scmp.eq.s32.totalorder %s248, 0
    %s251 = sadd.s32 %s250, 1
    %s252 = scalar_select %p249, %s250, %s251
    %p255 = pneg %p249
    %p256 = scmp.eq.s32.totalorder %s20, 1
    %p257 = por %p255, %p256
    %p258 = scmp.ne.s32.totalorder %s250, %s253
    %p259 = scmp.eq.s32.totalorder %s20, 0
    %p260 = por %p258, %p259
    %p261 = scmp.ne.s32.totalorder %s250, %s253
    %p262 = scmp.eq.s32.totalorder %s25, 1
    %p263 = por %p261, %p262
    %p264 = scmp.ne.s32.totalorder %s253, %s254
    %p265 = scmp.eq.s32.totalorder %s25, 0
    %p266 = por %p264, %p265
    %p267 = scmp.ne.s32.totalorder %s253, %s254
    %p268 = scmp.eq.s32.totalorder %s26, 1
    %p269 = por %p267, %p268
    %p271 = scmp.ne.s32.totalorder %s254, %s270
    %p272 = scmp.eq.s32.totalorder %s26, 0
    %p273 = por %p271, %p272
    %s274 = ssub.s32 %s20, %s27
    %p275 = scmp.eq.s32.totalorder %s274, 0
    %s277 = sadd.s32 %s276, 1
    %s278 = scalar_select %p275, %s276, %s277
    %p281 = pneg %p275
    %p282 = scmp.eq.s32.totalorder %s20, 1
    %p283 = por %p281, %p282
    %p284 = scmp.ne.s32.totalorder %s276, %s279
    %p285 = scmp.eq.s32.totalorder %s20, 0
    %p286 = por %p284, %p285
    %p287 = scmp.ne.s32.totalorder %s276, %s279
    %p288 = scmp.eq.s32.totalorder %s25, 1
    %p289 = por %p287, %p288
    %p290 = scmp.ne.s32.totalorder %s279, %s280
    %p291 = scmp.eq.s32.totalorder %s25, 0
    %p292 = por %p290, %p291
    %p293 = scmp.ne.s32.totalorder %s279, %s280
    %p294 = scmp.eq.s32.totalorder %s26, 1
    %p295 = por %p293, %p294
    %p297 = scmp.ne.s32.totalorder %s280, %s296
    %p298 = scmp.eq.s32.totalorder %s26, 0
    %p299 = por %p297, %p298
    %s300 = ssub.s32 %s20, %s27
    %p301 = scmp.eq.s32.totalorder %s300, 0
    %s303 = sadd.s32 %s302, 1
    %s304 = scalar_select %p301, %s302, %s303
    %p307 = pneg %p301
    %p308 = scmp.eq.s32.totalorder %s20, 1
    %p309 = por %p307, %p308
    %p310 = scmp.ne.s32.totalorder %s302, %s305
    %p311 = scmp.eq.s32.totalorder %s20, 0
    %p312 = por %p310, %p311
    %p313 = scmp.ne.s32.totalorder %s302, %s305
    %p314 = scmp.eq.s32.totalorder %s25, 1
    %p315 = por %p313, %p314
    %p316 = scmp.ne.s32.totalorder %s305, %s306
    %p317 = scmp.eq.s32.totalorder %s25, 0
    %p318 = por %p316, %p317
    %p319 = scmp.ne.s32.totalorder %s305, %s306
    %p320 = scmp.eq.s32.totalorder %s26, 1
    %p321 = por %p319, %p320
    %p323 = scmp.ne.s32.totalorder %s306, %s322
    %p324 = scmp.eq.s32.totalorder %s26, 0
    %p325 = por %p323, %p324
    %s326 = ssub.s32 %s20, %s27
    %p327 = scmp.eq.s32.totalorder %s326, 0
    %s329 = sadd.s32 %s328, 1
    %s330 = scalar_select %p327, %s328, %s329
    %p333 = pneg %p327
    %p334 = scmp.eq.s32.totalorder %s20, 1
    %p335 = por %p333, %p334
    %p336 = scmp.ne.s32.totalorder %s328, %s331
    %p337 = scmp.eq.s32.totalorder %s20, 0
    %p338 = por %p336, %p337
    %p339 = scmp.ne.s32.totalorder %s328, %s331
    %p340 = scmp.eq.s32.totalorder %s25, 1
    %p341 = por %p339, %p340
    %p342 = scmp.ne.s32.totalorder %s331, %s332
    %p343 = scmp.eq.s32.totalorder %s25, 0
    %p344 = por %p342, %p343
    %p345 = scmp.ne.s32.totalorder %s331, %s332
    %p346 = scmp.eq.s32.totalorder %s26, 1
    %p347 = por %p345, %p346
    %p349 = scmp.ne.s32.totalorder %s332, %s348
    %p350 = scmp.eq.s32.totalorder %s26, 0
    %p351 = por %p349, %p350
    %p352 = scmp.le.s32.totalorder 1, %s20
    %p353 = scmp.lt.s32.totalorder %s20, 3
    %p354 = pnand %p352, %p353
    %p355 = pneg %p354
    // Predicated region
    $region9: #{gemma2_forward.9} parent=5 // pred_check
      _
    $region10: #{gemma2_forward.9} parent=5 // pred_check_branch
      %357 = sbr.rel (%p354) target = $region12
    $region11: #{gemma2_forward.9} parent=5 // pred_region
      %s358 = ssub.s32 %s20, 1
      // Predicated region
      $region13: #{gemma2_forward.9} parent=11 // pred_check
        %p359 = pneg %p41
      $region14: #{gemma2_forward.9} parent=11 // pred_check_branch
        %361 = sbr.rel (%p359) target = $region16
      $region15: #{gemma2_forward.9} parent=11 // pred_region
        _
      $region16: #{gemma2_forward.9} parent=11 // pred_fallthru
        _
      // Predicated region
      $region17: #{gemma2_forward.9} parent=11 // pred_check
        %p362 = pneg %p62
      $region18: #{gemma2_forward.9} parent=11 // pred_check_branch
        %364 = sbr.rel (%p362) target = $region20
      $region19: #{gemma2_forward.9} parent=11 // pred_region
        _
      $region20: #{gemma2_forward.9} parent=11 // pred_fallthru
        _
      // Predicated region
      $region21: #{gemma2_forward.9} parent=11 // pred_check
        %p365 = pneg %p109
      $region22: #{gemma2_forward.9} parent=11 // pred_check_branch
        %367 = sbr.rel (%p365) target = $region24
      $region23: #{gemma2_forward.9} parent=11 // pred_region
        _
      $region24: #{gemma2_forward.9} parent=11 // pred_fallthru
        _
      // Predicated region
      $region25: #{gemma2_forward.9} parent=11 // pred_check
        %p368 = pneg %p130
      $region26: #{gemma2_forward.9} parent=11 // pred_check_branch
        %370 = sbr.rel (%p368) target = $region28
      $region27: #{gemma2_forward.9} parent=11 // pred_region
        _
      $region28: #{gemma2_forward.9} parent=11 // pred_fallthru
        _
      // Predicated region
      $region29: #{gemma2_forward.9} parent=11 // pred_check
        %p371 = pneg %p151
      $region30: #{gemma2_forward.9} parent=11 // pred_check_branch
        %373 = sbr.rel (%p371) target = $region32
      $region31: #{gemma2_forward.9} parent=11 // pred_region
        _
      $region32: #{gemma2_forward.9} parent=11 // pred_fallthru
        _
      // Predicated region
      $region33: #{gemma2_forward.9} parent=11 // pred_check
        %p374 = pneg %p172
      $region34: #{gemma2_forward.9} parent=11 // pred_check_branch
        %376 = sbr.rel (%p374) target = $region36
      $region35: #{gemma2_forward.9} parent=11 // pred_region
        _
      $region36: #{gemma2_forward.9} parent=11 // pred_fallthru
        _
      // Predicated region
      $region37: #{gemma2_forward.9} parent=11 // pred_check
        %p377 = pneg %p193
      $region38: #{gemma2_forward.9} parent=11 // pred_check_branch
        %379 = sbr.rel (%p377) target = $region40
      $region39: #{gemma2_forward.9} parent=11 // pred_region
        _
      $region40: #{gemma2_forward.9} parent=11 // pred_fallthru
        _
      // Predicated region
      $region41: #{gemma2_forward.9} parent=11 // pred_check
        %p380 = pneg %p214
      $region42: #{gemma2_forward.9} parent=11 // pred_check_branch
        %382 = sbr.rel (%p380) target = $region44
      $region43: #{gemma2_forward.9} parent=11 // pred_region
        _
      $region44: #{gemma2_forward.9} parent=11 // pred_fallthru
        _
    $region12: #{gemma2_forward.9} parent=5 // pred_fallthru
      _
    %p383 = scmp.lt.s32.totalorder %s20, 2
    // Predicated region
    $region45: #{gemma2_forward.9} parent=5 // pred_check
      %p384 = pneg %p383
    $region46: #{gemma2_forward.9} parent=5 // pred_check_branch
      %386 = sbr.rel (%p384) target = $region48
    $region47: #{gemma2_forward.9} parent=5 // pred_region
      // Predicated region
      $region49: #{gemma2_forward.9} parent=47 // pred_check
        %p387 = pneg %p82
      $region50: #{gemma2_forward.9} parent=47 // pred_check_branch
        %389 = sbr.rel (%p387) target = $region52
      $region51: #{gemma2_forward.9} parent=47 // pred_region
        %p390 = scmp.lt.s32.totalorder %s20, 1
        %s391 = scalar_select %p390, %s20, 1
        %s392 = smul.addr %s391, 8
        %s393 = scalar_lea.vmem %s2, %s392
      $region52: #{gemma2_forward.9} parent=47 // pred_fallthru
        _
      // Predicated region
      $region53: #{gemma2_forward.9} parent=47 // pred_check
        %p394 = pneg %p234
      $region54: #{gemma2_forward.9} parent=47 // pred_check_branch
        %396 = sbr.rel (%p394) target = $region56
      $region55: #{gemma2_forward.9} parent=47 // pred_region
        %p397 = scmp.lt.s32.totalorder %s20, 1
        %s398 = scalar_select %p397, %s20, 1
        %s399 = smul.addr %s398, 4
        %s400 = smul.addr %s399, 8
        %s401 = scalar_lea.vmem %s9, %s400
      $region56: #{gemma2_forward.9} parent=47 // pred_fallthru
        _
      // Predicated region
      $region57: #{gemma2_forward.9} parent=47 // pred_check
        %p402 = pneg %p260
      $region58: #{gemma2_forward.9} parent=47 // pred_check_branch
        %404 = sbr.rel (%p402) target = $region60
      $region59: #{gemma2_forward.9} parent=47 // pred_region
        %p405 = scmp.lt.s32.totalorder %s20, 1
        %s406 = scalar_select %p405, %s20, 1
        %s407 = smul.addr %s406, 4
        %s408 = smul.addr %s407, 8
        %s409 = scalar_lea.vmem %s10, %s408
      $region60: #{gemma2_forward.9} parent=47 // pred_fallthru
        _
    $region48: #{gemma2_forward.9} parent=5 // pred_fallthru
      _
    %p410 = scmp.le.s32.totalorder 1, %s20
    %p411 = scmp.lt.s32.totalorder %s20, 3
    %p412 = pnand %p410, %p411
    %p413 = pneg %p412
    // Predicated region
    $region61: #{gemma2_forward.9} parent=5 // pred_check
      _
    $region62: #{gemma2_forward.9} parent=5 // pred_check_branch
      %415 = sbr.rel (%p412) target = $region64
    $region63: #{gemma2_forward.9} parent=5 // pred_region
      %s416 = ssub.s32 %s20, 1
      %p417 = pneg %p41
      %p418 = pneg %p38
      %p419 = pneg %p62
      %p420 = pneg %p59
      %p421 = scmp.lt.s32.totalorder %s25, 1
      %s422 = scalar_select %p421, %s25, 1
      %s423 = smul.addr %s422, 8
      %s424 = scalar_lea.vmem %s2, %s423
      %p425 = pneg %p88
      %p426 = pneg %p85
      %p427 = pneg %p109
      %p428 = pneg %p106
      %p429 = pneg %p130
      %p430 = pneg %p127
      %p431 = pneg %p151
      %p432 = pneg %p148
      %p433 = pneg %p172
      %p434 = pneg %p169
      %p435 = pneg %p193
      %p436 = pneg %p190
      %p437 = pneg %p214
      %p438 = pneg %p211
      %p439 = scmp.lt.s32.totalorder %s25, 1
      %s440 = scalar_select %p439, %s25, 1
      %s441 = smul.addr %s440, 4
      %s442 = smul.addr %s441, 8
      %s443 = scalar_lea.vmem %s9, %s442
      %p444 = pneg %p240
      %p445 = pneg %p237
      %p446 = scmp.lt.s32.totalorder %s25, 1
      %s447 = scalar_select %p446, %s25, 1
      %s448 = smul.addr %s447, 4
      %s449 = smul.addr %s448, 8
      %s450 = scalar_lea.vmem %s10, %s449
      %p451 = pneg %p266
      %p452 = pneg %p263
      %p453 = pneg %p292
      %p454 = pneg %p289
      %p455 = scmp.lt.s32.totalorder %s25, 1
      %s456 = scalar_select %p455, %s25, 1
      %s457 = smul.addr %s456, 8
      %s458 = scalar_lea.vmem %s11, %s457
      %p459 = pneg %p318
      %p460 = pneg %p315
      %p461 = scmp.lt.s32.totalorder %s25, 1
      %s462 = scalar_select %p461, %s25, 1
      %s463 = smul.addr %s462, 4
      %s464 = smul.addr %s463, 8
      %s465 = scalar_lea.vmem %s12, %s464
      %p466 = pneg %p344
      %p467 = pneg %p341
      %p468 = scmp.lt.s32.totalorder %s25, 1
      %s469 = scalar_select %p468, %s25, 1
      %s470 = smul.addr %s469, 4
      %s471 = smul.addr %s470, 8
      %s472 = scalar_lea.vmem %s13, %s471
      %p473 = scmp.lt.s32.totalorder %s25, 1
      %s474 = scalar_select %p473, %s25, 1
      %s475 = smul.addr %s474, 8
      %s476 = scalar_lea.vmem %s2, %s475
      %p477 = scmp.lt.s32.totalorder %s25, 1
      %s478 = scalar_select %p477, %s25, 1
      %s479 = smul.addr %s478, 4
      %s480 = smul.addr %s479, 8
      %s481 = scalar_lea.vmem %s9, %s480
      %p482 = scmp.lt.s32.totalorder %s25, 1
      %s483 = scalar_select %p482, %s25, 1
      %s484 = smul.addr %s483, 4
      %s485 = smul.addr %s484, 8
      %s486 = scalar_lea.vmem %s10, %s485
      %p487 = scmp.lt.s32.totalorder %s25, 1
      %s488 = scalar_select %p487, %s25, 1
      %s489 = smul.addr %s488, 8
      %s490 = scalar_lea.vmem %s11, %s489
      %p491 = scmp.lt.s32.totalorder %s25, 1
      %s492 = scalar_select %p491, %s25, 1
      %s493 = smul.addr %s492, 4
      %s494 = smul.addr %s493, 8
      %s495 = scalar_lea.vmem %s12, %s494
      %p496 = scmp.lt.s32.totalorder %s25, 1
      %s497 = scalar_select %p496, %s25, 1
      %s498 = smul.addr %s497, 4
      %s499 = smul.addr %s498, 8
      %s500 = scalar_lea.vmem %s13, %s499
      %v502 = vld [vmem:[%s476] sm:$0xff]
      %v503 = vld [vmem:[%s7] sm:$0x1]
      %v504 = vmul.f32 %v502, %v502
      %505 = vadd.xlane.f32.xlu0 %v504
      %v506 = vpop.xlane.xlu0 %505
      %v507 = vrcp.pop 128.0
      %v508 = vmul.f32 %v506, %v507
      %v509 = vadd.f32 %v508, 1e-06
      %v510 = vrsqrt.pop %v509
      %v511 = vmul.f32 %v502, %v510
      %v512 = vadd.f32 %v503, 1.0
      %v514 = vlaneseq
      %v515 = vshrl.u32 %v514, 7
      %v516 = vsub.s32 0, %v515
      %v517 = vrot.slane %v512, %v516
      %v519 = vmul.f32 %v511, %v517
      %v520 = vpack.c.bf16 %v519, %v519
      %v521 = vld [vmem:[%s5] sm:$0xff]
      %v522 = vld [vmem:[%s5 + $0x8] sm:$0xff]
      %v523 = vld [vmem:[%s5 + $0x10] sm:$0xff]
      %v524 = vld [vmem:[%s5 + $0x18] sm:$0xff]
      %v525 = vld [vmem:[%s5 + $0x20] sm:$0xff]
      %v526 = vld [vmem:[%s5 + $0x28] sm:$0xff]
      %v527 = vld [vmem:[%s5 + $0x30] sm:$0xff]
      %v528 = vld [vmem:[%s5 + $0x38] sm:$0xff]
      %v529 = vld [vmem:[%s5 + $0x40] sm:$0xff]
      %v530 = vld [vmem:[%s5 + $0x48] sm:$0xff]
      %v531 = vld [vmem:[%s5 + $0x50] sm:$0xff]
      %v532 = vld [vmem:[%s5 + $0x58] sm:$0xff]
      %v533 = vld [vmem:[%s5 + $0x60] sm:$0xff]
      %v534 = vld [vmem:[%s5 + $0x68] sm:$0xff]
      %v535 = vld [vmem:[%s5 + $0x70] sm:$0xff]
      %v536 = vld [vmem:[%s5 + $0x78] sm:$0xff]
      %v553 = vunpack.c.l.b16 %v521
      %v554 = vunpack.c.h.b16 %v521
      %v555 = vunpack.c.l.b16 %v522
      %v556 = vunpack.c.h.b16 %v522
      %v557 = vunpack.c.l.b16 %v523
      %v558 = vunpack.c.h.b16 %v523
      %v559 = vunpack.c.l.b16 %v524
      %v560 = vunpack.c.h.b16 %v524
      %v561 = vunpack.c.l.b16 %v525
      %v562 = vunpack.c.h.b16 %v525
      %v563 = vunpack.c.l.b16 %v526
      %v564 = vunpack.c.h.b16 %v526
      %v565 = vunpack.c.l.b16 %v527
      %v566 = vunpack.c.h.b16 %v527
      %v567 = vunpack.c.l.b16 %v528
      %v568 = vunpack.c.h.b16 %v528
      %v569 = vunpack.c.l.b16 %v529
      %v570 = vunpack.c.h.b16 %v529
      %v571 = vunpack.c.l.b16 %v530
      %v572 = vunpack.c.h.b16 %v530
      %v573 = vunpack.c.l.b16 %v531
      %v574 = vunpack.c.h.b16 %v531
      %v575 = vunpack.c.l.b16 %v532
      %v576 = vunpack.c.h.b16 %v532
      %v577 = vunpack.c.l.b16 %v533
      %v578 = vunpack.c.h.b16 %v533
      %v579 = vunpack.c.l.b16 %v534
      %v580 = vunpack.c.h.b16 %v534
      %v581 = vunpack.c.l.b16 %v535
      %v582 = vunpack.c.h.b16 %v535
      %v583 = vunpack.c.l.b16 %v536
      %v584 = vunpack.c.h.b16 %v536
      %v585 = vpack.c.b16 %v555, %v553
      %v586 = vpack.c.b16 %v556, %v554
      %v587 = vpack.c.b16 %v559, %v557
      %v588 = vpack.c.b16 %v560, %v558
      %v589 = vpack.c.b16 %v563, %v561
      %v590 = vpack.c.b16 %v564, %v562
      %v591 = vpack.c.b16 %v567, %v565
      %v592 = vpack.c.b16 %v568, %v566
      %v593 = vpack.c.b16 %v571, %v569
      %v594 = vpack.c.b16 %v572, %v570
      %v595 = vpack.c.b16 %v575, %v573
      %v596 = vpack.c.b16 %v576, %v574
      %v597 = vpack.c.b16 %v579, %v577
      %v598 = vpack.c.b16 %v580, %v578
      %v599 = vpack.c.b16 %v583, %v581
      %v600 = vpack.c.b16 %v584, %v582
      %617 = vmatprep.subr.bf16.mxu0 %v586
      %618 = vmatpush1.bf16.msra.mxu0 %v585
      %619 = vmatprep.subr.bf16.mxu0 %v588
      %620 = vmatpush1.bf16.msra.mxu0 %v587
      %621 = vmatprep.subr.bf16.mxu0 %v590
      %622 = vmatpush1.bf16.msra.mxu0 %v589
      %623 = vmatprep.subr.bf16.mxu0 %v592
      %624 = vmatpush1.bf16.msra.mxu0 %v591
      %625 = vmatprep.subr.bf16.mxu0 %v594
      %626 = vmatpush1.bf16.msra.mxu0 %v593
      %627 = vmatprep.subr.bf16.mxu0 %v596
      %628 = vmatpush1.bf16.msra.mxu0 %v595
      %629 = vmatprep.subr.bf16.mxu0 %v598
      %630 = vmatpush1.bf16.msra.mxu0 %v597
      %631 = vmatprep.subr.bf16.mxu0 %v600
      %632 = vmatpush1.bf16.msra.mxu0 %v599
      %633 = vmatprep.subr.bf16.mxu0 0
      %634 = vmatpush1.bf16.msra.mxu0 0
      %635 = vmatprep.subr.bf16.mxu0 0
      %636 = vmatpush1.bf16.msra.mxu0 0
      %637 = vmatprep.subr.bf16.mxu0 0
      %638 = vmatpush1.bf16.msra.mxu0 0
      %639 = vmatprep.subr.bf16.mxu0 0
      %640 = vmatpush1.bf16.msra.mxu0 0
      %641 = vmatprep.subr.bf16.mxu0 0
      %642 = vmatpush1.bf16.msra.mxu0 0
      %643 = vmatprep.subr.bf16.mxu0 0
      %644 = vmatpush1.bf16.msra.mxu0 0
      %645 = vmatprep.subr.bf16.mxu0 0
      %646 = vmatpush1.bf16.msra.mxu0 0
      %647 = vmatprep.subr.bf16.mxu0 0
      %648 = vmatpush1.bf16.msra.mxu0 0
      %649 = vmatprep.mubr.bf16.mxu0 0
      %650 = vmatmul.mubr.bf16.gmra.mrb[0].mxu0 %v520
      %v651 = vpop.f32.mrb[0].mxu0
      %v652 = vadd.f32 0.0, %v651
      %v653 = vpop.f32.mrb[0].mxu0
      %v654 = vadd.f32 0.0, %v653
      %v655 = vpop.f32.mrb[0].mxu0
      %v656 = vpop.f32.mrb[0].mxu0
      %657 = vdwg.mxu0
      %v658 = vld [vmem:[%s3] sm:$0xff]
      %v659 = vld [vmem:[%s4] sm:$0xff]
      %v660 = vmul.f32 %v652, %v658
      %662 = vrot.lane.b32.xlu0 %v659, 16
      %v663 = vpop.permute.xlu0 %662
      %v665 = vmul.f32 %v652, %v663
      %667 = vrot.lane.b32.xlu0 %v665, 112
      %v668 = vpop.permute.xlu0 %667
      %v670 = vsub.f32 %v660, %v668
      %v671 = vmul.f32 %v652, %v659
      %673 = vrot.lane.b32.xlu0 %v658, 16
      %v674 = vpop.permute.xlu0 %673
      %v676 = vmul.f32 %v652, %v674
      %678 = vrot.lane.b32.xlu0 %v676, 112
      %v679 = vpop.permute.xlu0 %678
      %v681 = vadd.f32 %v671, %v679
      %683 = vrot.lane.b32.xlu0 %v681, 16
      %v684 = vpop.permute.xlu0 %683
      %vm686 = vcmask 130048
      %v687 = vsel %vm686, %v670, %v684
      %688 = vrot.lane.b32.xlu0 %v658, 32
      %v689 = vpop.permute.xlu0 %688
      %v691 = vmul.f32 %v652, %v689
      %692 = vrot.lane.b32.xlu0 %v659, 48
      %v693 = vpop.permute.xlu0 %692
      %v695 = vmul.f32 %v652, %v693
      %697 = vrot.lane.b32.xlu0 %v695, 112
      %v698 = vpop.permute.xlu0 %697
      %v700 = vsub.f32 %v691, %v698
      %701 = vrot.lane.b32.xlu0 %v659, 32
      %v702 = vpop.permute.xlu0 %701
      %v704 = vmul.f32 %v652, %v702
      %705 = vrot.lane.b32.xlu0 %v658, 48
      %v706 = vpop.permute.xlu0 %705
      %v708 = vmul.f32 %v652, %v706
      %710 = vrot.lane.b32.xlu0 %v708, 112
      %v711 = vpop.permute.xlu0 %710
      %v713 = vadd.f32 %v704, %v711
      %715 = vrot.lane.b32.xlu0 %v700, 96
      %v716 = vpop.permute.xlu0 %715
      %719 = vrot.lane.b32.xlu0 %v713, 112
      %v720 = vpop.permute.xlu0 %719
      %v722 = vsel %vm686, %v716, %v720
      %723 = vrot.lane.b32.xlu0 %v658, 64
      %v724 = vpop.permute.xlu0 %723
      %v726 = vmul.f32 %v652, %v724
      %727 = vrot.lane.b32.xlu0 %v659, 80
      %v728 = vpop.permute.xlu0 %727
      %v730 = vmul.f32 %v652, %v728
      %732 = vrot.lane.b32.xlu0 %v730, 112
      %v733 = vpop.permute.xlu0 %732
      %v735 = vsub.f32 %v726, %v733
      %736 = vrot.lane.b32.xlu0 %v659, 64
      %v737 = vpop.permute.xlu0 %736
      %v739 = vmul.f32 %v652, %v737
      %740 = vrot.lane.b32.xlu0 %v658, 80
      %v741 = vpop.permute.xlu0 %740
      %v743 = vmul.f32 %v652, %v741
      %745 = vrot.lane.b32.xlu0 %v743, 112
      %v746 = vpop.permute.xlu0 %745
      %v748 = vadd.f32 %v739, %v746
      %750 = vrot.lane.b32.xlu0 %v735, 64
      %v751 = vpop.permute.xlu0 %750
      %754 = vrot.lane.b32.xlu0 %v748, 80
      %v755 = vpop.permute.xlu0 %754
      %v757 = vsel %vm686, %v751, %v755
      %758 = vrot.lane.b32.xlu0 %v658, 96
      %v759 = vpop.permute.xlu0 %758
      %v761 = vmul.f32 %v652, %v759
      %762 = vrot.lane.b32.xlu0 %v659, 112
      %v763 = vpop.permute.xlu0 %762
      %v765 = vmul.f32 %v652, %v763
      %767 = vrot.lane.b32.xlu0 %v765, 112
      %v768 = vpop.permute.xlu0 %767
      %v770 = vsub.f32 %v761, %v768
      %771 = vrot.lane.b32.xlu0 %v659, 96
      %v772 = vpop.permute.xlu0 %771
      %v774 = vmul.f32 %v652, %v772
      %775 = vrot.lane.b32.xlu0 %v658, 112
      %v776 = vpop.permute.xlu0 %775
      %v778 = vmul.f32 %v652, %v776
      %780 = vrot.lane.b32.xlu0 %v778, 112
      %v781 = vpop.permute.xlu0 %780
      %v783 = vadd.f32 %v774, %v781
      %785 = vrot.lane.b32.xlu0 %v770, 32
      %v786 = vpop.permute.xlu0 %785
      %789 = vrot.lane.b32.xlu0 %v783, 48
      %v790 = vpop.permute.xlu0 %789
      %v792 = vsel %vm686, %v786, %v790
      %v793 = vmul.f32 %v654, %v658
      %v794 = vmul.f32 %v654, %v663
      %796 = vrot.lane.b32.xlu0 %v794, 112
      %v797 = vpop.permute.xlu0 %796
      %v799 = vsub.f32 %v793, %v797
      %v800 = vmul.f32 %v654, %v659
      %v801 = vmul.f32 %v654, %v674
      %803 = vrot.lane.b32.xlu0 %v801, 112
      %v804 = vpop.permute.xlu0 %803
      %v806 = vadd.f32 %v800, %v804
      %808 = vrot.lane.b32.xlu0 %v806, 16
      %v809 = vpop.permute.xlu0 %808
      %v811 = vsel %vm686, %v799, %v809
      %v812 = vmul.f32 %v654, %v689
      %v813 = vmul.f32 %v654, %v693
      %815 = vrot.lane.b32.xlu0 %v813, 112
      %v816 = vpop.permute.xlu0 %815
      %v818 = vsub.f32 %v812, %v816
      %v819 = vmul.f32 %v654, %v702
      %v820 = vmul.f32 %v654, %v706
      %822 = vrot.lane.b32.xlu0 %v820, 112
      %v823 = vpop.permute.xlu0 %822
      %v825 = vadd.f32 %v819, %v823
      %827 = vrot.lane.b32.xlu0 %v818, 96
      %v828 = vpop.permute.xlu0 %827
      %831 = vrot.lane.b32.xlu0 %v825, 112
      %v832 = vpop.permute.xlu0 %831
      %v834 = vsel %vm686, %v828, %v832
      %v835 = vld [vmem:[%s0] sm:$0xff]
      %v836 = vld [vmem:[%s1] sm:$0x1]
      %v837 = vlaneseq
      %v838 = vshrl.u32 %v837, 7
      %v839 = vadd.s32 %v838, 8
      %v840 = vlaneseq
      %v841 = vshrl.u32 %v840, 7
      %v842 = vsub.s32 0, %v841
      %v843 = vrot.slane %v836, %v842
      %vm844 = vcmp.eq.s32.totalorder %v838, %v843
      %vm845 = vcmp.eq.s32.totalorder %v839, %v843
      %v846 = vsel %vm844, 1, 0
      %v847 = vsel %vm845, 1, 0
      %v848 = vcvt.s32.f32 %v846
      %v849 = vcvt.s32.f32 %v847
      %vm850 = vcmask 64512
      %v851 = vsel %vm850, %v848, 0.0
      %852 = vadd.xlane.f32.xlu0 %v851
      %v853 = vpop.xlane.xlu0 %852
      %v854 = vsel %vm850, %v849, 0.0
      %855 = vadd.xlane.f32.xlu0 %v854
      %v856 = vpop.xlane.xlu0 %855
      %v857 = vlaneseq
      %v858 = vand.u32 %v857, 127
      %859 = vset.pattern.permute.xlu0 0
      %860 = vperm.xlu0 %859, %v835
      %v861 = vpop.permute.xlu0 %860
      %vm862 = vcmp.le.s32.totalorder %v858, %v861
      %v863 = vsub.s32 %v835, 4
      %864 = vset.pattern.permute.xlu0 0
      %865 = vperm.xlu0 %864, %v863
      %v866 = vpop.permute.xlu0 %865
      %vm867 = vcmp.gt.s32.totalorder %v858, %v866
      %vm868 = vmand %vm862, %vm867
      %v869 = vsel %vm868, 0.0, -2.3819763e+38
      %v871 = vsel %vm850, %v848, 0
      %v874 = vsel %vm850, %v849, 0
      %876 = vmatprep.subr.mxu0 0.0
      %877 = vmatpush1.msra.mxu0 %v811
      %878 = vmatprep.subr.mxu0 0.0
      %879 = vmatpush1.msra.mxu0 0.0
      %880 = vmatprep.subr.mxu0 0.0
      %881 = vmatpush1.msra.mxu0 0.0
      %882 = vmatprep.subr.mxu0 0.0
      %883 = vmatpush1.msra.mxu0 0.0
      %884 = vmatprep.subr.mxu0 0.0
      %885 = vmatpush1.msra.mxu0 0.0
      %886 = vmatprep.subr.mxu0 0.0
      %887 = vmatpush1.msra.mxu0 0.0
      %888 = vmatprep.subr.mxu0 0.0
      %889 = vmatpush1.msra.mxu0 0.0
      %890 = vmatprep.subr.mxu0 0.0
      %891 = vmatpush1.msra.mxu0 0.0
      %892 = vmatprep.subr.mxu0 0.0
      %893 = vmatpush1.msra.mxu0 0.0
      %894 = vmatprep.subr.mxu0 0.0
      %895 = vmatpush1.msra.mxu0 0.0
      %896 = vmatprep.subr.mxu0 0.0
      %897 = vmatpush1.msra.mxu0 0.0
      %898 = vmatprep.subr.mxu0 0.0
      %899 = vmatpush1.msra.mxu0 0.0
      %900 = vmatprep.subr.mxu0 0.0
      %901 = vmatpush1.msra.mxu0 0.0
      %902 = vmatprep.subr.mxu0 0.0
      %903 = vmatpush1.msra.mxu0 0.0
      %904 = vmatprep.subr.mxu0 0.0
      %905 = vmatpush1.msra.mxu0 0.0
      %906 = vmatprep.subr.mxu0 0.0
      %907 = vmatpush1.msra.mxu0 0.0
      %908 = vmatprep.subr.mxu0 0.0
      %909 = vmatpush1.msra.mxu0 0.0
      %910 = vmatprep.subr.mxu0 0.0
      %911 = vmatpush1.msra.mxu0 0.0
      %912 = vmatprep.subr.mxu0 0.0
      %913 = vmatpush1.msra.mxu0 0.0
      %914 = vmatprep.subr.mxu0 0.0
      %915 = vmatpush1.msra.mxu0 0.0
      %916 = vmatprep.subr.mxu0 0.0
      %917 = vmatpush1.msra.mxu0 0.0
      %918 = vmatprep.subr.mxu0 0.0
      %919 = vmatpush1.msra.mxu0 0.0
      %920 = vmatprep.subr.mxu0 0.0
      %921 = vmatpush1.msra.mxu0 0.0
      %922 = vmatprep.subr.mxu0 0.0
      %923 = vmatpush1.msra.mxu0 0.0
      %924 = vmatprep.subr.mxu0 0.0
      %925 = vmatpush1.msra.mxu0 0.0
      %926 = vmatprep.subr.mxu0 0.0
      %927 = vmatpush1.msra.mxu0 0.0
      %928 = vmatprep.subr.mxu0 0.0
      %929 = vmatpush1.msra.mxu0 0.0
      %930 = vmatprep.subr.mxu0 0.0
      %931 = vmatpush1.msra.mxu0 0.0
      %932 = vmatprep.subr.mxu0 0.0
      %933 = vmatpush1.msra.mxu0 0.0
      %934 = vmatprep.subr.mxu0 0.0
      %935 = vmatpush1.msra.mxu0 0.0
      %936 = vmatprep.subr.mxu0 0.0
      %937 = vmatpush1.msra.mxu0 0.0
      %938 = vmatprep.subr.mxu0 0.0
      %939 = vmatpush1.msra.mxu0 0.0
      %940 = vmatprep.mubr.f32.mxu0 0.0
      %941 = vmatmul.mubr.f32.gmra.mrb[0].mxu0 %v871
      %v942 = vpop.f32.mrb[0].mxu0
      %v943 = vadd.f32 0.0, %v942
      %v944 = vpop.f32.mrb[0].mxu0
      %945 = vmatprep.mubr.f32.mxu0 0.0
      %946 = vmatmul.mubr.f32.gmra.mrb[0].mxu0 %v874
      %v947 = vpop.f32.mrb[0].mxu0
      %v948 = vadd.f32 0.0, %v947
      %v949 = vpop.f32.mrb[0].mxu0
      %950 = vdwg.mxu0
      %952 = vrot.lane.b32.xlu0 %v654, 64
      %v953 = vpop.permute.xlu0 %952
      %955 = vmatprep.subr.mxu0 0.0
      %956 = vmatpush1.msra.mxu0 %v953
      %957 = vmatprep.subr.mxu0 0.0
      %958 = vmatpush1.msra.mxu0 0.0
      %959 = vmatprep.subr.mxu0 0.0
      %960 = vmatpush1.msra.mxu0 0.0
      %961 = vmatprep.subr.mxu0 0.0
      %962 = vmatpush1.msra.mxu0 0.0
      %963 = vmatprep.subr.mxu0 0.0
      %964 = vmatpush1.msra.mxu0 0.0
      %965 = vmatprep.subr.mxu0 0.0
      %966 = vmatpush1.msra.mxu0 0.0
      %967 = vmatprep.subr.mxu0 0.0
      %968 = vmatpush1.msra.mxu0 0.0
      %969 = vmatprep.subr.mxu0 0.0
      %970 = vmatpush1.msra.mxu0 0.0
      %971 = vmatprep.subr.mxu0 0.0
      %972 = vmatpush1.msra.mxu0 0.0
      %973 = vmatprep.subr.mxu0 0.0
      %974 = vmatpush1.msra.mxu0 0.0
      %975 = vmatprep.subr.mxu0 0.0
      %976 = vmatpush1.msra.mxu0 0.0
      %977 = vmatprep.subr.mxu0 0.0
      %978 = vmatpush1.msra.mxu0 0.0
      %979 = vmatprep.subr.mxu0 0.0
      %980 = vmatpush1.msra.mxu0 0.0
      %981 = vmatprep.subr.mxu0 0.0
      %982 = vmatpush1.msra.mxu0 0.0
      %983 = vmatprep.subr.mxu0 0.0
      %984 = vmatpush1.msra.mxu0 0.0
      %985 = vmatprep.subr.mxu0 0.0
      %986 = vmatpush1.msra.mxu0 0.0
      %987 = vmatprep.subr.mxu0 0.0
      %988 = vmatpush1.msra.mxu0 0.0
      %989 = vmatprep.subr.mxu0 0.0
      %990 = vmatpush1.msra.mxu0 0.0
      %991 = vmatprep.subr.mxu0 0.0
      %992 = vmatpush1.msra.mxu0 0.0
      %993 = vmatprep.subr.mxu0 0.0
      %994 = vmatpush1.msra.mxu0 0.0
      %995 = vmatprep.subr.mxu0 0.0
      %996 = vmatpush1.msra.mxu0 0.0
      %997 = vmatprep.subr.mxu0 0.0
      %998 = vmatpush1.msra.mxu0 0.0
      %999 = vmatprep.subr.mxu0 0.0
      %1000 = vmatpush1.msra.mxu0 0.0
      %1001 = vmatprep.subr.mxu0 0.0
      %1002 = vmatpush1.msra.mxu0 0.0
      %1003 = vmatprep.subr.mxu0 0.0
      %1004 = vmatpush1.msra.mxu0 0.0
      %1005 = vmatprep.subr.mxu0 0.0
      %1006 = vmatpush1.msra.mxu0 0.0
      %1007 = vmatprep.subr.mxu0 0.0
      %1008 = vmatpush1.msra.mxu0 0.0
      %1009 = vmatprep.subr.mxu0 0.0
      %1010 = vmatpush1.msra.mxu0 0.0
      %1011 = vmatprep.subr.mxu0 0.0
      %1012 = vmatpush1.msra.mxu0 0.0
      %1013 = vmatprep.subr.mxu0 0.0
      %1014 = vmatpush1.msra.mxu0 0.0
      %1015 = vmatprep.subr.mxu0 0.0
      %1016 = vmatpush1.msra.mxu0 0.0
      %1017 = vmatprep.subr.mxu0 0.0
      %1018 = vmatpush1.msra.mxu0 0.0
      %1019 = vmatprep.mubr.f32.mxu0 0.0
      %1020 = vmatmul.mubr.f32.gmra.mrb[0].mxu0 %v871
      %v1021 = vpop.f32.mrb[0].mxu0
      %v1022 = vadd.f32 0.0, %v1021
      %v1023 = vpop.f32.mrb[0].mxu0
      %1024 = vmatprep.mubr.f32.mxu0 0.0
      %1025 = vmatmul.mubr.f32.gmra.mrb[0].mxu0 %v874
      %v1026 = vpop.f32.mrb[0].mxu0
      %v1027 = vadd.f32 0.0, %v1026
      %v1028 = vpop.f32.mrb[0].mxu0
      %1029 = vdwg.mxu0
      %vm1030 = vcmp.gt.f32.partialorder %v853, 0.5
      %vm1031 = vcmp.gt.f32.partialorder %v856, 0.5
      %v1032 = vld [vmem:[%s481] sm:$0xff]
      %v1033 = vld [vmem:[%s481 + $0x8] sm:$0xff]
      %v1034 = vsel %vm1030, 1, 0
      %v1035 = vsel %vm1031, 1, 0
      %vm1036 = vcmp.eq.s32.totalorder %v1034, 1
      %vm1037 = vcmp.eq.s32.totalorder %v1035, 1
      %v1038 = vsel %vm1036, %v943, %v1032
      %v1039 = vsel %vm1037, %v948, %v1033
      %v1040 = vld [vmem:[%s486] sm:$0xff]
      %v1041 = vld [vmem:[%s486 + $0x8] sm:$0xff]
      %v1042 = vsel %vm1036, %v1022, %v1040
      %v1043 = vsel %vm1037, %v1027, %v1041
      %vm1044 = vcmask 261120
      %1045 = vst.msk [vmem:[%s495] sm:$0xff] %vm1044, %v1038
      %1046 = vst.msk [vmem:[%s495 + $0x8] sm:$0xff] %vm1044, %v1039
      %1047 = vst.msk [vmem:[%s500] sm:$0xff] %vm1044, %v1042
      %1048 = vst.msk [vmem:[%s500 + $0x8] sm:$0xff] %vm1044, %v1043
      %v1049 = vpack.c.bf16 %v722, %v687
      %v1050 = vpack.c.bf16 %v1039, %v1038
      %v1052 = vsel %vm1044, %v1049, 0
      %v1055 = vsel %vm1044, %v1050, 0
      %1057 = vmatprep.subr.bf16.mxu0 0
      %1058 = vmatpush1.bf16.xpose.msra.mxu0 %v1055
      %1059 = vmatprep.subr.bf16.mxu0 0
      %1060 = vmatpush1.bf16.xpose.msra.mxu0 0
      %1061 = vmatprep.subr.bf16.mxu0 0
      %1062 = vmatpush1.bf16.xpose.msra.mxu0 0
      %1063 = vmatprep.subr.bf16.mxu0 0
      %1064 = vmatpush1.bf16.xpose.msra.mxu0 0
      %1065 = vmatprep.subr.bf16.mxu0 0
      %1066 = vmatpush1.bf16.xpose.msra.mxu0 0
      %1067 = vmatprep.subr.bf16.mxu0 0
      %1068 = vmatpush1.bf16.xpose.msra.mxu0 0
      %1069 = vmatprep.subr.bf16.mxu0 0
      %1070 = vmatpush1.bf16.xpose.msra.mxu0 0
      %1071 = vmatprep.subr.bf16.mxu0 0
      %1072 = vmatpush1.bf16.xpose.msra.mxu0 0
      %1073 = vmatprep.subr.bf16.mxu0 0
      %1074 = vmatpush1.bf16.xpose.msra.mxu0 0
      %1075 = vmatprep.subr.bf16.mxu0 0
      %1076 = vmatpush1.bf16.xpose.msra.mxu0 0
      %1077 = vmatprep.subr.bf16.mxu0 0
      %1078 = vmatpush1.bf16.xpose.msra.mxu0 0
      %1079 = vmatprep.subr.bf16.mxu0 0
      %1080 = vmatpush1.bf16.xpose.msra.mxu0 0
      %1081 = vmatprep.subr.bf16.mxu0 0
      %1082 = vmatpush1.bf16.xpose.msra.mxu0 0
      %1083 = vmatprep.subr.bf16.mxu0 0
      %1084 = vmatpush1.bf16.xpose.msra.mxu0 0
      %1085 = vmatprep.subr.bf16.mxu0 0
      %1086 = vmatpush1.bf16.xpose.msra.mxu0 0
      %1087 = vmatprep.subr.bf16.mxu0 0
      %1088 = vmatpush1.bf16.xpose.msra.mxu0 0
      %1089 = vmatprep.mubr.bf16.mxu0 0
      %1090 = vmatmul.mubr.bf16.gmra.mrb[0].mxu0 %v1052
      %v1091 = vpop.f32.mrb[0].mxu0
      %v1092 = vadd.f32 0.0, %v1091
      %v1093 = vpop.f32.mrb[0].mxu0
      %v1094 = vpop.f32.mrb[0].mxu0
      %v1095 = vadd.f32 0.0, %v1094
      %v1096 = vpop.f32.mrb[0].mxu0
      %1097 = vdwg.mxu0
      %v1098 = vmul.f32 %v1092, 0.17677669
      %v1099 = vmul.f32 %v1095, 0.17677669
      %v1100 = vmul.f32 %v1098, 0.02
      %v1101 = vmul.f32 %v1099, 0.02
      %v1102 = vtanh.pop %v1100
      %v1103 = vtanh.pop %v1101
      %v1104 = vmul.f32 %v1102, 50.0
      %v1105 = vmul.f32 %v1103, 50.0
      %v1106 = vadd.f32 %v1104, %v869
      %v1107 = vadd.f32 %v1105, %v869
      %v1108 = vsel %vm686, %v1106, -inf
      %1109 = vmax.xlane.f32.xlu0 %v1108
      %v1110 = vpop.xlane.xlu0 %1109
      %v1111 = vsel %vm686, %v1107, -inf
      %1112 = vmax.xlane.f32.xlu0 %v1111
      %v1113 = vpop.xlane.xlu0 %1112
      %v1114 = vsub.f32 %v1106, %v1110
      %v1115 = vsub.f32 %v1107, %v1113
      %v1116 = vmul.f32 %v1114, 1.442695
      %v1117 = vpow.pop %v1116
      %v1118 = vmul.f32 %v1115, 1.442695
      %v1119 = vpow.pop %v1118
      %v1120 = vsel %vm686, %v1117, 0.0
      %1121 = vadd.xlane.f32.xlu0 %v1120
      %v1122 = vpop.xlane.xlu0 %1121
      %v1123 = vsel %vm686, %v1119, 0.0
      %1124 = vadd.xlane.f32.xlu0 %v1123
      %v1125 = vpop.xlane.xlu0 %1124
      %v1126 = vrcp.pop %v1122
      %v1127 = vrcp.pop %v1125
      %v1128 = vmul.f32 %v1117, %v1126
      %v1129 = vmul.f32 %v1119, %v1127
      %v1130 = vpack.c.bf16 %v1129, %v1128
      %v1131 = vpack.c.bf16 %v1043, %v1042
      %v1133 = vsel %vm686, %v1130, 0
      %1135 = vmatprep.subr.bf16.mxu0 0
      %1136 = vmatpush1.bf16.msra.mxu0 %v1131
      %1137 = vmatprep.subr.bf16.mxu0 0
      %1138 = vmatpush1.bf16.msra.mxu0 0
      %1139 = vmatprep.subr.bf16.mxu0 0
      %1140 = vmatpush1.bf16.msra.mxu0 0
      %1141 = vmatprep.subr.bf16.mxu0 0
      %1142 = vmatpush1.bf16.msra.mxu0 0
      %1143 = vmatprep.subr.bf16.mxu0 0
      %1144 = vmatpush1.bf16.msra.mxu0 0
      %1145 = vmatprep.subr.bf16.mxu0 0
      %1146 = vmatpush1.bf16.msra.mxu0 0
      %1147 = vmatprep.subr.bf16.mxu0 0
      %1148 = vmatpush1.bf16.msra.mxu0 0
      %1149 = vmatprep.subr.bf16.mxu0 0
      %1150 = vmatpush1.bf16.msra.mxu0 0
      %1151 = vmatprep.subr.bf16.mxu0 0
      %1152 = vmatpush1.bf16.msra.mxu0 0
      %1153 = vmatprep.subr.bf16.mxu0 0
      %1154 = vmatpush1.bf16.msra.mxu0 0
      %1155 = vmatprep.subr.bf16.mxu0 0
      %1156 = vmatpush1.bf16.msra.mxu0 0
      %1157 = vmatprep.subr.bf16.mxu0 0
      %1158 = vmatpush1.bf16.msra.mxu0 0
      %1159 = vmatprep.subr.bf16.mxu0 0
      %1160 = vmatpush1.bf16.msra.mxu0 0
      %1161 = vmatprep.subr.bf16.mxu0 0
      %1162 = vmatpush1.bf16.msra.mxu0 0
      %1163 = vmatprep.subr.bf16.mxu0 0
      %1164 = vmatpush1.bf16.msra.mxu0 0
      %1165 = vmatprep.subr.bf16.mxu0 0
      %1166 = vmatpush1.bf16.msra.mxu0 0
      %1167 = vmatprep.mubr.bf16.mxu0 0
      %1168 = vmatmul.mubr.bf16.gmra.mrb[0].mxu0 %v1133
      %v1169 = vpop.f32.mrb[0].mxu0
      %v1170 = vadd.f32 0.0, %v1169
      %v1171 = vpop.f32.mrb[0].mxu0
      %v1172 = vpop.f32.mrb[0].mxu0
      %v1173 = vadd.f32 0.0, %v1172
      %v1174 = vpop.f32.mrb[0].mxu0
      %1175 = vdwg.mxu0
      %1176 = vmatprep.subr.mxu0 0.0
      %1177 = vmatpush1.msra.mxu0 %v834
      %1178 = vmatprep.subr.mxu0 0.0
      %1179 = vmatpush1.msra.mxu0 0.0
      %1180 = vmatprep.subr.mxu0 0.0
      %1181 = vmatpush1.msra.mxu0 0.0
      %1182 = vmatprep.subr.mxu0 0.0
      %1183 = vmatpush1.msra.mxu0 0.0
      %1184 = vmatprep.subr.mxu0 0.0
      %1185 = vmatpush1.msra.mxu0 0.0
      %1186 = vmatprep.subr.mxu0 0.0
      %1187 = vmatpush1.msra.mxu0 0.0
      %1188 = vmatprep.subr.mxu0 0.0
      %1189 = vmatpush1.msra.mxu0 0.0
      %1190 = vmatprep.subr.mxu0 0.0
      %1191 = vmatpush1.msra.mxu0 0.0
      %1192 = vmatprep.subr.mxu0 0.0
      %1193 = vmatpush1.msra.mxu0 0.0
      %1194 = vmatprep.subr.mxu0 0.0
      %1195 = vmatpush1.msra.mxu0 0.0
      %1196 = vmatprep.subr.mxu0 0.0
      %1197 = vmatpush1.msra.mxu0 0.0
      %1198 = vmatprep.subr.mxu0 0.0
      %1199 = vmatpush1.msra.mxu0 0.0
      %1200 = vmatprep.subr.mxu0 0.0
      %1201 = vmatpush1.msra.mxu0 0.0
      %1202 = vmatprep.subr.mxu0 0.0
      %1203 = vmatpush1.msra.mxu0 0.0
      %1204 = vmatprep.subr.mxu0 0.0
      %1205 = vmatpush1.msra.mxu0 0.0
      %1206 = vmatprep.subr.mxu0 0.0
      %1207 = vmatpush1.msra.mxu0 0.0
      %1208 = vmatprep.subr.mxu0 0.0
      %1209 = vmatpush1.msra.mxu0 0.0
      %1210 = vmatprep.subr.mxu0 0.0
      %1211 = vmatpush1.msra.mxu0 0.0
      %1212 = vmatprep.subr.mxu0 0.0
      %1213 = vmatpush1.msra.mxu0 0.0
      %1214 = vmatprep.subr.mxu0 0.0
      %1215 = vmatpush1.msra.mxu0 0.0
      %1216 = vmatprep.subr.mxu0 0.0
      %1217 = vmatpush1.msra.mxu0 0.0
      %1218 = vmatprep.subr.mxu0 0.0
      %1219 = vmatpush1.msra.mxu0 0.0
      %1220 = vmatprep.subr.mxu0 0.0
      %1221 = vmatpush1.msra.mxu0 0.0
      %1222 = vmatprep.subr.mxu0 0.0
      %1223 = vmatpush1.msra.mxu0 0.0
      %1224 = vmatprep.subr.mxu0 0.0
      %1225 = vmatpush1.msra.mxu0 0.0
      %1226 = vmatprep.subr.mxu0 0.0
      %1227 = vmatpush1.msra.mxu0 0.0
      %1228 = vmatprep.subr.mxu0 0.0
      %1229 = vmatpush1.msra.mxu0 0.0
      %1230 = vmatprep.subr.mxu0 0.0
      %1231 = vmatpush1.msra.mxu0 0.0
      %1232 = vmatprep.subr.mxu0 0.0
      %1233 = vmatpush1.msra.mxu0 0.0
      %1234 = vmatprep.subr.mxu0 0.0
      %1235 = vmatpush1.msra.mxu0 0.0
      %1236 = vmatprep.subr.mxu0 0.0
      %1237 = vmatpush1.msra.mxu0 0.0
      %1238 = vmatprep.subr.mxu0 0.0
      %1239 = vmatpush1.msra.mxu0 0.0
      %1240 = vmatprep.mubr.f32.mxu0 0.0
      %1241 = vmatmul.mubr.f32.gmra.mrb[0].mxu0 %v871
      %v1242 = vpop.f32.mrb[0].mxu0
      %v1243 = vadd.f32 0.0, %v1242
      %v1244 = vpop.f32.mrb[0].mxu0
      %1245 = vmatprep.mubr.f32.mxu0 0.0
      %1246 = vmatmul.mubr.f32.gmra.mrb[0].mxu0 %v874
      %v1247 = vpop.f32.mrb[0].mxu0
      %v1248 = vadd.f32 0.0, %v1247
      %v1249 = vpop.f32.mrb[0].mxu0
      %1250 = vdwg.mxu0
      %1251 = vrot.lane.b32.xlu0 %v654, 32
      %v1252 = vpop.permute.xlu0 %1251
      %1254 = vmatprep.subr.mxu0 0.0
      %1255 = vmatpush1.msra.mxu0 %v1252
      %1256 = vmatprep.subr.mxu0 0.0
      %1257 = vmatpush1.msra.mxu0 0.0
      %1258 = vmatprep.subr.mxu0 0.0
      %1259 = vmatpush1.msra.mxu0 0.0
      %1260 = vmatprep.subr.mxu0 0.0
      %1261 = vmatpush1.msra.mxu0 0.0
      %1262 = vmatprep.subr.mxu0 0.0
      %1263 = vmatpush1.msra.mxu0 0.0
      %1264 = vmatprep.subr.mxu0 0.0
      %1265 = vmatpush1.msra.mxu0 0.0
      %1266 = vmatprep.subr.mxu0 0.0
      %1267 = vmatpush1.msra.mxu0 0.0
      %1268 = vmatprep.subr.mxu0 0.0
      %1269 = vmatpush1.msra.mxu0 0.0
      %1270 = vmatprep.subr.mxu0 0.0
      %1271 = vmatpush1.msra.mxu0 0.0
      %1272 = vmatprep.subr.mxu0 0.0
      %1273 = vmatpush1.msra.mxu0 0.0
      %1274 = vmatprep.subr.mxu0 0.0
      %1275 = vmatpush1.msra.mxu0 0.0
      %1276 = vmatprep.subr.mxu0 0.0
      %1277 = vmatpush1.msra.mxu0 0.0
      %1278 = vmatprep.subr.mxu0 0.0
      %1279 = vmatpush1.msra.mxu0 0.0
      %1280 = vmatprep.subr.mxu0 0.0
      %1281 = vmatpush1.msra.mxu0 0.0
      %1282 = vmatprep.subr.mxu0 0.0
      %1283 = vmatpush1.msra.mxu0 0.0
      %1284 = vmatprep.subr.mxu0 0.0
      %1285 = vmatpush1.msra.mxu0 0.0
      %1286 = vmatprep.subr.mxu0 0.0
      %1287 = vmatpush1.msra.mxu0 0.0
      %1288 = vmatprep.subr.mxu0 0.0
      %1289 = vmatpush1.msra.mxu0 0.0
      %1290 = vmatprep.subr.mxu0 0.0
      %1291 = vmatpush1.msra.mxu0 0.0
      %1292 = vmatprep.subr.mxu0 0.0
      %1293 = vmatpush1.msra.mxu0 0.0
      %1294 = vmatprep.subr.mxu0 0.0
      %1295 = vmatpush1.msra.mxu0 0.0
      %1296 = vmatprep.subr.mxu0 0.0
      %1297 = vmatpush1.msra.mxu0 0.0
      %1298 = vmatprep.subr.mxu0 0.0
      %1299 = vmatpush1.msra.mxu0 0.0
      %1300 = vmatprep.subr.mxu0 0.0
      %1301 = vmatpush1.msra.mxu0 0.0
      %1302 = vmatprep.subr.mxu0 0.0
      %1303 = vmatpush1.msra.mxu0 0.0
      %1304 = vmatprep.subr.mxu0 0.0
      %1305 = vmatpush1.msra.mxu0 0.0
      %1306 = vmatprep.subr.mxu0 0.0
      %1307 = vmatpush1.msra.mxu0 0.0
      %1308 = vmatprep.subr.mxu0 0.0
      %1309 = vmatpush1.msra.mxu0 0.0
      %1310 = vmatprep.subr.mxu0 0.0
      %1311 = vmatpush1.msra.mxu0 0.0
      %1312 = vmatprep.subr.mxu0 0.0
      %1313 = vmatpush1.msra.mxu0 0.0
      %1314 = vmatprep.subr.mxu0 0.0
      %1315 = vmatpush1.msra.mxu0 0.0
      %1316 = vmatprep.subr.mxu0 0.0
      %1317 = vmatpush1.msra.mxu0 0.0
      %1318 = vmatprep.mubr.f32.mxu0 0.0
      %1319 = vmatmul.mubr.f32.gmra.mrb[0].mxu0 %v871
      %v1320 = vpop.f32.mrb[0].mxu0
      %v1321 = vadd.f32 0.0, %v1320
      %v1322 = vpop.f32.mrb[0].mxu0
      %1323 = vmatprep.mubr.f32.mxu0 0.0
      %1324 = vmatmul.mubr.f32.gmra.mrb[0].mxu0 %v874
      %v1325 = vpop.f32.mrb[0].mxu0
      %v1326 = vadd.f32 0.0, %v1325
      %v1327 = vpop.f32.mrb[0].mxu0
      %1328 = vdwg.mxu0
      %s1329 = scalar_lea.vmem %s481, 16
      %v1330 = vld [vmem:[%s1329] sm:$0xff]
      %v1331 = vld [vmem:[%s1329 + $0x8] sm:$0xff]
      %v1332 = vsel %vm1036, %v1243, %v1330
      %v1333 = vsel %vm1037, %v1248, %v1331
      %s1334 = scalar_lea.vmem %s486, 16
      %v1335 = vld [vmem:[%s1334] sm:$0xff]
      %v1336 = vld [vmem:[%s1334 + $0x8] sm:$0xff]
      %v1337 = vsel %vm1036, %v1321, %v1335
      %v1338 = vsel %vm1037, %v1326, %v1336
      %s1339 = scalar_lea.vmem %s495, 16
      %1340 = vst.msk [vmem:[%s1339] sm:$0xff] %vm1044, %v1332
      %1341 = vst.msk [vmem:[%s1339 + $0x8] sm:$0xff] %vm1044, %v1333
      %s1342 = scalar_lea.vmem %s500, 16
      %1343 = vst.msk [vmem:[%s1342] sm:$0xff] %vm1044, %v1337
      %1344 = vst.msk [vmem:[%s1342 + $0x8] sm:$0xff] %vm1044, %v1338
      %v1345 = vpack.c.bf16 %v792, %v757
      %v1346 = vpack.c.bf16 %v1333, %v1332
      %v1348 = vsel %vm1044, %v1345, 0
      %v1351 = vsel %vm1044, %v1346, 0
      %1353 = vmatprep.subr.bf16.mxu0 0
      %1354 = vmatpush1.bf16.xpose.msra.mxu0 %v1351
      %1355 = vmatprep.subr.bf16.mxu0 0
      %1356 = vmatpush1.bf16.xpose.msra.mxu0 0
      %1357 = vmatprep.subr.bf16.mxu0 0
      %1358 = vmatpush1.bf16.xpose.msra.mxu0 0
      %1359 = vmatprep.subr.bf16.mxu0 0
      %1360 = vmatpush1.bf16.xpose.msra.mxu0 0
      %1361 = vmatprep.subr.bf16.mxu0 0
      %1362 = vmatpush1.bf16.xpose.msra.mxu0 0
      %1363 = vmatprep.subr.bf16.mxu0 0
      %1364 = vmatpush1.bf16.xpose.msra.mxu0 0
      %1365 = vmatprep.subr.bf16.mxu0 0
      %1366 = vmatpush1.bf16.xpose.msra.mxu0 0
      %1367 = vmatprep.subr.bf16.mxu0 0
      %1368 = vmatpush1.bf16.xpose.msra.mxu0 0
      %1369 = vmatprep.subr.bf16.mxu0 0
      %1370 = vmatpush1.bf16.xpose.msra.mxu0 0
      %1371 = vmatprep.subr.bf16.mxu0 0
      %1372 = vmatpush1.bf16.xpose.msra.mxu0 0
      %1373 = vmatprep.subr.bf16.mxu0 0
      %1374 = vmatpush1.bf16.xpose.msra.mxu0 0
      %1375 = vmatprep.subr.bf16.mxu0 0
      %1376 = vmatpush1.bf16.xpose.msra.mxu0 0
      %1377 = vmatprep.subr.bf16.mxu0 0
      %1378 = vmatpush1.bf16.xpose.msra.mxu0 0
      %1379 = vmatprep.subr.bf16.mxu0 0
      %1380 = vmatpush1.bf16.xpose.msra.mxu0 0
      %1381 = vmatprep.subr.bf16.mxu0 0
      %1382 = vmatpush1.bf16.xpose.msra.mxu0 0
      %1383 = vmatprep.subr.bf16.mxu0 0
      %1384 = vmatpush1.bf16.xpose.msra.mxu0 0
      %1385 = vmatprep.mubr.bf16.mxu0 0
      %1386 = vmatmul.mubr.bf16.gmra.mrb[0].mxu0 %v1348
      %v1387 = vpop.f32.mrb[0].mxu0
      %v1388 = vadd.f32 0.0, %v1387
      %v1389 = vpop.f32.mrb[0].mxu0
      %v1390 = vpop.f32.mrb[0].mxu0
      %v1391 = vadd.f32 0.0, %v1390
      %v1392 = vpop.f32.mrb[0].mxu0
      %1393 = vdwg.mxu0
      %v1394 = vmul.f32 %v1388, 0.17677669
      %v1395 = vmul.f32 %v1391, 0.17677669
      %v1396 = vmul.f32 %v1394, 0.02
      %v1397 = vmul.f32 %v1395, 0.02
      %v1398 = vtanh.pop %v1396
      %v1399 = vtanh.pop %v1397
      %v1400 = vmul.f32 %v1398, 50.0
      %v1401 = vmul.f32 %v1399, 50.0
      %v1402 = vadd.f32 %v1400, %v869
      %v1403 = vadd.f32 %v1401, %v869
      %v1404 = vsel %vm686, %v1402, -inf
      %1405 = vmax.xlane.f32.xlu0 %v1404
      %v1406 = vpop.xlane.xlu0 %1405
      %v1407 = vsel %vm686, %v1403, -inf
      %1408 = vmax.xlane.f32.xlu0 %v1407
      %v1409 = vpop.xlane.xlu0 %1408
      %v1410 = vsub.f32 %v1402, %v1406
      %v1411 = vsub.f32 %v1403, %v1409
      %v1412 = vmul.f32 %v1410, 1.442695
      %v1413 = vpow.pop %v1412
      %v1414 = vmul.f32 %v1411, 1.442695
      %v1415 = vpow.pop %v1414
      %v1416 = vsel %vm686, %v1413, 0.0
      %1417 = vadd.xlane.f32.xlu0 %v1416
      %v1418 = vpop.xlane.xlu0 %1417
      %v1419 = vsel %vm686, %v1415, 0.0
      %1420 = vadd.xlane.f32.xlu0 %v1419
      %v1421 = vpop.xlane.xlu0 %1420
      %v1422 = vrcp.pop %v1418
      %v1423 = vrcp.pop %v1421
      %v1424 = vmul.f32 %v1413, %v1422
      %v1425 = vmul.f32 %v1415, %v1423
      %v1426 = vpack.c.bf16 %v1425, %v1424
      %v1427 = vpack.c.bf16 %v1338, %v1337
      %v1429 = vsel %vm686, %v1426, 0
      %1431 = vmatprep.subr.bf16.mxu0 0
      %1432 = vmatpush1.bf16.msra.mxu0 %v1427
      %1433 = vmatprep.subr.bf16.mxu0 0
      %1434 = vmatpush1.bf16.msra.mxu0 0
      %1435 = vmatprep.subr.bf16.mxu0 0
      %1436 = vmatpush1.bf16.msra.mxu0 0
      %1437 = vmatprep.subr.bf16.mxu0 0
      %1438 = vmatpush1.bf16.msra.mxu0 0
      %1439 = vmatprep.subr.bf16.mxu0 0
      %1440 = vmatpush1.bf16.msra.mxu0 0
      %1441 = vmatprep.subr.bf16.mxu0 0
      %1442 = vmatpush1.bf16.msra.mxu0 0
      %1443 = vmatprep.subr.bf16.mxu0 0
      %1444 = vmatpush1.bf16.msra.mxu0 0
      %1445 = vmatprep.subr.bf16.mxu0 0
      %1446 = vmatpush1.bf16.msra.mxu0 0
      %1447 = vmatprep.subr.bf16.mxu0 0
      %1448 = vmatpush1.bf16.msra.mxu0 0
      %1449 = vmatprep.subr.bf16.mxu0 0
      %1450 = vmatpush1.bf16.msra.mxu0 0
      %1451 = vmatprep.subr.bf16.mxu0 0
      %1452 = vmatpush1.bf16.msra.mxu0 0
      %1453 = vmatprep.subr.bf16.mxu0 0
      %1454 = vmatpush1.bf16.msra.mxu0 0
      %1455 = vmatprep.subr.bf16.mxu0 0
      %1456 = vmatpush1.bf16.msra.mxu0 0
      %1457 = vmatprep.subr.bf16.mxu0 0
      %1458 = vmatpush1.bf16.msra.mxu0 0
      %1459 = vmatprep.subr.bf16.mxu0 0
      %1460 = vmatpush1.bf16.msra.mxu0 0
      %1461 = vmatprep.subr.bf16.mxu0 0
      %1462 = vmatpush1.bf16.msra.mxu0 0
      %1463 = vmatprep.mubr.bf16.mxu0 0
      %1464 = vmatmul.mubr.bf16.gmra.mrb[0].mxu0 %v1429
      %v1465 = vpop.f32.mrb[0].mxu0
      %v1466 = vadd.f32 0.0, %v1465
      %v1467 = vpop.f32.mrb[0].mxu0
      %v1468 = vpop.f32.mrb[0].mxu0
      %v1469 = vadd.f32 0.0, %v1468
      %v1470 = vpop.f32.mrb[0].mxu0
      %1471 = vdwg.mxu0
      %1473 = vrot.lane.b32.xlu0 %v1173, 32
      %v1474 = vpop.permute.xlu0 %1473
      %1477 = vrot.lane.b32.xlu0 %v1466, 64
      %v1478 = vpop.permute.xlu0 %1477
      %1481 = vrot.lane.b32.xlu0 %v1469, 96
      %v1482 = vpop.permute.xlu0 %1481
      %v1484 = vsel %vm1044, %v1170, %v1474
      %vm1485 = vcmask 523264
      %v1486 = vsel %vm1485, %v1484, %v1478
      %vm1487 = vcmask 785408
      %v1488 = vsel %vm1487, %v1486, %v1482
      %v1489 = vpack.c.bf16 %v1488, %v1488
      %v1490 = vld [vmem:[%s6] sm:$0xf]
      %v1491 = vld [vmem:[%s6 + $0x4] sm:$0xf]
      %v1492 = vld [vmem:[%s6 + $0x8] sm:$0xf]
      %v1493 = vld [vmem:[%s6 + $0xc] sm:$0xf]
      %v1494 = vld [vmem:[%s6 + $0x10] sm:$0xf]
      %v1495 = vld [vmem:[%s6 + $0x14] sm:$0xf]
      %v1496 = vld [vmem:[%s6 + $0x18] sm:$0xf]
      %v1497 = vld [vmem:[%s6 + $0x1c] sm:$0xf]
      %v1498 = vld [vmem:[%s6 + $0x20] sm:$0xf]
      %v1499 = vld [vmem:[%s6 + $0x24] sm:$0xf]
      %v1500 = vld [vmem:[%s6 + $0x28] sm:$0xf]
      %v1501 = vld [vmem:[%s6 + $0x2c] sm:$0xf]
      %v1502 = vld [vmem:[%s6 + $0x30] sm:$0xf]
      %v1503 = vld [vmem:[%s6 + $0x34] sm:$0xf]
      %v1504 = vld [vmem:[%s6 + $0x38] sm:$0xf]
      %v1505 = vld [vmem:[%s6 + $0x3c] sm:$0xf]
      %v1522 = vunpack.c.l.b16 %v1490
      %v1523 = vunpack.c.l.b16 %v1491
      %v1524 = vunpack.c.l.b16 %v1492
      %v1525 = vunpack.c.l.b16 %v1493
      %v1526 = vunpack.c.l.b16 %v1494
      %v1527 = vunpack.c.l.b16 %v1495
      %v1528 = vunpack.c.l.b16 %v1496
      %v1529 = vunpack.c.l.b16 %v1497
      %v1530 = vunpack.c.l.b16 %v1498
      %v1531 = vunpack.c.l.b16 %v1499
      %v1532 = vunpack.c.l.b16 %v1500
      %v1533 = vunpack.c.l.b16 %v1501
      %v1534 = vunpack.c.l.b16 %v1502
      %v1535 = vunpack.c.l.b16 %v1503
      %v1536 = vunpack.c.l.b16 %v1504
      %v1537 = vunpack.c.l.b16 %v1505
      %v1538 = vpack.c.b16 %v1523, %v1522
      %v1539 = vpack.c.b16 %v1525, %v1524
      %v1540 = vpack.c.b16 %v1527, %v1526
      %v1541 = vpack.c.b16 %v1529, %v1528
      %v1542 = vpack.c.b16 %v1531, %v1530
      %v1543 = vpack.c.b16 %v1533, %v1532
      %v1544 = vpack.c.b16 %v1535, %v1534
      %v1545 = vpack.c.b16 %v1537, %v1536
      %1554 = vmatprep.subr.bf16.mxu0 0
      %1555 = vmatpush1.bf16.msra.mxu0 %v1538
      %1556 = vmatprep.subr.bf16.mxu0 0
      %1557 = vmatpush1.bf16.msra.mxu0 %v1539
      %1558 = vmatprep.subr.bf16.mxu0 0
      %1559 = vmatpush1.bf16.msra.mxu0 %v1540
      %1560 = vmatprep.subr.bf16.mxu0 0
      %1561 = vmatpush1.bf16.msra.mxu0 %v1541
      %1562 = vmatprep.subr.bf16.mxu0 0
      %1563 = vmatpush1.bf16.msra.mxu0 %v1542
      %1564 = vmatprep.subr.bf16.mxu0 0
      %1565 = vmatpush1.bf16.msra.mxu0 %v1543
      %1566 = vmatprep.subr.bf16.mxu0 0
      %1567 = vmatpush1.bf16.msra.mxu0 %v1544
      %1568 = vmatprep.subr.bf16.mxu0 0
      %1569 = vmatpush1.bf16.msra.mxu0 %v1545
      %1570 = vmatprep.subr.bf16.mxu0 0
      %1571 = vmatpush1.bf16.msra.mxu0 0
      %1572 = vmatprep.subr.bf16.mxu0 0
      %1573 = vmatpush1.bf16.msra.mxu0 0
      %1574 = vmatprep.subr.bf16.mxu0 0
      %1575 = vmatpush1.bf16.msra.mxu0 0
      %1576 = vmatprep.subr.bf16.mxu0 0
      %1577 = vmatpush1.bf16.msra.mxu0 0
      %1578 = vmatprep.subr.bf16.mxu0 0
      %1579 = vmatpush1.bf16.msra.mxu0 0
      %1580 = vmatprep.subr.bf16.mxu0 0
      %1581 = vmatpush1.bf16.msra.mxu0 0
      %1582 = vmatprep.subr.bf16.mxu0 0
      %1583 = vmatpush1.bf16.msra.mxu0 0
      %1584 = vmatprep.subr.bf16.mxu0 0
      %1585 = vmatpush1.bf16.msra.mxu0 0
      %1586 = vmatprep.mubr.bf16.mxu0 0
      %1587 = vmatmul.mubr.bf16.gmra.mrb[0].mxu0 %v1489
      %v1588 = vpop.f32.mrb[0].mxu0
      %v1589 = vadd.f32 0.0, %v1588
      %v1590 = vpop.f32.mrb[0].mxu0
      %v1591 = vpop.f32.mrb[0].mxu0
      %v1592 = vpop.f32.mrb[0].mxu0
      %1593 = vdwg.mxu0
      %v1594 = vld [vmem:[%s8] sm:$0x1]
      %v1595 = vmul.f32 %v1589, %v1589
      %1596 = vadd.xlane.f32.xlu0 %v1595
      %v1597 = vpop.xlane.xlu0 %1596
      %v1598 = vmul.f32 %v1597, %v507
      %v1599 = vadd.f32 %v1598, 1e-06
      %v1600 = vrsqrt.pop %v1599
      %v1601 = vmul.f32 %v1589, %v1600
      %v1602 = vadd.f32 %v1594, 1.0
      %v1604 = vlaneseq
      %v1605 = vshrl.u32 %v1604, 7
      %v1606 = vsub.s32 0, %v1605
      %v1607 = vrot.slane %v1602, %v1606
      %v1609 = vmul.f32 %v1601, %v1607
      %v1610 = vadd.f32 %v502, %v1609
      %1611 = vst [vmem:[%s490] sm:$0xff] %v1610
      %p1612 = scmp.lt.s32.totalorder %s25, 1
      %s1613 = scalar_select %p1612, %s25, 1
      %s1614 = smul.addr %s1613, 8
      %s1615 = scalar_lea.vmem %s11, %s1614
      %p1616 = scmp.lt.s32.totalorder %s25, 1
      %s1617 = scalar_select %p1616, %s25, 1
      %s1618 = smul.addr %s1617, 4
      %s1619 = smul.addr %s1618, 8
      %s1620 = scalar_lea.vmem %s12, %s1619
      %p1621 = scmp.lt.s32.totalorder %s25, 1
      %s1622 = scalar_select %p1621, %s25, 1
      %s1623 = smul.addr %s1622, 4
      %s1624 = smul.addr %s1623, 8
      %s1625 = scalar_lea.vmem %s13, %s1624
      // Predicated region
      $region65: #{gemma2_forward.9} parent=63 // pred_check
        %p1626 = pneg %p289
      $region66: #{gemma2_forward.9} parent=63 // pred_check_branch
        %1628 = sbr.rel (%p1626) target = $region68
      $region67: #{gemma2_forward.9} parent=63 // pred_region
        _
      $region68: #{gemma2_forward.9} parent=63 // pred_fallthru
        _
      // Predicated region
      $region69: #{gemma2_forward.9} parent=63 // pred_check
        %p1629 = pneg %p315
      $region70: #{gemma2_forward.9} parent=63 // pred_check_branch
        %1631 = sbr.rel (%p1629) target = $region72
      $region71: #{gemma2_forward.9} parent=63 // pred_region
        _
      $region72: #{gemma2_forward.9} parent=63 // pred_fallthru
        _
      // Predicated region
      $region73: #{gemma2_forward.9} parent=63 // pred_check
        %p1632 = pneg %p341
      $region74: #{gemma2_forward.9} parent=63 // pred_check_branch
        %1634 = sbr.rel (%p1632) target = $region76
      $region75: #{gemma2_forward.9} parent=63 // pred_region
        _
      $region76: #{gemma2_forward.9} parent=63 // pred_fallthru
        _
    $region64: #{gemma2_forward.9} parent=5 // pred_fallthru
      _
    %p1635 = scmp.le.s32.totalorder 2, %s20
    // Predicated region
    $region77: #{gemma2_forward.9} parent=5 // pred_check
      %p1636 = pneg %p1635
    $region78: #{gemma2_forward.9} parent=5 // pred_check_branch
      %1638 = sbr.rel (%p1636) target = $region80
    $region79: #{gemma2_forward.9} parent=5 // pred_region
      %s1639 = ssub.s32 %s20, 2
      // Predicated region
      $region81: #{gemma2_forward.9} parent=79 // pred_check
        %p1640 = pneg %p295
      $region82: #{gemma2_forward.9} parent=79 // pred_check_branch
        %1642 = sbr.rel (%p1640) target = $region84
      $region83: #{gemma2_forward.9} parent=79 // pred_region
        %p1643 = scmp.lt.s32.totalorder %s26, 1
        %s1644 = scalar_select %p1643, %s26, 1
        %s1645 = smul.addr %s1644, 8
        %s1646 = scalar_lea.vmem %s11, %s1645
      $region84: #{gemma2_forward.9} parent=79 // pred_fallthru
        _
      // Predicated region
      $region85: #{gemma2_forward.9} parent=79 // pred_check
        %p1647 = pneg %p321
      $region86: #{gemma2_forward.9} parent=79 // pred_check_branch
        %1649 = sbr.rel (%p1647) target = $region88
      $region87: #{gemma2_forward.9} parent=79 // pred_region
        %p1650 = scmp.lt.s32.totalorder %s26, 1
        %s1651 = scalar_select %p1650, %s26, 1
        %s1652 = smul.addr %s1651, 4
        %s1653 = smul.addr %s1652, 8
        %s1654 = scalar_lea.vmem %s12, %s1653
      $region88: #{gemma2_forward.9} parent=79 // pred_fallthru
        _
      // Predicated region
      $region89: #{gemma2_forward.9} parent=79 // pred_check
        %p1655 = pneg %p347
      $region90: #{gemma2_forward.9} parent=79 // pred_check_branch
        %1657 = sbr.rel (%p1655) target = $region92
      $region91: #{gemma2_forward.9} parent=79 // pred_region
        %p1658 = scmp.lt.s32.totalorder %s26, 1
        %s1659 = scalar_select %p1658, %s26, 1
        %s1660 = smul.addr %s1659, 4
        %s1661 = smul.addr %s1660, 8
        %s1662 = scalar_lea.vmem %s13, %s1661
      $region92: #{gemma2_forward.9} parent=79 // pred_fallthru
        _
    $region80: #{gemma2_forward.9} parent=5 // pred_fallthru
      _
  $region6: #{gemma2_forward.9} parent=0 // loop_footer
    %s24 = sadd.s32 1, %s20
  $region7: #{gemma2_forward.9} parent=0 // loop_footer_branch
    %19 = sbr.rel target = $region3
  $region8: #{gemma2_forward.9} parent=0 // loop_exit
    _

</llo_original>
